<compile_context>
chip_gen: v6e
topology: v6e:2x2x1
jax: 0.10.0
libtpu: 0.0.40
codegen_flags: <defaults>
</compile_context>

<pallas_src>
import functools

import jax
import jax.numpy as jnp
from jax.experimental import pallas as pl
from jax.experimental.pallas import tpu as pltpu


def _round_up(x, m):
    return (x + m - 1) // m * m


def _pad2d(x, rows, cols):
    return jnp.pad(x, ((0, rows - x.shape[0]), (0, cols - x.shape[1])))


def _neural_sde_kernel(n_chunks, chunk_k, h_pad,
                       dts_ref, latch_ref, fidx_ref, x0_ref, noise_hbm,
                       w_init_ref, b_init_ref, w_fg_ref, b_fg_ref,
                       w1_ref, b1_ref, w2_ref, b2_ref,
                       out_ref,
                       nbuf, nsem, z_ref, zfin_ref):
    tile = pl.program_id(0)
    f32, bf16 = jnp.float32, jnp.bfloat16

    # ---- chunked Brownian stream: one DMA / one wait per K steps -------------
    def noise_copy(chunk, slot):
        return pltpu.make_async_copy(
            noise_hbm.at[tile, chunk],
            nbuf.at[pl.ds(slot * chunk_k, chunk_k)],
            nsem.at[slot])

    noise_copy(0, 0).start()              # prime; overlaps with the z0 matmul

    # ---- initial_network: z0 = x0 @ W_init + b_init (bf16 MXU, f32 acc) ------
    z0 = (jnp.dot(x0_ref[...].astype(bf16), w_init_ref[...],
                  preferred_element_type=f32) + b_init_ref[...])
    z_ref[...] = z0
    zfin_ref[...] = z0                    # samples with final_index == 0 keep z0

    # ---- Euler-Maruyama over chunks of K (sub)steps ---------------------------
    @pl.loop(0, n_chunks)
    def _(c):
        slot = c & 1
        base = slot * chunk_k
        noise_copy(c, slot).wait()

        @pl.when(c + 1 < n_chunks)
        def _():
            noise_copy(c + 1, 1 - slot).start()

        # K steps, fully unrolled (short fixed trip-count -> LLO visibility)
        for j in range(chunk_k):
            s = c * chunk_k + j
            h = dts_ref[s]
            latch = latch_ref[s]

            z = z_ref[...]
            # fused drift|diffusion: single (bt,H)@(H,2H) MXU push per step;
            # weights / bias re-read from VMEM (plentiful vld slots, no vreg pin)
            pre = (jnp.dot(z.astype(bf16), w_fg_ref[...],
                           preferred_element_type=f32) + b_fg_ref[...])
            drift = jnp.tanh(pre[:, :h_pad])
            # sigmoid(x) = 0.5*tanh(0.5x)+0.5 : one EUP push instead of exp+recip
            diffusion = 0.5 * jnp.tanh(0.5 * pre[:, h_pad:]) + 0.5
            dW = nbuf[base + j].astype(f32)           # pre-scaled by sqrt(dt)
            z_new = z + drift * h + diffusion * dW
            z_ref[...] = z_new

            # online "gather(dim=0, index=final_index)", only at real grid times
            @pl.when(latch >= 0)
            def _(z_new=z_new, latch=latch):
                zfin_ref[...] = jnp.where(fidx_ref[...] == latch,
                                          z_new, zfin_ref[...])

    # ---- readout: Tanh -> Linear(H,H) -> ReLU -> Linear(H,O) -----------------
    zf = zfin_ref[...]
    h1 = jnp.maximum(
        jnp.dot(jnp.tanh(zf).astype(bf16), w1_ref[...],
                preferred_element_type=f32) + b1_ref[...], 0.0)
    out = (jnp.dot(h1.astype(bf16), w2_ref[...],
                   preferred_element_type=f32) + b2_ref[...])
    out_ref[...] = out.astype(out_ref.dtype)          # lane-dense (O padded to 128)


def neural_sde_forward(times, coeffs, final_index, params, noise, *,
                       n_sub=1, b_tile=None, chunk=8):
    """Pallas implementation of NeuralSDE.forward (stream=False, z0=None)."""
    B, T, C_in = coeffs.shape
    H = params["wf"].shape[0]
    O = params["w2"].shape[1]
    assert T >= 2
    steps = (T - 1) * n_sub
    assert noise.shape == (steps, B, H)

    f32, bf16 = jnp.float32, jnp.bfloat16

    # ---- tile geometry --------------------------------------------------------
    # v7x/v5p/v4 have 2 TensorCores -> want >=2 grid tiles so "parallel" shards;
    # single-TC v5e/v6e prefer one fat tile (amortize per-step fixed cost).
    if b_tile is None:
        n_target = 1
        try:
            kind = jax.devices()[0].device_kind.lower()
            if ("v7" in kind) or ("v5p" in kind) or ("v4" in kind):
                n_target = 2
        except Exception:
            pass
        bt = min(512, _round_up(pl.cdiv(B, n_target), 8))
    else:
        bt = _round_up(min(b_tile, _round_up(B, 8)), 8)
    bt = max(8, bt)
    B_pad = _round_up(B, bt)
    n_btiles = B_pad // bt
    H_pad = _round_up(H, 128)
    C_pad = _round_up(C_in, 128)
    O_pad = _round_up(O, 128)

    chunk_k = int(max(1, min(chunk, steps)))
    n_chunks = pl.cdiv(steps, chunk_k)
    steps_pad = n_chunks * chunk_k

    # glue: X.evaluate(times[0]) ~ value of the control path at t0
    # TODO(synk): assumes the first spline coefficient equals X.evaluate(times[0]);
    # for other cubic-spline coefficient layouts insert the spline eval here.
    x0 = jnp.pad(coeffs[:, 0, :].astype(f32),
                 ((0, B_pad - B), (0, C_pad - C_in)))

    # per-(sub)step dt and the time index at which to latch z; pad steps are no-ops
    dts = (times[1:] - times[:-1]).astype(f32) / n_sub
    dts_sub = jnp.repeat(dts, n_sub)                              # (steps,)
    sqdts_sub = jnp.sqrt(dts_sub)
    s_idx = jnp.arange(1, steps + 1)
    latch = jnp.where(s_idx % n_sub == 0, s_idx // n_sub, -1).astype(jnp.int32)
    dts_pad = jnp.pad(dts_sub, (0, steps_pad - steps))
    latch_pad = jnp.pad(latch, (0, steps_pad - steps), constant_values=-1)

    fidx = jnp.pad(final_index.astype(jnp.int32), (0, B_pad - B)).reshape(B_pad, 1)

    # Brownian increments: sqrt(dt) pre-folded, bf16 stream, laid out so each
    # per-chunk DMA is a contiguous (chunk_k, bt, H_pad) slab for one batch tile.
    dw = (noise.astype(f32) * sqdts_sub[:, None, None]).astype(bf16)
    dw = jnp.pad(dw, ((0, steps_pad - steps), (0, B_pad - B), (0, H_pad - H)))
    noise_p = dw.reshape(n_chunks, chunk_k, n_btiles, bt, H_pad)
    noise_p = noise_p.transpose(2, 0, 1, 3, 4)        # (tiles, chunks, K, bt, H_pad)

    # pad / fuse / cast parameters (bf16 weights for the MXU, f32 biases)
    w_init = _pad2d(params["w_init"].astype(f32), C_pad, H_pad).astype(bf16)
    b_init = _pad2d(params["b_init"].astype(f32), 1, H_pad)
    w_fg = jnp.concatenate([_pad2d(params["wf"].astype(f32), H_pad, H_pad),
                            _pad2d(params["wg"].astype(f32), H_pad, H_pad)],
                           axis=1).astype(bf16)                   # (H_pad, 2*H_pad)
    b_fg = jnp.concatenate([_pad2d(params["bf"].astype(f32), 1, H_pad),
                            _pad2d(params["bg"].astype(f32), 1, H_pad)], axis=1)
    w1 = _pad2d(params["w1"].astype(f32), H_pad, H_pad).astype(bf16)
    b1 = _pad2d(params["b1"].astype(f32), 1, H_pad)
    w2 = _pad2d(params["w2"].astype(f32), H_pad, O_pad).astype(bf16)
    b2 = _pad2d(params["b2"].astype(f32), 1, O_pad)

    kernel = functools.partial(_neural_sde_kernel, n_chunks, chunk_k, H_pad)

    smem = pl.BlockSpec(memory_space=pltpu.MemorySpace.SMEM)
    const = lambda shape: pl.BlockSpec(shape, lambda i: (0, 0))

    # actual resident set (+margin), not a blanket 32-56MiB claim (v7x-friendly)
    nbytes = lambda a: int(a.size) * a.dtype.itemsize
    weight_bytes = sum(nbytes(a) for a in (w_init, b_init, w_fg, b_fg, w1, b1, w2, b2))
    io_bytes = bt * (C_pad + 128 + O_pad) * 4          # x0 + fidx(lane-padded) + out
    scratch_bytes = 2 * chunk_k * bt * H_pad * 2 + 2 * bt * H_pad * 4
    vmem_limit = int(min(max(2 * (weight_bytes + io_bytes) + scratch_bytes + (4 << 20),
                             8 << 20), 32 << 20))

    out = pl.pallas_call(
        kernel,
        out_shape=jax.ShapeDtypeStruct((B_pad, O_pad), f32),
        grid_spec=pltpu.PrefetchScalarGridSpec(
            num_scalar_prefetch=0,
            grid=(n_btiles,),
            in_specs=[
                smem, smem,                                        # dt, latch index
                pl.BlockSpec((bt, 1), lambda i: (i, 0)),           # final_index
                pl.BlockSpec((bt, C_pad), lambda i: (i, 0)),       # x0
                pl.BlockSpec(memory_space=pl.ANY),                 # noise stays in HBM
                const((C_pad, H_pad)), const((1, H_pad)),          # W_init, b_init
                const((H_pad, 2 * H_pad)), const((1, 2 * H_pad)),  # fused Wf|Wg, bf|bg
                const((H_pad, H_pad)), const((1, H_pad)),          # W1, b1
                const((H_pad, O_pad)), const((1, O_pad)),          # W2, b2
            ],
            out_specs=pl.BlockSpec((bt, O_pad), lambda i: (i, 0)),
            scratch_shapes=[
                pltpu.VMEM((2 * chunk_k, bt, H_pad), bf16),  # noise chunk double buffer
                pltpu.SemaphoreType.DMA((2,)),
                pltpu.VMEM((bt, H_pad), f32),                # z
                pltpu.VMEM((bt, H_pad), f32),                # z latched at final_index
            ]),
        compiler_params=pltpu.CompilerParams(
            dimension_semantics=("parallel",),   # batch tiles shard across TCs (v7x)
            vmem_limit_bytes=vmem_limit),
    )(dts_pad, latch_pad, fidx, x0, noise_p,
      w_init, b_init, w_fg, b_fg, w1, b1, w2, b2)
    return out[:B, :O]


def _reference_forward(times, coeffs, final_index, params, noise, n_sub=1):
    """Pure-JAX mirror of the kernel math (bf16 matmul inputs / bf16 dW, f32 acc)."""
    def mm(x, w):
        return jnp.dot(x.astype(jnp.bfloat16), w.astype(jnp.bfloat16),
                       preferred_element_type=jnp.float32)

    z = mm(coeffs[:, 0, :], params["w_init"]) + params["b_init"]
    z_fin = z
    fidx = final_index.reshape(-1, 1)
    step = 0
    for i in range(times.shape[0] - 1):
        h = (times[i + 1] - times[i]) / n_sub
        sq = jnp.sqrt(h)
        for _ in range(n_sub):
            drift = jnp.tanh(mm(z, params["wf"]) + params["bf"])
            diffusion = jax.nn.sigmoid(mm(z, params["wg"]) + params["bg"])
            dW = (noise[step] * sq).astype(jnp.bfloat16).astype(jnp.float32)
            z = z + drift * h + diffusion * dW
            step += 1
        z_fin = jnp.where(fidx == (i + 1), z, z_fin)
    h1 = jnp.maximum(mm(jnp.tanh(z_fin), params["w1"]) + params["b1"], 0.0)
    return mm(h1, params["w2"]) + params["b2"]


def _init_linear(key, fan_in, fan_out):
    """Deterministic torch.nn.Linear-style init: U(-1/sqrt(fan_in), +)."""
    kw, kb = jax.random.split(key)
    bound = 1.0 / jnp.sqrt(float(fan_in))
    w = jax.random.uniform(kw, (fan_in, fan_out), jnp.float32, -bound, bound)
    b = jax.random.uniform(kb, (1, fan_out), jnp.float32, -bound, bound)
    return w, b


if __name__ == "__main__":
    # small shapes consistent with the module (2 batch tiles of 16, 2 noise chunks)
    B, T, C_IN, H, C_OUT = 32, 8, 4, 32, 4
    N_SUB = 2

    root = jax.random.PRNGKey(0)
    k_coeff, k_fidx, k_noise, k0, k1, k2, k3, k4 = jax.random.split(root, 8)

    params = {}
    params["w_init"], params["b_init"] = _init_linear(k0, C_IN, H)   # initial_network
    params["wf"], params["bf"] = _init_linear(k1, H, H)              # SDE drift net
    params["wg"], params["bg"] = _init_linear(k2, H, H)              # SDE diffusion net
    params["w1"], params["b1"] = _init_linear(k3, H, H)              # linear[1]
    params["w2"], params["b2"] = _init_linear(k4, H, C_OUT)          # linear[3]

    times = jnp.linspace(0.0, 1.0, T, dtype=jnp.float32)             # (T,)
    coeffs = jax.random.normal(k_coeff, (B, T, C_IN), jnp.float32)   # control path
    final_index = jax.random.randint(k_fidx, (B,), 0, T, jnp.int32)  # per-sample final time
    noise = jax.random.normal(k_noise, ((T - 1) * N_SUB, B, H), jnp.float32)

    pred_y = neural_sde_forward(times, coeffs, final_index, params, noise,
                                n_sub=N_SUB, b_tile=16, chunk=8)
    jax.block_until_ready(pred_y)

    assert pred_y.shape == (B, C_OUT)
    assert bool(jnp.all(jnp.isfinite(pred_y)))

    ref_y = _reference_forward(times, coeffs, final_index, params, noise, N_SUB)
    err = float(jnp.max(jnp.abs(pred_y - ref_y)))
    assert err < 5e-2, f"max abs error vs reference: {err}"
    print("KERNEL_OK")
</pallas_src>

<mosaic_0001>
module attributes {stable_mosaic.version = 11 : i64} {
  func.func @_neural_sde_kernel(%arg0: i32, %arg1: memref<16xf32, #tpu.memory_space<smem>>, %arg2: memref<16xi32, #tpu.memory_space<smem>>, %arg3: memref<16x1xi32, #tpu.memory_space<vmem>>, %arg4: memref<16x128xf32, #tpu.memory_space<vmem>>, %arg5: memref<2x2x8x16x128xbf16, #tpu.memory_space<any>>, %arg6: memref<128x128xbf16, #tpu.memory_space<vmem>>, %arg7: memref<1x128xf32, #tpu.memory_space<vmem>>, %arg8: memref<128x256xbf16, #tpu.memory_space<vmem>>, %arg9: memref<1x256xf32, #tpu.memory_space<vmem>>, %arg10: memref<128x128xbf16, #tpu.memory_space<vmem>>, %arg11: memref<1x128xf32, #tpu.memory_space<vmem>>, %arg12: memref<128x128xbf16, #tpu.memory_space<vmem>>, %arg13: memref<1x128xf32, #tpu.memory_space<vmem>>, %arg14: memref<16x128xf32, #tpu.memory_space<vmem>>, %arg15: memref<16x16x128xbf16, #tpu.memory_space<vmem>>, %arg16: memref<2x!tpu.dma_semaphore, #tpu.memory_space<semaphore_mem>>, %arg17: memref<16x128xf32, #tpu.memory_space<vmem>>, %arg18: memref<16x128xf32, #tpu.memory_space<vmem>>) attributes {dimension_semantics = [#tpu.dimension_semantics<parallel>], iteration_bounds = array<i64: 2>, scalar_prefetch = 0 : i64, scratch_operands = 4 : i64, tpu.core_type = #tpu.core_type<tc>, window_params = [{transform_indices = @transform_0, window_bounds = array<i64: 16>}, {transform_indices = @transform_1, window_bounds = array<i64: 16>}, {transform_indices = @transform_2, window_bounds = array<i64: 16, 1>}, {transform_indices = @transform_3, window_bounds = array<i64: 16, 128>}, {}, {pipeline_mode = #tpu.pipeline_mode<synchronous>, transform_indices = @transform_5, window_bounds = array<i64: 128, 128>}, {pipeline_mode = #tpu.pipeline_mode<synchronous>, transform_indices = @transform_6, window_bounds = array<i64: 1, 128>}, {pipeline_mode = #tpu.pipeline_mode<synchronous>, transform_indices = @transform_7, window_bounds = array<i64: 128, 256>}, {pipeline_mode = #tpu.pipeline_mode<synchronous>, transform_indices = @transform_8, window_bounds = array<i64: 1, 256>}, {pipeline_mode = #tpu.pipeline_mode<synchronous>, transform_indices = @transform_9, window_bounds = array<i64: 128, 128>}, {pipeline_mode = #tpu.pipeline_mode<synchronous>, transform_indices = @transform_10, window_bounds = array<i64: 1, 128>}, {pipeline_mode = #tpu.pipeline_mode<synchronous>, transform_indices = @transform_11, window_bounds = array<i64: 128, 128>}, {pipeline_mode = #tpu.pipeline_mode<synchronous>, transform_indices = @transform_12, window_bounds = array<i64: 1, 128>}, {transform_indices = @transform_13, window_bounds = array<i64: 16, 128>}]} {
    %c0_i32 = arith.constant 0 : i32
    %c0_i32_0 = arith.constant 0 : i32
    %c0_i32_1 = arith.constant 0 : i32
    %c0_i32_2 = arith.constant 0 : i32
    %c0_i32_3 = arith.constant 0 : i32
    %0 = tpu.memref_slice %arg5[%arg0, %c0_i32, %c0_i32_1, %c0_i32_2, %c0_i32_3] : memref<2x2x8x16x128xbf16, #tpu.memory_space<any>> -> memref<1x1x8x16x128xbf16, #tpu.memory_space<any>>
    %1 = tpu.memref_squeeze %0 : memref<1x1x8x16x128xbf16, #tpu.memory_space<any>> -> memref<8x16x128xbf16, #tpu.memory_space<any>>
    %c0_i32_4 = arith.constant 0 : i32
    %c0_i32_5 = arith.constant 0 : i32
    %c0_i32_6 = arith.constant 0 : i32
    %2 = tpu.memref_slice %arg15[%c0_i32_4, %c0_i32_5, %c0_i32_6] : memref<16x16x128xbf16, #tpu.memory_space<vmem>> -> memref<8x16x128xbf16, #tpu.memory_space<vmem>>
    %3 = tpu.memref_slice %arg16[%c0_i32_0] : memref<2x!tpu.dma_semaphore, #tpu.memory_space<semaphore_mem>> -> memref<1x!tpu.dma_semaphore, #tpu.memory_space<semaphore_mem>>
    %4 = tpu.memref_squeeze %3 : memref<1x!tpu.dma_semaphore, #tpu.memory_space<semaphore_mem>> -> memref<!tpu.dma_semaphore, #tpu.memory_space<semaphore_mem>>
    tpu.enqueue_dma source(%1 : memref<8x16x128xbf16, #tpu.memory_space<any>>) target(%2 : memref<8x16x128xbf16, #tpu.memory_space<vmem>>) target_semaphore(%4 : memref<!tpu.dma_semaphore, #tpu.memory_space<semaphore_mem>>)
    %c0 = arith.constant 0 : index
    %c0_7 = arith.constant 0 : index
    %5 = vector.load %arg4[%c0, %c0_7] : memref<16x128xf32, #tpu.memory_space<vmem>>, vector<16x128xf32>
    %6 = arith.truncf %5 : vector<16x128xf32> to vector<16x128xbf16>
    %c0_8 = arith.constant 0 : index
    %c0_9 = arith.constant 0 : index
    %7 = vector.load %arg6[%c0_8, %c0_9] : memref<128x128xbf16, #tpu.memory_space<vmem>>, vector<128x128xbf16>
    %cst = arith.constant dense<0.000000e+00> : vector<16x128xf32>
    %8 = tpu.matmul %6, %7, %cst {dimension_numbers = #tpu.dot_dimension_numbers<[1], [0], [0], [1], [0, 0, 1, 1], [], []>} : vector<16x128xbf16>, vector<128x128xbf16>, vector<16x128xf32> -> vector<16x128xf32>
    %c0_10 = arith.constant 0 : index
    %c0_11 = arith.constant 0 : index
    %9 = vector.load %arg7[%c0_10, %c0_11] : memref<1x128xf32, #tpu.memory_space<vmem>>, vector<1x128xf32>
    %10 = vector.broadcast %9 : vector<1x128xf32> to vector<16x128xf32>
    %11 = arith.addf %8, %10 : vector<16x128xf32>
    %c0_12 = arith.constant 0 : index
    %c0_13 = arith.constant 0 : index
    %12 = vector.load %arg17[%c0_12, %c0_13] : memref<16x128xf32, #tpu.memory_space<vmem>>, vector<16x128xf32>
    tpu.vector_store %arg17[%c0_12, %c0_13], %11 {strides = array<i32>} : memref<16x128xf32, #tpu.memory_space<vmem>>, vector<16x128xf32>,
    %c0_14 = arith.constant 0 : index
    %c0_15 = arith.constant 0 : index
    %13 = vector.load %arg18[%c0_14, %c0_15] : memref<16x128xf32, #tpu.memory_space<vmem>>, vector<16x128xf32>
    tpu.vector_store %arg18[%c0_14, %c0_15], %11 {strides = array<i32>} : memref<16x128xf32, #tpu.memory_space<vmem>>, vector<16x128xf32>,
    %c0_i32_16 = arith.constant 0 : i32
    %c2_i32 = arith.constant 2 : i32
    %14 = arith.addi %c0_i32_16, %c2_i32 : i32
    %c1_i32 = arith.constant 1 : i32
    scf.for %arg19 = %c0_i32_16 to %14 step %c1_i32  : i32 {
      %c1_i32_33 = arith.constant 1 : i32
      %32 = arith.muli %arg19, %c1_i32_33 : i32
      %c0_i32_34 = arith.constant 0 : i32
      %33 = arith.addi %c0_i32_34, %32 : i32
      %c1_i32_35 = arith.constant 1 : i32
      %34 = arith.andi %33, %c1_i32_35 : i32
      %c8_i32 = arith.constant 8 : i32
      %35 = arith.muli %34, %c8_i32 : i32
      %c8_i32_36 = arith.constant 8 : i32
      %36 = arith.muli %34, %c8_i32_36 : i32
      %c0_i32_37 = arith.constant 0 : i32
      %c0_i32_38 = arith.constant 0 : i32
      %c0_i32_39 = arith.constant 0 : i32
      %37 = tpu.memref_slice %arg5[%arg0, %33, %c0_i32_37, %c0_i32_38, %c0_i32_39] : memref<2x2x8x16x128xbf16, #tpu.memory_space<any>> -> memref<1x1x8x16x128xbf16, #tpu.memory_space<any>>
      %38 = tpu.memref_squeeze %37 : memref<1x1x8x16x128xbf16, #tpu.memory_space<any>> -> memref<8x16x128xbf16, #tpu.memory_space<any>>
      %c0_i32_40 = arith.constant 0 : i32
      %c0_i32_41 = arith.constant 0 : i32
      %39 = tpu.memref_slice %arg15[%36, %c0_i32_40, %c0_i32_41] : memref<16x16x128xbf16, #tpu.memory_space<vmem>> -> memref<8x16x128xbf16, #tpu.memory_space<vmem>>
      %40 = tpu.memref_slice %arg16[%34] : memref<2x!tpu.dma_semaphore, #tpu.memory_space<semaphore_mem>> -> memref<1x!tpu.dma_semaphore, #tpu.memory_space<semaphore_mem>>
      %41 = tpu.memref_squeeze %40 : memref<1x!tpu.dma_semaphore, #tpu.memory_space<semaphore_mem>> -> memref<!tpu.dma_semaphore, #tpu.memory_space<semaphore_mem>>
      tpu.wait_dma2 semaphore(%41 : memref<!tpu.dma_semaphore, #tpu.memory_space<semaphore_mem>>) src(%38 : memref<8x16x128xbf16, #tpu.memory_space<any>>) dst(%39 : memref<8x16x128xbf16, #tpu.memory_space<vmem>>)
      %c1_i32_42 = arith.constant 1 : i32
      %42 = arith.addi %33, %c1_i32_42 : i32
      %c2_i32_43 = arith.constant 2 : i32
      %43 = arith.cmpi slt, %42, %c2_i32_43 : i32
      %44 = arith.extui %43 : i1 to i32
      %c0_i32_44 = arith.constant 0 : i32
      %45 = arith.cmpi ne, %44, %c0_i32_44 : i32
      scf.if %45 {
        %c1_i32_192 = arith.constant 1 : i32
        %342 = arith.addi %33, %c1_i32_192 : i32
        %c1_i32_193 = arith.constant 1 : i32
        %343 = arith.subi %c1_i32_193, %34 : i32
        %c8_i32_194 = arith.constant 8 : i32
        %344 = arith.muli %343, %c8_i32_194 : i32
        %c0_i32_195 = arith.constant 0 : i32
        %c0_i32_196 = arith.constant 0 : i32
        %c0_i32_197 = arith.constant 0 : i32
        %345 = tpu.memref_slice %arg5[%arg0, %342, %c0_i32_195, %c0_i32_196, %c0_i32_197] : memref<2x2x8x16x128xbf16, #tpu.memory_space<any>> -> memref<1x1x8x16x128xbf16, #tpu.memory_space<any>>
        %346 = tpu.memref_squeeze %345 : memref<1x1x8x16x128xbf16, #tpu.memory_space<any>> -> memref<8x16x128xbf16, #tpu.memory_space<any>>
        %c0_i32_198 = arith.constant 0 : i32
        %c0_i32_199 = arith.constant 0 : i32
        %347 = tpu.memref_slice %arg15[%344, %c0_i32_198, %c0_i32_199] : memref<16x16x128xbf16, #tpu.memory_space<vmem>> -> memref<8x16x128xbf16, #tpu.memory_space<vmem>>
        %348 = tpu.memref_slice %arg16[%343] : memref<2x!tpu.dma_semaphore, #tpu.memory_space<semaphore_mem>> -> memref<1x!tpu.dma_semaphore, #tpu.memory_space<semaphore_mem>>
        %349 = tpu.memref_squeeze %348 : memref<1x!tpu.dma_semaphore, #tpu.memory_space<semaphore_mem>> -> memref<!tpu.dma_semaphore, #tpu.memory_space<semaphore_mem>>
        tpu.enqueue_dma source(%346 : memref<8x16x128xbf16, #tpu.memory_space<any>>) target(%347 : memref<8x16x128xbf16, #tpu.memory_space<vmem>>) target_semaphore(%349 : memref<!tpu.dma_semaphore, #tpu.memory_space<semaphore_mem>>)
      } else {
      }
      %c8_i32_45 = arith.constant 8 : i32
      %46 = arith.muli %33, %c8_i32_45 : i32
      %c0_i32_46 = arith.constant 0 : i32
      %47 = arith.addi %46, %c0_i32_46 : i32
      %48 = arith.index_cast %47 : i32 to index
      %49 = memref.load %arg1[%48] : memref<16xf32, #tpu.memory_space<smem>>
      %50 = arith.index_cast %47 : i32 to index
      %51 = memref.load %arg2[%50] : memref<16xi32, #tpu.memory_space<smem>>
      %c0_47 = arith.constant 0 : index
      %c0_48 = arith.constant 0 : index
      %52 = vector.load %arg17[%c0_47, %c0_48] : memref<16x128xf32, #tpu.memory_space<vmem>>, vector<16x128xf32>
      %53 = arith.truncf %52 : vector<16x128xf32> to vector<16x128xbf16>
      %c0_49 = arith.constant 0 : index
      %c0_50 = arith.constant 0 : index
      %54 = vector.load %arg8[%c0_49, %c0_50] : memref<128x256xbf16, #tpu.memory_space<vmem>>, vector<128x256xbf16>
      %cst_51 = arith.constant dense<0.000000e+00> : vector<16x256xf32>
      %55 = tpu.matmul %53, %54, %cst_51 {dimension_numbers = #tpu.dot_dimension_numbers<[1], [0], [0], [1], [0, 0, 1, 1], [], []>} : vector<16x128xbf16>, vector<128x256xbf16>, vector<16x256xf32> -> vector<16x256xf32>
      %c0_52 = arith.constant 0 : index
      %c0_53 = arith.constant 0 : index
      %56 = vector.load %arg9[%c0_52, %c0_53] : memref<1x256xf32, #tpu.memory_space<vmem>>, vector<1x256xf32>
      %57 = vector.broadcast %56 : vector<1x256xf32> to vector<16x256xf32>
      %58 = arith.addf %55, %57 : vector<16x256xf32>
      %59 = vector.extract_strided_slice %58 {offsets = [0, 0], sizes = [16, 128], strides = [1, 1]} : vector<16x256xf32> to vector<16x128xf32>
      %60 = math.tanh %59 : vector<16x128xf32>
      %61 = vector.extract_strided_slice %58 {offsets = [0, 128], sizes = [16, 128], strides = [1, 1]} : vector<16x256xf32> to vector<16x128xf32>
      %cst_54 = arith.constant 5.000000e-01 : f32
      %62 = vector.broadcast %cst_54 : f32 to vector<16x128xf32>
      %63 = arith.mulf %62, %61 : vector<16x128xf32>
      %64 = math.tanh %63 : vector<16x128xf32>
      %cst_55 = arith.constant 5.000000e-01 : f32
      %65 = vector.broadcast %cst_55 : f32 to vector<16x128xf32>
      %66 = arith.mulf %65, %64 : vector<16x128xf32>
      %cst_56 = arith.constant 5.000000e-01 : f32
      %67 = vector.broadcast %cst_56 : f32 to vector<16x128xf32>
      %68 = arith.addf %66, %67 : vector<16x128xf32>
      %c0_i32_57 = arith.constant 0 : i32
      %69 = arith.addi %35, %c0_i32_57 : i32
      %70 = arith.index_cast %69 : i32 to index
      %c0_58 = arith.constant 0 : index
      %c0_59 = arith.constant 0 : index
      %71 = vector.load %arg15[%70, %c0_58, %c0_59] : memref<16x16x128xbf16, #tpu.memory_space<vmem>>, vector<1x16x128xbf16>
      %72 = vector.shape_cast %71 : vector<1x16x128xbf16> to vector<16x128xbf16>
      %73 = arith.extf %72 : vector<16x128xbf16> to vector<16x128xf32>
      %74 = vector.broadcast %49 : f32 to vector<16x128xf32>
      %75 = arith.mulf %60, %74 : vector<16x128xf32>
      %76 = arith.addf %52, %75 : vector<16x128xf32>
      %77 = arith.mulf %68, %73 : vector<16x128xf32>
      %78 = arith.addf %76, %77 : vector<16x128xf32>
      %c0_60 = arith.constant 0 : index
      %c0_61 = arith.constant 0 : index
      %79 = vector.load %arg17[%c0_60, %c0_61] : memref<16x128xf32, #tpu.memory_space<vmem>>, vector<16x128xf32>
      tpu.vector_store %arg17[%c0_60, %c0_61], %78 {strides = array<i32>} : memref<16x128xf32, #tpu.memory_space<vmem>>, vector<16x128xf32>,
      %c0_i32_62 = arith.constant 0 : i32
      %80 = arith.cmpi sge, %51, %c0_i32_62 : i32
      %81 = arith.extui %80 : i1 to i32
      %c0_i32_63 = arith.constant 0 : i32
      %82 = arith.cmpi ne, %81, %c0_i32_63 : i32
      scf.if %82 {
        %c0_192 = arith.constant 0 : index
        %c0_193 = arith.constant 0 : index
        %342 = vector.load %arg3[%c0_192, %c0_193] : memref<16x1xi32, #tpu.memory_space<vmem>>, vector<16x1xi32>
        %343 = vector.broadcast %51 : i32 to vector<16x1xi32>
        %344 = arith.cmpi eq, %342, %343 : vector<16x1xi32>
        %c0_194 = arith.constant 0 : index
        %c0_195 = arith.constant 0 : index
        %345 = vector.load %arg18[%c0_194, %c0_195] : memref<16x128xf32, #tpu.memory_space<vmem>>, vector<16x128xf32>
        %346 = vector.shape_cast %344 : vector<16x1xi1> to vector<16x1xi1>
        %347 = vector.broadcast %346 : vector<16x1xi1> to vector<16x128xi1>
        %348 = arith.select %347, %78, %345 : vector<16x128xi1>, vector<16x128xf32>
        %c0_196 = arith.constant 0 : index
        %c0_197 = arith.constant 0 : index
        %349 = vector.load %arg18[%c0_196, %c0_197] : memref<16x128xf32, #tpu.memory_space<vmem>>, vector<16x128xf32>
        tpu.vector_store %arg18[%c0_196, %c0_197], %348 {strides = array<i32>} : memref<16x128xf32, #tpu.memory_space<vmem>>, vector<16x128xf32>,
      } else {
      }
      %c8_i32_64 = arith.constant 8 : i32
      %83 = arith.muli %33, %c8_i32_64 : i32
      %c1_i32_65 = arith.constant 1 : i32
      %84 = arith.addi %83, %c1_i32_65 : i32
      %85 = arith.index_cast %84 : i32 to index
      %86 = memref.load %arg1[%85] : memref<16xf32, #tpu.memory_space<smem>>
      %87 = arith.index_cast %84 : i32 to index
      %88 = memref.load %arg2[%87] : memref<16xi32, #tpu.memory_space<smem>>
      %c0_66 = arith.constant 0 : index
      %c0_67 = arith.constant 0 : index
      %89 = vector.load %arg17[%c0_66, %c0_67] : memref<16x128xf32, #tpu.memory_space<vmem>>, vector<16x128xf32>
      %90 = arith.truncf %89 : vector<16x128xf32> to vector<16x128xbf16>
      %c0_68 = arith.constant 0 : index
      %c0_69 = arith.constant 0 : index
      %91 = vector.load %arg8[%c0_68, %c0_69] : memref<128x256xbf16, #tpu.memory_space<vmem>>, vector<128x256xbf16>
      %cst_70 = arith.constant dense<0.000000e+00> : vector<16x256xf32>
      %92 = tpu.matmul %90, %91, %cst_70 {dimension_numbers = #tpu.dot_dimension_numbers<[1], [0], [0], [1], [0, 0, 1, 1], [], []>} : vector<16x128xbf16>, vector<128x256xbf16>, vector<16x256xf32> -> vector<16x256xf32>
      %c0_71 = arith.constant 0 : index
      %c0_72 = arith.constant 0 : index
      %93 = vector.load %arg9[%c0_71, %c0_72] : memref<1x256xf32, #tpu.memory_space<vmem>>, vector<1x256xf32>
      %94 = vector.broadcast %93 : vector<1x256xf32> to vector<16x256xf32>
      %95 = arith.addf %92, %94 : vector<16x256xf32>
      %96 = vector.extract_strided_slice %95 {offsets = [0, 0], sizes = [16, 128], strides = [1, 1]} : vector<16x256xf32> to vector<16x128xf32>
      %97 = math.tanh %96 : vector<16x128xf32>
      %98 = vector.extract_strided_slice %95 {offsets = [0, 128], sizes = [16, 128], strides = [1, 1]} : vector<16x256xf32> to vector<16x128xf32>
      %cst_73 = arith.constant 5.000000e-01 : f32
      %99 = vector.broadcast %cst_73 : f32 to vector<16x128xf32>
      %100 = arith.mulf %99, %98 : vector<16x128xf32>
      %101 = math.tanh %100 : vector<16x128xf32>
      %cst_74 = arith.constant 5.000000e-01 : f32
      %102 = vector.broadcast %cst_74 : f32 to vector<16x128xf32>
      %103 = arith.mulf %102, %101 : vector<16x128xf32>
      %cst_75 = arith.constant 5.000000e-01 : f32
      %104 = vector.broadcast %cst_75 : f32 to vector<16x128xf32>
      %105 = arith.addf %103, %104 : vector<16x128xf32>
      %c1_i32_76 = arith.constant 1 : i32
      %106 = arith.addi %35, %c1_i32_76 : i32
      %107 = arith.index_cast %106 : i32 to index
      %c0_77 = arith.constant 0 : index
      %c0_78 = arith.constant 0 : index
      %108 = vector.load %arg15[%107, %c0_77, %c0_78] : memref<16x16x128xbf16, #tpu.memory_space<vmem>>, vector<1x16x128xbf16>
      %109 = vector.shape_cast %108 : vector<1x16x128xbf16> to vector<16x128xbf16>
      %110 = arith.extf %109 : vector<16x128xbf16> to vector<16x128xf32>
      %111 = vector.broadcast %86 : f32 to vector<16x128xf32>
      %112 = arith.mulf %97, %111 : vector<16x128xf32>
      %113 = arith.addf %89, %112 : vector<16x128xf32>
      %114 = arith.mulf %105, %110 : vector<16x128xf32>
      %115 = arith.addf %113, %114 : vector<16x128xf32>
      %c0_79 = arith.constant 0 : index
      %c0_80 = arith.constant 0 : index
      %116 = vector.load %arg17[%c0_79, %c0_80] : memref<16x128xf32, #tpu.memory_space<vmem>>, vector<16x128xf32>
      tpu.vector_store %arg17[%c0_79, %c0_80], %115 {strides = array<i32>} : memref<16x128xf32, #tpu.memory_space<vmem>>, vector<16x128xf32>,
      %c0_i32_81 = arith.constant 0 : i32
      %117 = arith.cmpi sge, %88, %c0_i32_81 : i32
      %118 = arith.extui %117 : i1 to i32
      %c0_i32_82 = arith.constant 0 : i32
      %119 = arith.cmpi ne, %118, %c0_i32_82 : i32
      scf.if %119 {
        %c0_192 = arith.constant 0 : index
        %c0_193 = arith.constant 0 : index
        %342 = vector.load %arg3[%c0_192, %c0_193] : memref<16x1xi32, #tpu.memory_space<vmem>>, vector<16x1xi32>
        %343 = vector.broadcast %88 : i32 to vector<16x1xi32>
        %344 = arith.cmpi eq, %342, %343 : vector<16x1xi32>
        %c0_194 = arith.constant 0 : index
        %c0_195 = arith.constant 0 : index
        %345 = vector.load %arg18[%c0_194, %c0_195] : memref<16x128xf32, #tpu.memory_space<vmem>>, vector<16x128xf32>
        %346 = vector.shape_cast %344 : vector<16x1xi1> to vector<16x1xi1>
        %347 = vector.broadcast %346 : vector<16x1xi1> to vector<16x128xi1>
        %348 = arith.select %347, %115, %345 : vector<16x128xi1>, vector<16x128xf32>
        %c0_196 = arith.constant 0 : index
        %c0_197 = arith.constant 0 : index
        %349 = vector.load %arg18[%c0_196, %c0_197] : memref<16x128xf32, #tpu.memory_space<vmem>>, vector<16x128xf32>
        tpu.vector_store %arg18[%c0_196, %c0_197], %348 {strides = array<i32>} : memref<16x128xf32, #tpu.memory_space<vmem>>, vector<16x128xf32>,
      } else {
      }
      %c8_i32_83 = arith.constant 8 : i32
      %120 = arith.muli %33, %c8_i32_83 : i32
      %c2_i32_84 = arith.constant 2 : i32
      %121 = arith.addi %120, %c2_i32_84 : i32
      %122 = arith.index_cast %121 : i32 to index
      %123 = memref.load %arg1[%122] : memref<16xf32, #tpu.memory_space<smem>>
      %124 = arith.index_cast %121 : i32 to index
      %125 = memref.load %arg2[%124] : memref<16xi32, #tpu.memory_space<smem>>
      %c0_85 = arith.constant 0 : index
      %c0_86 = arith.constant 0 : index
      %126 = vector.load %arg17[%c0_85, %c0_86] : memref<16x128xf32, #tpu.memory_space<vmem>>, vector<16x128xf32>
      %127 = arith.truncf %126 : vector<16x128xf32> to vector<16x128xbf16>
      %c0_87 = arith.constant 0 : index
      %c0_88 = arith.constant 0 : index
      %128 = vector.load %arg8[%c0_87, %c0_88] : memref<128x256xbf16, #tpu.memory_space<vmem>>, vector<128x256xbf16>
      %cst_89 = arith.constant dense<0.000000e+00> : vector<16x256xf32>
      %129 = tpu.matmul %127, %128, %cst_89 {dimension_numbers = #tpu.dot_dimension_numbers<[1], [0], [0], [1], [0, 0, 1, 1], [], []>} : vector<16x128xbf16>, vector<128x256xbf16>, vector<16x256xf32> -> vector<16x256xf32>
      %c0_90 = arith.constant 0 : index
      %c0_91 = arith.constant 0 : index
      %130 = vector.load %arg9[%c0_90, %c0_91] : memref<1x256xf32, #tpu.memory_space<vmem>>, vector<1x256xf32>
      %131 = vector.broadcast %130 : vector<1x256xf32> to vector<16x256xf32>
      %132 = arith.addf %129, %131 : vector<16x256xf32>
      %133 = vector.extract_strided_slice %132 {offsets = [0, 0], sizes = [16, 128], strides = [1, 1]} : vector<16x256xf32> to vector<16x128xf32>
      %134 = math.tanh %133 : vector<16x128xf32>
      %135 = vector.extract_strided_slice %132 {offsets = [0, 128], sizes = [16, 128], strides = [1, 1]} : vector<16x256xf32> to vector<16x128xf32>
      %cst_92 = arith.constant 5.000000e-01 : f32
      %136 = vector.broadcast %cst_92 : f32 to vector<16x128xf32>
      %137 = arith.mulf %136, %135 : vector<16x128xf32>
      %138 = math.tanh %137 : vector<16x128xf32>
      %cst_93 = arith.constant 5.000000e-01 : f32
      %139 = vector.broadcast %cst_93 : f32 to vector<16x128xf32>
      %140 = arith.mulf %139, %138 : vector<16x128xf32>
      %cst_94 = arith.constant 5.000000e-01 : f32
      %141 = vector.broadcast %cst_94 : f32 to vector<16x128xf32>
      %142 = arith.addf %140, %141 : vector<16x128xf32>
      %c2_i32_95 = arith.constant 2 : i32
      %143 = arith.addi %35, %c2_i32_95 : i32
      %144 = arith.index_cast %143 : i32 to index
      %c0_96 = arith.constant 0 : index
      %c0_97 = arith.constant 0 : index
      %145 = vector.load %arg15[%144, %c0_96, %c0_97] : memref<16x16x128xbf16, #tpu.memory_space<vmem>>, vector<1x16x128xbf16>
      %146 = vector.shape_cast %145 : vector<1x16x128xbf16> to vector<16x128xbf16>
      %147 = arith.extf %146 : vector<16x128xbf16> to vector<16x128xf32>
      %148 = vector.broadcast %123 : f32 to vector<16x128xf32>
      %149 = arith.mulf %134, %148 : vector<16x128xf32>
      %150 = arith.addf %126, %149 : vector<16x128xf32>
      %151 = arith.mulf %142, %147 : vector<16x128xf32>
      %152 = arith.addf %150, %151 : vector<16x128xf32>
      %c0_98 = arith.constant 0 : index
      %c0_99 = arith.constant 0 : index
      %153 = vector.load %arg17[%c0_98, %c0_99] : memref<16x128xf32, #tpu.memory_space<vmem>>, vector<16x128xf32>
      tpu.vector_store %arg17[%c0_98, %c0_99], %152 {strides = array<i32>} : memref<16x128xf32, #tpu.memory_space<vmem>>, vector<16x128xf32>,
      %c0_i32_100 = arith.constant 0 : i32
      %154 = arith.cmpi sge, %125, %c0_i32_100 : i32
      %155 = arith.extui %154 : i1 to i32
      %c0_i32_101 = arith.constant 0 : i32
      %156 = arith.cmpi ne, %155, %c0_i32_101 : i32
      scf.if %156 {
        %c0_192 = arith.constant 0 : index
        %c0_193 = arith.constant 0 : index
        %342 = vector.load %arg3[%c0_192, %c0_193] : memref<16x1xi32, #tpu.memory_space<vmem>>, vector<16x1xi32>
        %343 = vector.broadcast %125 : i32 to vector<16x1xi32>
        %344 = arith.cmpi eq, %342, %343 : vector<16x1xi32>
        %c0_194 = arith.constant 0 : index
        %c0_195 = arith.constant 0 : index
        %345 = vector.load %arg18[%c0_194, %c0_195] : memref<16x128xf32, #tpu.memory_space<vmem>>, vector<16x128xf32>
        %346 = vector.shape_cast %344 : vector<16x1xi1> to vector<16x1xi1>
        %347 = vector.broadcast %346 : vector<16x1xi1> to vector<16x128xi1>
        %348 = arith.select %347, %152, %345 : vector<16x128xi1>, vector<16x128xf32>
        %c0_196 = arith.constant 0 : index
        %c0_197 = arith.constant 0 : index
        %349 = vector.load %arg18[%c0_196, %c0_197] : memref<16x128xf32, #tpu.memory_space<vmem>>, vector<16x128xf32>
        tpu.vector_store %arg18[%c0_196, %c0_197], %348 {strides = array<i32>} : memref<16x128xf32, #tpu.memory_space<vmem>>, vector<16x128xf32>,
      } else {
      }
      %c8_i32_102 = arith.constant 8 : i32
      %157 = arith.muli %33, %c8_i32_102 : i32
      %c3_i32 = arith.constant 3 : i32
      %158 = arith.addi %157, %c3_i32 : i32
      %159 = arith.index_cast %158 : i32 to index
      %160 = memref.load %arg1[%159] : memref<16xf32, #tpu.memory_space<smem>>
      %161 = arith.index_cast %158 : i32 to index
      %162 = memref.load %arg2[%161] : memref<16xi32, #tpu.memory_space<smem>>
      %c0_103 = arith.constant 0 : index
      %c0_104 = arith.constant 0 : index
      %163 = vector.load %arg17[%c0_103, %c0_104] : memref<16x128xf32, #tpu.memory_space<vmem>>, vector<16x128xf32>
      %164 = arith.truncf %163 : vector<16x128xf32> to vector<16x128xbf16>
      %c0_105 = arith.constant 0 : index
      %c0_106 = arith.constant 0 : index
      %165 = vector.load %arg8[%c0_105, %c0_106] : memref<128x256xbf16, #tpu.memory_space<vmem>>, vector<128x256xbf16>
      %cst_107 = arith.constant dense<0.000000e+00> : vector<16x256xf32>
      %166 = tpu.matmul %164, %165, %cst_107 {dimension_numbers = #tpu.dot_dimension_numbers<[1], [0], [0], [1], [0, 0, 1, 1], [], []>} : vector<16x128xbf16>, vector<128x256xbf16>, vector<16x256xf32> -> vector<16x256xf32>
      %c0_108 = arith.constant 0 : index
      %c0_109 = arith.constant 0 : index
      %167 = vector.load %arg9[%c0_108, %c0_109] : memref<1x256xf32, #tpu.memory_space<vmem>>, vector<1x256xf32>
      %168 = vector.broadcast %167 : vector<1x256xf32> to vector<16x256xf32>
      %169 = arith.addf %166, %168 : vector<16x256xf32>
      %170 = vector.extract_strided_slice %169 {offsets = [0, 0], sizes = [16, 128], strides = [1, 1]} : vector<16x256xf32> to vector<16x128xf32>
      %171 = math.tanh %170 : vector<16x128xf32>
      %172 = vector.extract_strided_slice %169 {offsets = [0, 128], sizes = [16, 128], strides = [1, 1]} : vector<16x256xf32> to vector<16x128xf32>
      %cst_110 = arith.constant 5.000000e-01 : f32
      %173 = vector.broadcast %cst_110 : f32 to vector<16x128xf32>
      %174 = arith.mulf %173, %172 : vector<16x128xf32>
      %175 = math.tanh %174 : vector<16x128xf32>
      %cst_111 = arith.constant 5.000000e-01 : f32
      %176 = vector.broadcast %cst_111 : f32 to vector<16x128xf32>
      %177 = arith.mulf %176, %175 : vector<16x128xf32>
      %cst_112 = arith.constant 5.000000e-01 : f32
      %178 = vector.broadcast %cst_112 : f32 to vector<16x128xf32>
      %179 = arith.addf %177, %178 : vector<16x128xf32>
      %c3_i32_113 = arith.constant 3 : i32
      %180 = arith.addi %35, %c3_i32_113 : i32
      %181 = arith.index_cast %180 : i32 to index
      %c0_114 = arith.constant 0 : index
      %c0_115 = arith.constant 0 : index
      %182 = vector.load %arg15[%181, %c0_114, %c0_115] : memref<16x16x128xbf16, #tpu.memory_space<vmem>>, vector<1x16x128xbf16>
      %183 = vector.shape_cast %182 : vector<1x16x128xbf16> to vector<16x128xbf16>
      %184 = arith.extf %183 : vector<16x128xbf16> to vector<16x128xf32>
      %185 = vector.broadcast %160 : f32 to vector<16x128xf32>
      %186 = arith.mulf %171, %185 : vector<16x128xf32>
      %187 = arith.addf %163, %186 : vector<16x128xf32>
      %188 = arith.mulf %179, %184 : vector<16x128xf32>
      %189 = arith.addf %187, %188 : vector<16x128xf32>
      %c0_116 = arith.constant 0 : index
      %c0_117 = arith.constant 0 : index
      %190 = vector.load %arg17[%c0_116, %c0_117] : memref<16x128xf32, #tpu.memory_space<vmem>>, vector<16x128xf32>
      tpu.vector_store %arg17[%c0_116, %c0_117], %189 {strides = array<i32>} : memref<16x128xf32, #tpu.memory_space<vmem>>, vector<16x128xf32>,
      %c0_i32_118 = arith.constant 0 : i32
      %191 = arith.cmpi sge, %162, %c0_i32_118 : i32
      %192 = arith.extui %191 : i1 to i32
      %c0_i32_119 = arith.constant 0 : i32
      %193 = arith.cmpi ne, %192, %c0_i32_119 : i32
      scf.if %193 {
        %c0_192 = arith.constant 0 : index
        %c0_193 = arith.constant 0 : index
        %342 = vector.load %arg3[%c0_192, %c0_193] : memref<16x1xi32, #tpu.memory_space<vmem>>, vector<16x1xi32>
        %343 = vector.broadcast %162 : i32 to vector<16x1xi32>
        %344 = arith.cmpi eq, %342, %343 : vector<16x1xi32>
        %c0_194 = arith.constant 0 : index
        %c0_195 = arith.constant 0 : index
        %345 = vector.load %arg18[%c0_194, %c0_195] : memref<16x128xf32, #tpu.memory_space<vmem>>, vector<16x128xf32>
        %346 = vector.shape_cast %344 : vector<16x1xi1> to vector<16x1xi1>
        %347 = vector.broadcast %346 : vector<16x1xi1> to vector<16x128xi1>
        %348 = arith.select %347, %189, %345 : vector<16x128xi1>, vector<16x128xf32>
        %c0_196 = arith.constant 0 : index
        %c0_197 = arith.constant 0 : index
        %349 = vector.load %arg18[%c0_196, %c0_197] : memref<16x128xf32, #tpu.memory_space<vmem>>, vector<16x128xf32>
        tpu.vector_store %arg18[%c0_196, %c0_197], %348 {strides = array<i32>} : memref<16x128xf32, #tpu.memory_space<vmem>>, vector<16x128xf32>,
      } else {
      }
      %c8_i32_120 = arith.constant 8 : i32
      %194 = arith.muli %33, %c8_i32_120 : i32
      %c4_i32 = arith.constant 4 : i32
      %195 = arith.addi %194, %c4_i32 : i32
      %196 = arith.index_cast %195 : i32 to index
      %197 = memref.load %arg1[%196] : memref<16xf32, #tpu.memory_space<smem>>
      %198 = arith.index_cast %195 : i32 to index
      %199 = memref.load %arg2[%198] : memref<16xi32, #tpu.memory_space<smem>>
      %c0_121 = arith.constant 0 : index
      %c0_122 = arith.constant 0 : index
      %200 = vector.load %arg17[%c0_121, %c0_122] : memref<16x128xf32, #tpu.memory_space<vmem>>, vector<16x128xf32>
      %201 = arith.truncf %200 : vector<16x128xf32> to vector<16x128xbf16>
      %c0_123 = arith.constant 0 : index
      %c0_124 = arith.constant 0 : index
      %202 = vector.load %arg8[%c0_123, %c0_124] : memref<128x256xbf16, #tpu.memory_space<vmem>>, vector<128x256xbf16>
      %cst_125 = arith.constant dense<0.000000e+00> : vector<16x256xf32>
      %203 = tpu.matmul %201, %202, %cst_125 {dimension_numbers = #tpu.dot_dimension_numbers<[1], [0], [0], [1], [0, 0, 1, 1], [], []>} : vector<16x128xbf16>, vector<128x256xbf16>, vector<16x256xf32> -> vector<16x256xf32>
      %c0_126 = arith.constant 0 : index
      %c0_127 = arith.constant 0 : index
      %204 = vector.load %arg9[%c0_126, %c0_127] : memref<1x256xf32, #tpu.memory_space<vmem>>, vector<1x256xf32>
      %205 = vector.broadcast %204 : vector<1x256xf32> to vector<16x256xf32>
      %206 = arith.addf %203, %205 : vector<16x256xf32>
      %207 = vector.extract_strided_slice %206 {offsets = [0, 0], sizes = [16, 128], strides = [1, 1]} : vector<16x256xf32> to vector<16x128xf32>
      %208 = math.tanh %207 : vector<16x128xf32>
      %209 = vector.extract_strided_slice %206 {offsets = [0, 128], sizes = [16, 128], strides = [1, 1]} : vector<16x256xf32> to vector<16x128xf32>
      %cst_128 = arith.constant 5.000000e-01 : f32
      %210 = vector.broadcast %cst_128 : f32 to vector<16x128xf32>
      %211 = arith.mulf %210, %209 : vector<16x128xf32>
      %212 = math.tanh %211 : vector<16x128xf32>
      %cst_129 = arith.constant 5.000000e-01 : f32
      %213 = vector.broadcast %cst_129 : f32 to vector<16x128xf32>
      %214 = arith.mulf %213, %212 : vector<16x128xf32>
      %cst_130 = arith.constant 5.000000e-01 : f32
      %215 = vector.broadcast %cst_130 : f32 to vector<16x128xf32>
      %216 = arith.addf %214, %215 : vector<16x128xf32>
      %c4_i32_131 = arith.constant 4 : i32
      %217 = arith.addi %35, %c4_i32_131 : i32
      %218 = arith.index_cast %217 : i32 to index
      %c0_132 = arith.constant 0 : index
      %c0_133 = arith.constant 0 : index
      %219 = vector.load %arg15[%218, %c0_132, %c0_133] : memref<16x16x128xbf16, #tpu.memory_space<vmem>>, vector<1x16x128xbf16>
      %220 = vector.shape_cast %219 : vector<1x16x128xbf16> to vector<16x128xbf16>
      %221 = arith.extf %220 : vector<16x128xbf16> to vector<16x128xf32>
      %222 = vector.broadcast %197 : f32 to vector<16x128xf32>
      %223 = arith.mulf %208, %222 : vector<16x128xf32>
      %224 = arith.addf %200, %223 : vector<16x128xf32>
      %225 = arith.mulf %216, %221 : vector<16x128xf32>
      %226 = arith.addf %224, %225 : vector<16x128xf32>
      %c0_134 = arith.constant 0 : index
      %c0_135 = arith.constant 0 : index
      %227 = vector.load %arg17[%c0_134, %c0_135] : memref<16x128xf32, #tpu.memory_space<vmem>>, vector<16x128xf32>
      tpu.vector_store %arg17[%c0_134, %c0_135], %226 {strides = array<i32>} : memref<16x128xf32, #tpu.memory_space<vmem>>, vector<16x128xf32>,
      %c0_i32_136 = arith.constant 0 : i32
      %228 = arith.cmpi sge, %199, %c0_i32_136 : i32
      %229 = arith.extui %228 : i1 to i32
      %c0_i32_137 = arith.constant 0 : i32
      %230 = arith.cmpi ne, %229, %c0_i32_137 : i32
      scf.if %230 {
        %c0_192 = arith.constant 0 : index
        %c0_193 = arith.constant 0 : index
        %342 = vector.load %arg3[%c0_192, %c0_193] : memref<16x1xi32, #tpu.memory_space<vmem>>, vector<16x1xi32>
        %343 = vector.broadcast %199 : i32 to vector<16x1xi32>
        %344 = arith.cmpi eq, %342, %343 : vector<16x1xi32>
        %c0_194 = arith.constant 0 : index
        %c0_195 = arith.constant 0 : index
        %345 = vector.load %arg18[%c0_194, %c0_195] : memref<16x128xf32, #tpu.memory_space<vmem>>, vector<16x128xf32>
        %346 = vector.shape_cast %344 : vector<16x1xi1> to vector<16x1xi1>
        %347 = vector.broadcast %346 : vector<16x1xi1> to vector<16x128xi1>
        %348 = arith.select %347, %226, %345 : vector<16x128xi1>, vector<16x128xf32>
        %c0_196 = arith.constant 0 : index
        %c0_197 = arith.constant 0 : index
        %349 = vector.load %arg18[%c0_196, %c0_197] : memref<16x128xf32, #tpu.memory_space<vmem>>, vector<16x128xf32>
        tpu.vector_store %arg18[%c0_196, %c0_197], %348 {strides = array<i32>} : memref<16x128xf32, #tpu.memory_space<vmem>>, vector<16x128xf32>,
      } else {
      }
      %c8_i32_138 = arith.constant 8 : i32
      %231 = arith.muli %33, %c8_i32_138 : i32
      %c5_i32 = arith.constant 5 : i32
      %232 = arith.addi %231, %c5_i32 : i32
      %233 = arith.index_cast %232 : i32 to index
      %234 = memref.load %arg1[%233] : memref<16xf32, #tpu.memory_space<smem>>
      %235 = arith.index_cast %232 : i32 to index
      %236 = memref.load %arg2[%235] : memref<16xi32, #tpu.memory_space<smem>>
      %c0_139 = arith.constant 0 : index
      %c0_140 = arith.constant 0 : index
      %237 = vector.load %arg17[%c0_139, %c0_140] : memref<16x128xf32, #tpu.memory_space<vmem>>, vector<16x128xf32>
      %238 = arith.truncf %237 : vector<16x128xf32> to vector<16x128xbf16>
      %c0_141 = arith.constant 0 : index
      %c0_142 = arith.constant 0 : index
      %239 = vector.load %arg8[%c0_141, %c0_142] : memref<128x256xbf16, #tpu.memory_space<vmem>>, vector<128x256xbf16>
      %cst_143 = arith.constant dense<0.000000e+00> : vector<16x256xf32>
      %240 = tpu.matmul %238, %239, %cst_143 {dimension_numbers = #tpu.dot_dimension_numbers<[1], [0], [0], [1], [0, 0, 1, 1], [], []>} : vector<16x128xbf16>, vector<128x256xbf16>, vector<16x256xf32> -> vector<16x256xf32>
      %c0_144 = arith.constant 0 : index
      %c0_145 = arith.constant 0 : index
      %241 = vector.load %arg9[%c0_144, %c0_145] : memref<1x256xf32, #tpu.memory_space<vmem>>, vector<1x256xf32>
      %242 = vector.broadcast %241 : vector<1x256xf32> to vector<16x256xf32>
      %243 = arith.addf %240, %242 : vector<16x256xf32>
      %244 = vector.extract_strided_slice %243 {offsets = [0, 0], sizes = [16, 128], strides = [1, 1]} : vector<16x256xf32> to vector<16x128xf32>
      %245 = math.tanh %244 : vector<16x128xf32>
      %246 = vector.extract_strided_slice %243 {offsets = [0, 128], sizes = [16, 128], strides = [1, 1]} : vector<16x256xf32> to vector<16x128xf32>
      %cst_146 = arith.constant 5.000000e-01 : f32
      %247 = vector.broadcast %cst_146 : f32 to vector<16x128xf32>
      %248 = arith.mulf %247, %246 : vector<16x128xf32>
      %249 = math.tanh %248 : vector<16x128xf32>
      %cst_147 = arith.constant 5.000000e-01 : f32
      %250 = vector.broadcast %cst_147 : f32 to vector<16x128xf32>
      %251 = arith.mulf %250, %249 : vector<16x128xf32>
      %cst_148 = arith.constant 5.000000e-01 : f32
      %252 = vector.broadcast %cst_148 : f32 to vector<16x128xf32>
      %253 = arith.addf %251, %252 : vector<16x128xf32>
      %c5_i32_149 = arith.constant 5 : i32
      %254 = arith.addi %35, %c5_i32_149 : i32
      %255 = arith.index_cast %254 : i32 to index
      %c0_150 = arith.constant 0 : index
      %c0_151 = arith.constant 0 : index
      %256 = vector.load %arg15[%255, %c0_150, %c0_151] : memref<16x16x128xbf16, #tpu.memory_space<vmem>>, vector<1x16x128xbf16>
      %257 = vector.shape_cast %256 : vector<1x16x128xbf16> to vector<16x128xbf16>
      %258 = arith.extf %257 : vector<16x128xbf16> to vector<16x128xf32>
      %259 = vector.broadcast %234 : f32 to vector<16x128xf32>
      %260 = arith.mulf %245, %259 : vector<16x128xf32>
      %261 = arith.addf %237, %260 : vector<16x128xf32>
      %262 = arith.mulf %253, %258 : vector<16x128xf32>
      %263 = arith.addf %261, %262 : vector<16x128xf32>
      %c0_152 = arith.constant 0 : index
      %c0_153 = arith.constant 0 : index
      %264 = vector.load %arg17[%c0_152, %c0_153] : memref<16x128xf32, #tpu.memory_space<vmem>>, vector<16x128xf32>
      tpu.vector_store %arg17[%c0_152, %c0_153], %263 {strides = array<i32>} : memref<16x128xf32, #tpu.memory_space<vmem>>, vector<16x128xf32>,
      %c0_i32_154 = arith.constant 0 : i32
      %265 = arith.cmpi sge, %236, %c0_i32_154 : i32
      %266 = arith.extui %265 : i1 to i32
      %c0_i32_155 = arith.constant 0 : i32
      %267 = arith.cmpi ne, %266, %c0_i32_155 : i32
      scf.if %267 {
        %c0_192 = arith.constant 0 : index
        %c0_193 = arith.constant 0 : index
        %342 = vector.load %arg3[%c0_192, %c0_193] : memref<16x1xi32, #tpu.memory_space<vmem>>, vector<16x1xi32>
        %343 = vector.broadcast %236 : i32 to vector<16x1xi32>
        %344 = arith.cmpi eq, %342, %343 : vector<16x1xi32>
        %c0_194 = arith.constant 0 : index
        %c0_195 = arith.constant 0 : index
        %345 = vector.load %arg18[%c0_194, %c0_195] : memref<16x128xf32, #tpu.memory_space<vmem>>, vector<16x128xf32>
        %346 = vector.shape_cast %344 : vector<16x1xi1> to vector<16x1xi1>
        %347 = vector.broadcast %346 : vector<16x1xi1> to vector<16x128xi1>
        %348 = arith.select %347, %263, %345 : vector<16x128xi1>, vector<16x128xf32>
        %c0_196 = arith.constant 0 : index
        %c0_197 = arith.constant 0 : index
        %349 = vector.load %arg18[%c0_196, %c0_197] : memref<16x128xf32, #tpu.memory_space<vmem>>, vector<16x128xf32>
        tpu.vector_store %arg18[%c0_196, %c0_197], %348 {strides = array<i32>} : memref<16x128xf32, #tpu.memory_space<vmem>>, vector<16x128xf32>,
      } else {
      }
      %c8_i32_156 = arith.constant 8 : i32
      %268 = arith.muli %33, %c8_i32_156 : i32
      %c6_i32 = arith.constant 6 : i32
      %269 = arith.addi %268, %c6_i32 : i32
      %270 = arith.index_cast %269 : i32 to index
      %271 = memref.load %arg1[%270] : memref<16xf32, #tpu.memory_space<smem>>
      %272 = arith.index_cast %269 : i32 to index
      %273 = memref.load %arg2[%272] : memref<16xi32, #tpu.memory_space<smem>>
      %c0_157 = arith.constant 0 : index
      %c0_158 = arith.constant 0 : index
      %274 = vector.load %arg17[%c0_157, %c0_158] : memref<16x128xf32, #tpu.memory_space<vmem>>, vector<16x128xf32>
      %275 = arith.truncf %274 : vector<16x128xf32> to vector<16x128xbf16>
      %c0_159 = arith.constant 0 : index
      %c0_160 = arith.constant 0 : index
      %276 = vector.load %arg8[%c0_159, %c0_160] : memref<128x256xbf16, #tpu.memory_space<vmem>>, vector<128x256xbf16>
      %cst_161 = arith.constant dense<0.000000e+00> : vector<16x256xf32>
      %277 = tpu.matmul %275, %276, %cst_161 {dimension_numbers = #tpu.dot_dimension_numbers<[1], [0], [0], [1], [0, 0, 1, 1], [], []>} : vector<16x128xbf16>, vector<128x256xbf16>, vector<16x256xf32> -> vector<16x256xf32>
      %c0_162 = arith.constant 0 : index
      %c0_163 = arith.constant 0 : index
      %278 = vector.load %arg9[%c0_162, %c0_163] : memref<1x256xf32, #tpu.memory_space<vmem>>, vector<1x256xf32>
      %279 = vector.broadcast %278 : vector<1x256xf32> to vector<16x256xf32>
      %280 = arith.addf %277, %279 : vector<16x256xf32>
      %281 = vector.extract_strided_slice %280 {offsets = [0, 0], sizes = [16, 128], strides = [1, 1]} : vector<16x256xf32> to vector<16x128xf32>
      %282 = math.tanh %281 : vector<16x128xf32>
      %283 = vector.extract_strided_slice %280 {offsets = [0, 128], sizes = [16, 128], strides = [1, 1]} : vector<16x256xf32> to vector<16x128xf32>
      %cst_164 = arith.constant 5.000000e-01 : f32
      %284 = vector.broadcast %cst_164 : f32 to vector<16x128xf32>
      %285 = arith.mulf %284, %283 : vector<16x128xf32>
      %286 = math.tanh %285 : vector<16x128xf32>
      %cst_165 = arith.constant 5.000000e-01 : f32
      %287 = vector.broadcast %cst_165 : f32 to vector<16x128xf32>
      %288 = arith.mulf %287, %286 : vector<16x128xf32>
      %cst_166 = arith.constant 5.000000e-01 : f32
      %289 = vector.broadcast %cst_166 : f32 to vector<16x128xf32>
      %290 = arith.addf %288, %289 : vector<16x128xf32>
      %c6_i32_167 = arith.constant 6 : i32
      %291 = arith.addi %35, %c6_i32_167 : i32
      %292 = arith.index_cast %291 : i32 to index
      %c0_168 = arith.constant 0 : index
      %c0_169 = arith.constant 0 : index
      %293 = vector.load %arg15[%292, %c0_168, %c0_169] : memref<16x16x128xbf16, #tpu.memory_space<vmem>>, vector<1x16x128xbf16>
      %294 = vector.shape_cast %293 : vector<1x16x128xbf16> to vector<16x128xbf16>
      %295 = arith.extf %294 : vector<16x128xbf16> to vector<16x128xf32>
      %296 = vector.broadcast %271 : f32 to vector<16x128xf32>
      %297 = arith.mulf %282, %296 : vector<16x128xf32>
      %298 = arith.addf %274, %297 : vector<16x128xf32>
      %299 = arith.mulf %290, %295 : vector<16x128xf32>
      %300 = arith.addf %298, %299 : vector<16x128xf32>
      %c0_170 = arith.constant 0 : index
      %c0_171 = arith.constant 0 : index
      %301 = vector.load %arg17[%c0_170, %c0_171] : memref<16x128xf32, #tpu.memory_space<vmem>>, vector<16x128xf32>
      tpu.vector_store %arg17[%c0_170, %c0_171], %300 {strides = array<i32>} : memref<16x128xf32, #tpu.memory_space<vmem>>, vector<16x128xf32>,
      %c0_i32_172 = arith.constant 0 : i32
      %302 = arith.cmpi sge, %273, %c0_i32_172 : i32
      %303 = arith.extui %302 : i1 to i32
      %c0_i32_173 = arith.constant 0 : i32
      %304 = arith.cmpi ne, %303, %c0_i32_173 : i32
      scf.if %304 {
        %c0_192 = arith.constant 0 : index
        %c0_193 = arith.constant 0 : index
        %342 = vector.load %arg3[%c0_192, %c0_193] : memref<16x1xi32, #tpu.memory_space<vmem>>, vector<16x1xi32>
        %343 = vector.broadcast %273 : i32 to vector<16x1xi32>
        %344 = arith.cmpi eq, %342, %343 : vector<16x1xi32>
        %c0_194 = arith.constant 0 : index
        %c0_195 = arith.constant 0 : index
        %345 = vector.load %arg18[%c0_194, %c0_195] : memref<16x128xf32, #tpu.memory_space<vmem>>, vector<16x128xf32>
        %346 = vector.shape_cast %344 : vector<16x1xi1> to vector<16x1xi1>
        %347 = vector.broadcast %346 : vector<16x1xi1> to vector<16x128xi1>
        %348 = arith.select %347, %300, %345 : vector<16x128xi1>, vector<16x128xf32>
        %c0_196 = arith.constant 0 : index
        %c0_197 = arith.constant 0 : index
        %349 = vector.load %arg18[%c0_196, %c0_197] : memref<16x128xf32, #tpu.memory_space<vmem>>, vector<16x128xf32>
        tpu.vector_store %arg18[%c0_196, %c0_197], %348 {strides = array<i32>} : memref<16x128xf32, #tpu.memory_space<vmem>>, vector<16x128xf32>,
      } else {
      }
      %c8_i32_174 = arith.constant 8 : i32
      %305 = arith.muli %33, %c8_i32_174 : i32
      %c7_i32 = arith.constant 7 : i32
      %306 = arith.addi %305, %c7_i32 : i32
      %307 = arith.index_cast %306 : i32 to index
      %308 = memref.load %arg1[%307] : memref<16xf32, #tpu.memory_space<smem>>
      %309 = arith.index_cast %306 : i32 to index
      %310 = memref.load %arg2[%309] : memref<16xi32, #tpu.memory_space<smem>>
      %c0_175 = arith.constant 0 : index
      %c0_176 = arith.constant 0 : index
      %311 = vector.load %arg17[%c0_175, %c0_176] : memref<16x128xf32, #tpu.memory_space<vmem>>, vector<16x128xf32>
      %312 = arith.truncf %311 : vector<16x128xf32> to vector<16x128xbf16>
      %c0_177 = arith.constant 0 : index
      %c0_178 = arith.constant 0 : index
      %313 = vector.load %arg8[%c0_177, %c0_178] : memref<128x256xbf16, #tpu.memory_space<vmem>>, vector<128x256xbf16>
      %cst_179 = arith.constant dense<0.000000e+00> : vector<16x256xf32>
      %314 = tpu.matmul %312, %313, %cst_179 {dimension_numbers = #tpu.dot_dimension_numbers<[1], [0], [0], [1], [0, 0, 1, 1], [], []>} : vector<16x128xbf16>, vector<128x256xbf16>, vector<16x256xf32> -> vector<16x256xf32>
      %c0_180 = arith.constant 0 : index
      %c0_181 = arith.constant 0 : index
      %315 = vector.load %arg9[%c0_180, %c0_181] : memref<1x256xf32, #tpu.memory_space<vmem>>, vector<1x256xf32>
      %316 = vector.broadcast %315 : vector<1x256xf32> to vector<16x256xf32>
      %317 = arith.addf %314, %316 : vector<16x256xf32>
      %318 = vector.extract_strided_slice %317 {offsets = [0, 0], sizes = [16, 128], strides = [1, 1]} : vector<16x256xf32> to vector<16x128xf32>
      %319 = math.tanh %318 : vector<16x128xf32>
      %320 = vector.extract_strided_slice %317 {offsets = [0, 128], sizes = [16, 128], strides = [1, 1]} : vector<16x256xf32> to vector<16x128xf32>
      %cst_182 = arith.constant 5.000000e-01 : f32
      %321 = vector.broadcast %cst_182 : f32 to vector<16x128xf32>
      %322 = arith.mulf %321, %320 : vector<16x128xf32>
      %323 = math.tanh %322 : vector<16x128xf32>
      %cst_183 = arith.constant 5.000000e-01 : f32
      %324 = vector.broadcast %cst_183 : f32 to vector<16x128xf32>
      %325 = arith.mulf %324, %323 : vector<16x128xf32>
      %cst_184 = arith.constant 5.000000e-01 : f32
      %326 = vector.broadcast %cst_184 : f32 to vector<16x128xf32>
      %327 = arith.addf %325, %326 : vector<16x128xf32>
      %c7_i32_185 = arith.constant 7 : i32
      %328 = arith.addi %35, %c7_i32_185 : i32
      %329 = arith.index_cast %328 : i32 to index
      %c0_186 = arith.constant 0 : index
      %c0_187 = arith.constant 0 : index
      %330 = vector.load %arg15[%329, %c0_186, %c0_187] : memref<16x16x128xbf16, #tpu.memory_space<vmem>>, vector<1x16x128xbf16>
      %331 = vector.shape_cast %330 : vector<1x16x128xbf16> to vector<16x128xbf16>
      %332 = arith.extf %331 : vector<16x128xbf16> to vector<16x128xf32>
      %333 = vector.broadcast %308 : f32 to vector<16x128xf32>
      %334 = arith.mulf %319, %333 : vector<16x128xf32>
      %335 = arith.addf %311, %334 : vector<16x128xf32>
      %336 = arith.mulf %327, %332 : vector<16x128xf32>
      %337 = arith.addf %335, %336 : vector<16x128xf32>
      %c0_188 = arith.constant 0 : index
      %c0_189 = arith.constant 0 : index
      %338 = vector.load %arg17[%c0_188, %c0_189] : memref<16x128xf32, #tpu.memory_space<vmem>>, vector<16x128xf32>
      tpu.vector_store %arg17[%c0_188, %c0_189], %337 {strides = array<i32>} : memref<16x128xf32, #tpu.memory_space<vmem>>, vector<16x128xf32>,
      %c0_i32_190 = arith.constant 0 : i32
      %339 = arith.cmpi sge, %310, %c0_i32_190 : i32
      %340 = arith.extui %339 : i1 to i32
      %c0_i32_191 = arith.constant 0 : i32
      %341 = arith.cmpi ne, %340, %c0_i32_191 : i32
      scf.if %341 {
        %c0_192 = arith.constant 0 : index
        %c0_193 = arith.constant 0 : index
        %342 = vector.load %arg3[%c0_192, %c0_193] : memref<16x1xi32, #tpu.memory_space<vmem>>, vector<16x1xi32>
        %343 = vector.broadcast %310 : i32 to vector<16x1xi32>
        %344 = arith.cmpi eq, %342, %343 : vector<16x1xi32>
        %c0_194 = arith.constant 0 : index
        %c0_195 = arith.constant 0 : index
        %345 = vector.load %arg18[%c0_194, %c0_195] : memref<16x128xf32, #tpu.memory_space<vmem>>, vector<16x128xf32>
        %346 = vector.shape_cast %344 : vector<16x1xi1> to vector<16x1xi1>
        %347 = vector.broadcast %346 : vector<16x1xi1> to vector<16x128xi1>
        %348 = arith.select %347, %337, %345 : vector<16x128xi1>, vector<16x128xf32>
        %c0_196 = arith.constant 0 : index
        %c0_197 = arith.constant 0 : index
        %349 = vector.load %arg18[%c0_196, %c0_197] : memref<16x128xf32, #tpu.memory_space<vmem>>, vector<16x128xf32>
        tpu.vector_store %arg18[%c0_196, %c0_197], %348 {strides = array<i32>} : memref<16x128xf32, #tpu.memory_space<vmem>>, vector<16x128xf32>,
      } else {
      }
    }
    %c2_i32_17 = arith.constant 2 : i32
    %c0_18 = arith.constant 0 : index
    %c0_19 = arith.constant 0 : index
    %15 = vector.load %arg18[%c0_18, %c0_19] : memref<16x128xf32, #tpu.memory_space<vmem>>, vector<16x128xf32>
    %16 = math.tanh %15 : vector<16x128xf32>
    %17 = arith.truncf %16 : vector<16x128xf32> to vector<16x128xbf16>
    %c0_20 = arith.constant 0 : index
    %c0_21 = arith.constant 0 : index
    %18 = vector.load %arg10[%c0_20, %c0_21] : memref<128x128xbf16, #tpu.memory_space<vmem>>, vector<128x128xbf16>
    %cst_22 = arith.constant dense<0.000000e+00> : vector<16x128xf32>
    %19 = tpu.matmul %17, %18, %cst_22 {dimension_numbers = #tpu.dot_dimension_numbers<[1], [0], [0], [1], [0, 0, 1, 1], [], []>} : vector<16x128xbf16>, vector<128x128xbf16>, vector<16x128xf32> -> vector<16x128xf32>
    %c0_23 = arith.constant 0 : index
    %c0_24 = arith.constant 0 : index
    %20 = vector.load %arg11[%c0_23, %c0_24] : memref<1x128xf32, #tpu.memory_space<vmem>>, vector<1x128xf32>
    %21 = vector.broadcast %20 : vector<1x128xf32> to vector<16x128xf32>
    %22 = arith.addf %19, %21 : vector<16x128xf32>
    %cst_25 = arith.constant 0.000000e+00 : f32
    %23 = vector.broadcast %cst_25 : f32 to vector<16x128xf32>
    %24 = arith.maximumf %22, %23 : vector<16x128xf32>
    %25 = arith.truncf %24 : vector<16x128xf32> to vector<16x128xbf16>
    %c0_26 = arith.constant 0 : index
    %c0_27 = arith.constant 0 : index
    %26 = vector.load %arg12[%c0_26, %c0_27] : memref<128x128xbf16, #tpu.memory_space<vmem>>, vector<128x128xbf16>
    %cst_28 = arith.constant dense<0.000000e+00> : vector<16x128xf32>
    %27 = tpu.matmul %25, %26, %cst_28 {dimension_numbers = #tpu.dot_dimension_numbers<[1], [0], [0], [1], [0, 0, 1, 1], [], []>} : vector<16x128xbf16>, vector<128x128xbf16>, vector<16x128xf32> -> vector<16x128xf32>
    %c0_29 = arith.constant 0 : index
    %c0_30 = arith.constant 0 : index
    %28 = vector.load %arg13[%c0_29, %c0_30] : memref<1x128xf32, #tpu.memory_space<vmem>>, vector<1x128xf32>
    %29 = vector.broadcast %28 : vector<1x128xf32> to vector<16x128xf32>
    %30 = arith.addf %27, %29 : vector<16x128xf32>
    %c0_31 = arith.constant 0 : index
    %c0_32 = arith.constant 0 : index
    %31 = vector.load %arg14[%c0_31, %c0_32] : memref<16x128xf32, #tpu.memory_space<vmem>>, vector<16x128xf32>
    tpu.vector_store %arg14[%c0_31, %c0_32], %30 {strides = array<i32>} : memref<16x128xf32, #tpu.memory_space<vmem>>, vector<16x128xf32>,
    return
  }
  func.func @transform_0(%arg0: i32) -> i32 {
    %c0_i32 = arith.constant 0 : i32
    %c0_i32_0 = arith.constant 0 : i32
    return %c0_i32 : i32
  }
  func.func @transform_1(%arg0: i32) -> i32 {
    %c0_i32 = arith.constant 0 : i32
    %c0_i32_0 = arith.constant 0 : i32
    return %c0_i32 : i32
  }
  func.func @transform_2(%arg0: i32) -> (i32, i32) {
    %c0_i32 = arith.constant 0 : i32
    %c0_i32_0 = arith.constant 0 : i32
    return %arg0, %c0_i32 : i32, i32
  }
  func.func @transform_3(%arg0: i32) -> (i32, i32) {
    %c0_i32 = arith.constant 0 : i32
    %c0_i32_0 = arith.constant 0 : i32
    return %arg0, %c0_i32 : i32, i32
  }
  func.func @transform_5(%arg0: i32) -> (i32, i32) {
    %c0_i32 = arith.constant 0 : i32
    %c0_i32_0 = arith.constant 0 : i32
    %c0_i32_1 = arith.constant 0 : i32
    return %c0_i32, %c0_i32_0 : i32, i32
  }
  func.func @transform_6(%arg0: i32) -> (i32, i32) {
    %c0_i32 = arith.constant 0 : i32
    %c0_i32_0 = arith.constant 0 : i32
    %c0_i32_1 = arith.constant 0 : i32
    return %c0_i32, %c0_i32_0 : i32, i32
  }
  func.func @transform_7(%arg0: i32) -> (i32, i32) {
    %c0_i32 = arith.constant 0 : i32
    %c0_i32_0 = arith.constant 0 : i32
    %c0_i32_1 = arith.constant 0 : i32
    return %c0_i32, %c0_i32_0 : i32, i32
  }
  func.func @transform_8(%arg0: i32) -> (i32, i32) {
    %c0_i32 = arith.constant 0 : i32
    %c0_i32_0 = arith.constant 0 : i32
    %c0_i32_1 = arith.constant 0 : i32
    return %c0_i32, %c0_i32_0 : i32, i32
  }
  func.func @transform_9(%arg0: i32) -> (i32, i32) {
    %c0_i32 = arith.constant 0 : i32
    %c0_i32_0 = arith.constant 0 : i32
    %c0_i32_1 = arith.constant 0 : i32
    return %c0_i32, %c0_i32_0 : i32, i32
  }
  func.func @transform_10(%arg0: i32) -> (i32, i32) {
    %c0_i32 = arith.constant 0 : i32
    %c0_i32_0 = arith.constant 0 : i32
    %c0_i32_1 = arith.constant 0 : i32
    return %c0_i32, %c0_i32_0 : i32, i32
  }
  func.func @transform_11(%arg0: i32) -> (i32, i32) {
    %c0_i32 = arith.constant 0 : i32
    %c0_i32_0 = arith.constant 0 : i32
    %c0_i32_1 = arith.constant 0 : i32
    return %c0_i32, %c0_i32_0 : i32, i32
  }
  func.func @transform_12(%arg0: i32) -> (i32, i32) {
    %c0_i32 = arith.constant 0 : i32
    %c0_i32_0 = arith.constant 0 : i32
    %c0_i32_1 = arith.constant 0 : i32
    return %c0_i32, %c0_i32_0 : i32, i32
  }
  func.func @transform_13(%arg0: i32) -> (i32, i32) {
    %c0_i32 = arith.constant 0 : i32
    %c0_i32_0 = arith.constant 0 : i32
    return %arg0, %c0_i32 : i32, i32
  }
}

</mosaic_0001>

<llo_original>
// kernel: tpu_custom_call.1
$region0: #{tpu_custom_call.1}
  #allocation0 [shape = 'u32[]', space=smem, size = 0x4, offset = 0x4, fixed_abs, tag = 'smem constant byte address 0x4 - core index']
  #allocation1 [shape = 'u32[144,128]{1,0:T(1,128)}', space=vmem, size = 0x12000, scoped, tag = 'internal scratch']
  #allocation2 [shape = 'bf16[16,16,128]{2,1,0:T(8,128)(2,1)}', space=vmem, size = 0x10000, scoped, tag = 'scratch operand']
  #allocation3 [shape = 's32[2]{0}', space=sflag, size = 0x8, scoped, tag = 'scratch operand']
  #allocation4 [shape = 'f32[16,128]{1,0:T(8,128)}', space=vmem, size = 0x2000, scoped, tag = 'scratch operand']
  #allocation5 [shape = 'f32[16,128]{1,0:T(8,128)}', space=vmem, size = 0x2000, scoped, tag = 'scratch operand']
  #allocation19 [shape = 's32[]', space=sflag, size = 0x4, offset = 0, fixed_abs, tag = 'sflag constant byte address 0x0 - dummy sync flag']
  #allocation20 [shape = 's32[]', space=sflag, size = 0x4, offset = 0, fixed_abs, tag = 'sflag constant byte address 0x0 - dummy sync flag']
  #allocation21 [shape = 'u32[]', space=smem, size = 0x4, offset = 0x44, fixed_abs, tag = 'smem constant byte address 0x44 - assertion arg 0']
  #allocation22 [shape = 'u32[]', space=smem, size = 0x4, offset = 0x48, fixed_abs, tag = 'smem constant byte address 0x48 - assertion arg 1']
  #allocation23 [shape = 's32[]', space=sflag, size = 0x4, offset = 0, fixed_abs, tag = 'sflag constant byte address 0x0 - dummy sync flag']
  #allocation24 [shape = 's32[]', space=sflag, size = 0x4, offset = 0, fixed_abs, tag = 'sflag constant byte address 0x0 - dummy sync flag']
  %s0 = inlined_call_operand.vmem [shape: f32[16], index: 0, kind: input, shape index: {}]
  %s1 = inlined_call_operand.vmem [shape: s32[16], index: 1, kind: input, shape index: {}]
  %s2 = inlined_call_operand.vmem [shape: s32[32,1], index: 2, kind: input, shape index: {}]
  %s3 = inlined_call_operand.vmem [shape: f32[32,128], index: 3, kind: input, shape index: {}]
  %s4 = inlined_call_operand.hbm [shape: bf16[2,2,8,16,128], index: 4, kind: input, shape index: {}]
  %s5 = inlined_call_operand.hbm [shape: bf16[128,128], index: 5, kind: input, shape index: {}]
  %s6 = inlined_call_operand.vmem [shape: f32[1,128], index: 6, kind: input, shape index: {}]
  %s7 = inlined_call_operand.hbm [shape: bf16[128,256], index: 7, kind: input, shape index: {}]
  %s8 = inlined_call_operand.vmem [shape: f32[1,256], index: 8, kind: input, shape index: {}]
  %s9 = inlined_call_operand.hbm [shape: bf16[128,128], index: 9, kind: input, shape index: {}]
  %s10 = inlined_call_operand.vmem [shape: f32[1,128], index: 10, kind: input, shape index: {}]
  %s11 = inlined_call_operand.hbm [shape: bf16[128,128], index: 11, kind: input, shape index: {}]
  %s12 = inlined_call_operand.vmem [shape: f32[1,128], index: 12, kind: input, shape index: {}]
  %s13 = inlined_call_operand.hbm [shape: f32[32,128], index: 13, kind: output, shape index: {}]
  %s14 = sld [smem:[#allocation0]]
  $region156: #{tpu_custom_call.1} parent=0
    _
  %s16 = ssub.s32 1, %s14
  %s17 = scalar_select 0, %s16, %s14
  $region1: #{tpu_custom_call.1} parent=0
    #allocation6 [shape = 'u8[512]{0}', space=smem, size = 0x200, scoped, tag = 'input window, operand 0, single buffered']
    #allocation7 [shape = 's32[2]{0}', space=sflag, size = 0x8, scoped, tag = 'scoped memory for tpu_custom_call.1']
    #allocation8 [shape = 's32[2]{0}', space=sflag, size = 0x8, scoped, tag = 'scoped memory for tpu_custom_call.1']
    #allocation9 [shape = 's32[2]{0}', space=sflag, size = 0x8, scoped, tag = 'scoped memory for tpu_custom_call.1']
    #allocation10 [shape = 'u8[512]{0}', space=smem, size = 0x200, scoped, tag = 'input window, operand 1, single buffered']
    #allocation11 [shape = 's32[1]{0}', space=sflag, size = 0x4, scoped, tag = 'scoped memory for tpu_custom_call.1']
    #allocation12 [shape = 'u8[32768]{0}', space=vmem, size = 0x8000, scoped, tag = 'input window, operand 5, single buffered']
    #allocation13 [shape = 'u8[65536]{0}', space=vmem, size = 0x10000, scoped, tag = 'input window, operand 7, single buffered']
    #allocation14 [shape = 's32[1]{0}', space=sflag, size = 0x4, scoped, tag = 'scoped memory for tpu_custom_call.1']
    #allocation15 [shape = 'u8[32768]{0}', space=vmem, size = 0x8000, scoped, tag = 'input window, operand 9, single buffered']
    #allocation16 [shape = 'u8[32768]{0}', space=vmem, size = 0x8000, scoped, tag = 'input window, operand 11, single buffered']
    #allocation17 [shape = 's32[1]{0}', space=sflag, size = 0x4, scoped, tag = 'scoped memory for tpu_custom_call.1']
    #allocation18 [shape = 'u8[16384]{0}', space=vmem, size = 0x4000, scoped, tag = 'output window, operand 0']
    %18 = vsyncpa [#allocation9], 0
    %19 = vsyncpa [#allocation11], 0
    %20 = vsyncpa [#allocation7], 0
    %21 = vsyncpa [#allocation14], 0
    %22 = vsyncpa [#allocation17], 0
    %23 = vsyncpa [#allocation8], 0
    %s24 = scalar_lea.sflag [#allocation8], 1
    %25 = vsyncpa %s24, 0
    loop: start=0, step=1, limit=4
    $region2: #{tpu_custom_call.1} parent=1 // loop_pre_header
      _
    $region3: #{tpu_custom_call.1} parent=1 // loop_header
      %s27 = sphi 0, %s31
      %p28 = scmp.ge.s32.totalorder %s27, 4
      %s35 = sphi 0, %s35
      %s37 = sphi 0, %s35
      %s38 = sphi 0, %s37
      %s52 = sphi 0, %s38
      %s56 = sphi 0, %s56
      %s58 = sphi 0, %s56
      %s59 = sphi 0, %s58
      %s73 = sphi 0, %s59
      %s79 = sphi 0, %s81
      %s82 = sphi 0, %s79
      %s83 = sphi 0, %s82
      %s99 = sphi 0, %s83
      %s105 = sphi 0, %s107
      %s108 = sphi 0, %s105
      %s109 = sphi 0, %s108
      %s125 = sphi 0, %s109
      %s129 = sphi 0, %s129
      %s131 = sphi 0, %s129
      %s132 = sphi 0, %s131
      %s146 = sphi 0, %s132
      %s150 = sphi 0, %s150
      %s152 = sphi 0, %s150
      %s153 = sphi 0, %s152
      %s167 = sphi 0, %s153
      %s171 = sphi 0, %s171
      %s173 = sphi 0, %s171
      %s174 = sphi 0, %s173
      %s188 = sphi 0, %s174
      %s192 = sphi 0, %s192
      %s194 = sphi 0, %s192
      %s195 = sphi 0, %s194
      %s209 = sphi 0, %s195
      %s213 = sphi 0, %s213
      %s215 = sphi 0, %s213
      %s216 = sphi 0, %s215
      %s230 = sphi 0, %s216
      %s234 = sphi 0, %s234
      %s236 = sphi 0, %s234
      %s237 = sphi 0, %s236
      %s251 = sphi 0, %s237
      %s255 = sphi 0, %s255
      %s257 = sphi 0, %s255
      %s258 = sphi 0, %s257
      %s272 = sphi 0, %s258
      %s276 = sphi 0, %s276
      %s278 = sphi 0, %s276
      %s279 = sphi 0, %s278
      %s293 = sphi 0, %s279
      %s299 = sphi 0, %s301
      %s302 = sphi 0, %s299
      %s303 = sphi 0, %s302
      %s319 = sphi 0, %s303
    $region4: #{tpu_custom_call.1} parent=1 // loop_header_branch
      %30 = sbr.rel (%p28) target = $region8
    $region5: #{tpu_custom_call.1} parent=1 // loop_body
      %s32 = ssub.s32 %s27, 1
      %s33 = ssub.s32 %s27, 2
      %s34 = sadd.s32 %s27, 1
      %s36 = sadd.s32 %s35, 1
      %p39 = scmp.eq.s32.totalorder %s27, 1
      %p40 = scmp.ne.s32.totalorder %s35, %s37
      %p41 = scmp.eq.s32.totalorder %s27, 0
      %p42 = por %p40, %p41
      %p43 = scmp.ne.s32.totalorder %s35, %s37
      %p44 = scmp.eq.s32.totalorder %s32, 1
      %p45 = por %p43, %p44
      %p46 = scmp.ne.s32.totalorder %s37, %s38
      %p47 = scmp.eq.s32.totalorder %s32, 0
      %p48 = por %p46, %p47
      %p49 = scmp.ne.s32.totalorder %s37, %s38
      %p50 = scmp.eq.s32.totalorder %s33, 1
      %p51 = por %p49, %p50
      %p53 = scmp.ne.s32.totalorder %s38, %s52
      %p54 = scmp.eq.s32.totalorder %s33, 0
      %p55 = por %p53, %p54
      %s57 = sadd.s32 %s56, 1
      %p60 = scmp.eq.s32.totalorder %s27, 1
      %p61 = scmp.ne.s32.totalorder %s56, %s58
      %p62 = scmp.eq.s32.totalorder %s27, 0
      %p63 = por %p61, %p62
      %p64 = scmp.ne.s32.totalorder %s56, %s58
      %p65 = scmp.eq.s32.totalorder %s32, 1
      %p66 = por %p64, %p65
      %p67 = scmp.ne.s32.totalorder %s58, %s59
      %p68 = scmp.eq.s32.totalorder %s32, 0
      %p69 = por %p67, %p68
      %p70 = scmp.ne.s32.totalorder %s58, %s59
      %p71 = scmp.eq.s32.totalorder %s33, 1
      %p72 = por %p70, %p71
      %p74 = scmp.ne.s32.totalorder %s59, %s73
      %p75 = scmp.eq.s32.totalorder %s33, 0
      %p76 = por %p74, %p75
      %s77 = ssub.s32 %s27, %s34
      %p78 = scmp.eq.s32.totalorder %s77, 0
      %s80 = sadd.s32 %s79, 1
      %s81 = scalar_select %p78, %s79, %s80
      %p84 = pneg %p78
      %p85 = scmp.eq.s32.totalorder %s27, 1
      %p86 = por %p84, %p85
      %p87 = scmp.ne.s32.totalorder %s79, %s82
      %p88 = scmp.eq.s32.totalorder %s27, 0
      %p89 = por %p87, %p88
      %p90 = scmp.ne.s32.totalorder %s79, %s82
      %p91 = scmp.eq.s32.totalorder %s32, 1
      %p92 = por %p90, %p91
      %p93 = scmp.ne.s32.totalorder %s82, %s83
      %p94 = scmp.eq.s32.totalorder %s32, 0
      %p95 = por %p93, %p94
      %p96 = scmp.ne.s32.totalorder %s82, %s83
      %p97 = scmp.eq.s32.totalorder %s33, 1
      %p98 = por %p96, %p97
      %p100 = scmp.ne.s32.totalorder %s83, %s99
      %p101 = scmp.eq.s32.totalorder %s33, 0
      %p102 = por %p100, %p101
      %s103 = ssub.s32 %s27, %s34
      %p104 = scmp.eq.s32.totalorder %s103, 0
      %s106 = sadd.s32 %s105, 1
      %s107 = scalar_select %p104, %s105, %s106
      %p110 = pneg %p104
      %p111 = scmp.eq.s32.totalorder %s27, 1
      %p112 = por %p110, %p111
      %p113 = scmp.ne.s32.totalorder %s105, %s108
      %p114 = scmp.eq.s32.totalorder %s27, 0
      %p115 = por %p113, %p114
      %p116 = scmp.ne.s32.totalorder %s105, %s108
      %p117 = scmp.eq.s32.totalorder %s32, 1
      %p118 = por %p116, %p117
      %p119 = scmp.ne.s32.totalorder %s108, %s109
      %p120 = scmp.eq.s32.totalorder %s32, 0
      %p121 = por %p119, %p120
      %p122 = scmp.ne.s32.totalorder %s108, %s109
      %p123 = scmp.eq.s32.totalorder %s33, 1
      %p124 = por %p122, %p123
      %p126 = scmp.ne.s32.totalorder %s109, %s125
      %p127 = scmp.eq.s32.totalorder %s33, 0
      %p128 = por %p126, %p127
      %s130 = sadd.s32 %s129, 1
      %p133 = scmp.eq.s32.totalorder %s27, 1
      %p134 = scmp.ne.s32.totalorder %s129, %s131
      %p135 = scmp.eq.s32.totalorder %s27, 0
      %p136 = por %p134, %p135
      %p137 = scmp.ne.s32.totalorder %s129, %s131
      %p138 = scmp.eq.s32.totalorder %s32, 1
      %p139 = por %p137, %p138
      %p140 = scmp.ne.s32.totalorder %s131, %s132
      %p141 = scmp.eq.s32.totalorder %s32, 0
      %p142 = por %p140, %p141
      %p143 = scmp.ne.s32.totalorder %s131, %s132
      %p144 = scmp.eq.s32.totalorder %s33, 1
      %p145 = por %p143, %p144
      %p147 = scmp.ne.s32.totalorder %s132, %s146
      %p148 = scmp.eq.s32.totalorder %s33, 0
      %p149 = por %p147, %p148
      %s151 = sadd.s32 %s150, 1
      %p154 = scmp.eq.s32.totalorder %s27, 1
      %p155 = scmp.ne.s32.totalorder %s150, %s152
      %p156 = scmp.eq.s32.totalorder %s27, 0
      %p157 = por %p155, %p156
      %p158 = scmp.ne.s32.totalorder %s150, %s152
      %p159 = scmp.eq.s32.totalorder %s32, 1
      %p160 = por %p158, %p159
      %p161 = scmp.ne.s32.totalorder %s152, %s153
      %p162 = scmp.eq.s32.totalorder %s32, 0
      %p163 = por %p161, %p162
      %p164 = scmp.ne.s32.totalorder %s152, %s153
      %p165 = scmp.eq.s32.totalorder %s33, 1
      %p166 = por %p164, %p165
      %p168 = scmp.ne.s32.totalorder %s153, %s167
      %p169 = scmp.eq.s32.totalorder %s33, 0
      %p170 = por %p168, %p169
      %s172 = sadd.s32 %s171, 1
      %p175 = scmp.eq.s32.totalorder %s27, 1
      %p176 = scmp.ne.s32.totalorder %s171, %s173
      %p177 = scmp.eq.s32.totalorder %s27, 0
      %p178 = por %p176, %p177
      %p179 = scmp.ne.s32.totalorder %s171, %s173
      %p180 = scmp.eq.s32.totalorder %s32, 1
      %p181 = por %p179, %p180
      %p182 = scmp.ne.s32.totalorder %s173, %s174
      %p183 = scmp.eq.s32.totalorder %s32, 0
      %p184 = por %p182, %p183
      %p185 = scmp.ne.s32.totalorder %s173, %s174
      %p186 = scmp.eq.s32.totalorder %s33, 1
      %p187 = por %p185, %p186
      %p189 = scmp.ne.s32.totalorder %s174, %s188
      %p190 = scmp.eq.s32.totalorder %s33, 0
      %p191 = por %p189, %p190
      %s193 = sadd.s32 %s192, 1
      %p196 = scmp.eq.s32.totalorder %s27, 1
      %p197 = scmp.ne.s32.totalorder %s192, %s194
      %p198 = scmp.eq.s32.totalorder %s27, 0
      %p199 = por %p197, %p198
      %p200 = scmp.ne.s32.totalorder %s192, %s194
      %p201 = scmp.eq.s32.totalorder %s32, 1
      %p202 = por %p200, %p201
      %p203 = scmp.ne.s32.totalorder %s194, %s195
      %p204 = scmp.eq.s32.totalorder %s32, 0
      %p205 = por %p203, %p204
      %p206 = scmp.ne.s32.totalorder %s194, %s195
      %p207 = scmp.eq.s32.totalorder %s33, 1
      %p208 = por %p206, %p207
      %p210 = scmp.ne.s32.totalorder %s195, %s209
      %p211 = scmp.eq.s32.totalorder %s33, 0
      %p212 = por %p210, %p211
      %s214 = sadd.s32 %s213, 1
      %p217 = scmp.eq.s32.totalorder %s27, 1
      %p218 = scmp.ne.s32.totalorder %s213, %s215
      %p219 = scmp.eq.s32.totalorder %s27, 0
      %p220 = por %p218, %p219
      %p221 = scmp.ne.s32.totalorder %s213, %s215
      %p222 = scmp.eq.s32.totalorder %s32, 1
      %p223 = por %p221, %p222
      %p224 = scmp.ne.s32.totalorder %s215, %s216
      %p225 = scmp.eq.s32.totalorder %s32, 0
      %p226 = por %p224, %p225
      %p227 = scmp.ne.s32.totalorder %s215, %s216
      %p228 = scmp.eq.s32.totalorder %s33, 1
      %p229 = por %p227, %p228
      %p231 = scmp.ne.s32.totalorder %s216, %s230
      %p232 = scmp.eq.s32.totalorder %s33, 0
      %p233 = por %p231, %p232
      %s235 = sadd.s32 %s234, 1
      %p238 = scmp.eq.s32.totalorder %s27, 1
      %p239 = scmp.ne.s32.totalorder %s234, %s236
      %p240 = scmp.eq.s32.totalorder %s27, 0
      %p241 = por %p239, %p240
      %p242 = scmp.ne.s32.totalorder %s234, %s236
      %p243 = scmp.eq.s32.totalorder %s32, 1
      %p244 = por %p242, %p243
      %p245 = scmp.ne.s32.totalorder %s236, %s237
      %p246 = scmp.eq.s32.totalorder %s32, 0
      %p247 = por %p245, %p246
      %p248 = scmp.ne.s32.totalorder %s236, %s237
      %p249 = scmp.eq.s32.totalorder %s33, 1
      %p250 = por %p248, %p249
      %p252 = scmp.ne.s32.totalorder %s237, %s251
      %p253 = scmp.eq.s32.totalorder %s33, 0
      %p254 = por %p252, %p253
      %s256 = sadd.s32 %s255, 1
      %p259 = scmp.eq.s32.totalorder %s27, 1
      %p260 = scmp.ne.s32.totalorder %s255, %s257
      %p261 = scmp.eq.s32.totalorder %s27, 0
      %p262 = por %p260, %p261
      %p263 = scmp.ne.s32.totalorder %s255, %s257
      %p264 = scmp.eq.s32.totalorder %s32, 1
      %p265 = por %p263, %p264
      %p266 = scmp.ne.s32.totalorder %s257, %s258
      %p267 = scmp.eq.s32.totalorder %s32, 0
      %p268 = por %p266, %p267
      %p269 = scmp.ne.s32.totalorder %s257, %s258
      %p270 = scmp.eq.s32.totalorder %s33, 1
      %p271 = por %p269, %p270
      %p273 = scmp.ne.s32.totalorder %s258, %s272
      %p274 = scmp.eq.s32.totalorder %s33, 0
      %p275 = por %p273, %p274
      %s277 = sadd.s32 %s276, 1
      %p280 = scmp.eq.s32.totalorder %s27, 1
      %p281 = scmp.ne.s32.totalorder %s276, %s278
      %p282 = scmp.eq.s32.totalorder %s27, 0
      %p283 = por %p281, %p282
      %p284 = scmp.ne.s32.totalorder %s276, %s278
      %p285 = scmp.eq.s32.totalorder %s32, 1
      %p286 = por %p284, %p285
      %p287 = scmp.ne.s32.totalorder %s278, %s279
      %p288 = scmp.eq.s32.totalorder %s32, 0
      %p289 = por %p287, %p288
      %p290 = scmp.ne.s32.totalorder %s278, %s279
      %p291 = scmp.eq.s32.totalorder %s33, 1
      %p292 = por %p290, %p291
      %p294 = scmp.ne.s32.totalorder %s279, %s293
      %p295 = scmp.eq.s32.totalorder %s33, 0
      %p296 = por %p294, %p295
      %s297 = ssub.s32 %s27, %s34
      %p298 = scmp.eq.s32.totalorder %s297, 0
      %s300 = sadd.s32 %s299, 1
      %s301 = scalar_select %p298, %s299, %s300
      %p304 = pneg %p298
      %p305 = scmp.eq.s32.totalorder %s27, 1
      %p306 = por %p304, %p305
      %p307 = scmp.ne.s32.totalorder %s299, %s302
      %p308 = scmp.eq.s32.totalorder %s27, 0
      %p309 = por %p307, %p308
      %p310 = scmp.ne.s32.totalorder %s299, %s302
      %p311 = scmp.eq.s32.totalorder %s32, 1
      %p312 = por %p310, %p311
      %p313 = scmp.ne.s32.totalorder %s302, %s303
      %p314 = scmp.eq.s32.totalorder %s32, 0
      %p315 = por %p313, %p314
      %p316 = scmp.ne.s32.totalorder %s302, %s303
      %p317 = scmp.eq.s32.totalorder %s33, 1
      %p318 = por %p316, %p317
      %p320 = scmp.ne.s32.totalorder %s303, %s319
      %p321 = scmp.eq.s32.totalorder %s33, 0
      %p322 = por %p320, %p321
      %p323 = scmp.le.s32.totalorder 1, %s27
      %p324 = scmp.lt.s32.totalorder %s27, 3
      %p325 = pnand %p323, %p324
      %p326 = pneg %p325
      // Predicated region
      $region9: #{tpu_custom_call.1} parent=5 // pred_check
        _
      $region10: #{tpu_custom_call.1} parent=5 // pred_check_branch
        %328 = sbr.rel (%p325) target = $region12
      $region11: #{tpu_custom_call.1} parent=5 // pred_region
        %s329 = ssub.s32 %s27, 1
        // Predicated region
        $region13: #{tpu_custom_call.1} parent=11 // pred_check
          %p330 = pneg %p48
        $region14: #{tpu_custom_call.1} parent=11 // pred_check_branch
          %332 = sbr.rel (%p330) target = $region16
        $region15: #{tpu_custom_call.1} parent=11 // pred_region
          %s334 = ssub.s32 16, 16
          %335 = vsyncadd [#allocation9], %s334
          %s337 = sshll.u32 %s0, 4
          %s338 = int_to_ptr.vmem [resolvable:$true] %s337
          %340 = dma.vmem_to_smem %s338, 16, [#allocation6], [#allocation9]
        $region16: #{tpu_custom_call.1} parent=11 // pred_fallthru
          _
        // Predicated region
        $region17: #{tpu_custom_call.1} parent=11 // pred_check
          %p341 = pneg %p69
        $region18: #{tpu_custom_call.1} parent=11 // pred_check_branch
          %343 = sbr.rel (%p341) target = $region20
        $region19: #{tpu_custom_call.1} parent=11 // pred_region
          %s345 = ssub.s32 16, 16
          %346 = vsyncadd [#allocation11], %s345
          %s348 = sshll.u32 %s1, 4
          %s349 = int_to_ptr.vmem [resolvable:$true] %s348
          %351 = dma.vmem_to_smem %s349, 16, [#allocation10], [#allocation11]
        $region20: #{tpu_custom_call.1} parent=11 // pred_fallthru
          _
        // Predicated region
        $region21: #{tpu_custom_call.1} parent=11 // pred_check
          %p352 = pneg %p142
        $region22: #{tpu_custom_call.1} parent=11 // pred_check_branch
          %354 = sbr.rel (%p352) target = $region24
        $region23: #{tpu_custom_call.1} parent=11 // pred_region
          %s356 = ssub.s32 1024, 1024
          %357 = vsyncadd [#allocation7], %s356
          %s358 = sshll.u32 [#allocation12], 4
          %s359 = int_to_ptr.vmem [resolvable:$true] %s358
          %364 = dma.hbm_to_vmem [thread:$0]  %s5, 1024, %s359, [#allocation7], 64, 64, 4
        $region24: #{tpu_custom_call.1} parent=11 // pred_fallthru
          _
        // Predicated region
        $region25: #{tpu_custom_call.1} parent=11 // pred_check
          %p365 = pneg %p163
        $region26: #{tpu_custom_call.1} parent=11 // pred_check_branch
          %367 = sbr.rel (%p365) target = $region28
        $region27: #{tpu_custom_call.1} parent=11 // pred_region
          _
        $region28: #{tpu_custom_call.1} parent=11 // pred_fallthru
          _
        // Predicated region
        $region29: #{tpu_custom_call.1} parent=11 // pred_check
          %p368 = pneg %p184
        $region30: #{tpu_custom_call.1} parent=11 // pred_check_branch
          %370 = sbr.rel (%p368) target = $region32
        $region31: #{tpu_custom_call.1} parent=11 // pred_region
          %s372 = ssub.s32 2048, 2048
          %373 = vsyncadd [#allocation14], %s372
          %s374 = sshll.u32 [#allocation13], 4
          %s375 = int_to_ptr.vmem [resolvable:$true] %s374
          %380 = dma.hbm_to_vmem [thread:$0]  %s7, 2048, %s375, [#allocation14], 128, 128, 8
        $region32: #{tpu_custom_call.1} parent=11 // pred_fallthru
          _
        // Predicated region
        $region33: #{tpu_custom_call.1} parent=11 // pred_check
          %p381 = pneg %p205
        $region34: #{tpu_custom_call.1} parent=11 // pred_check_branch
          %383 = sbr.rel (%p381) target = $region36
        $region35: #{tpu_custom_call.1} parent=11 // pred_region
          _
        $region36: #{tpu_custom_call.1} parent=11 // pred_fallthru
          _
        // Predicated region
        $region37: #{tpu_custom_call.1} parent=11 // pred_check
          %p384 = pneg %p226
        $region38: #{tpu_custom_call.1} parent=11 // pred_check_branch
          %386 = sbr.rel (%p384) target = $region40
        $region39: #{tpu_custom_call.1} parent=11 // pred_region
          %s388 = ssub.s32 1024, 1024
          %389 = vsyncadd [#allocation14], %s388
          %s390 = sshll.u32 [#allocation15], 4
          %s391 = int_to_ptr.vmem [resolvable:$true] %s390
          %396 = dma.hbm_to_vmem [thread:$0]  %s9, 1024, %s391, [#allocation14], 64, 64, 4
        $region40: #{tpu_custom_call.1} parent=11 // pred_fallthru
          _
        // Predicated region
        $region41: #{tpu_custom_call.1} parent=11 // pred_check
          %p397 = pneg %p247
        $region42: #{tpu_custom_call.1} parent=11 // pred_check_branch
          %399 = sbr.rel (%p397) target = $region44
        $region43: #{tpu_custom_call.1} parent=11 // pred_region
          _
        $region44: #{tpu_custom_call.1} parent=11 // pred_fallthru
          _
        // Predicated region
        $region45: #{tpu_custom_call.1} parent=11 // pred_check
          %p400 = pneg %p268
        $region46: #{tpu_custom_call.1} parent=11 // pred_check_branch
          %402 = sbr.rel (%p400) target = $region48
        $region47: #{tpu_custom_call.1} parent=11 // pred_region
          %s404 = ssub.s32 1024, 1024
          %405 = vsyncadd [#allocation17], %s404
          %s406 = sshll.u32 [#allocation16], 4
          %s407 = int_to_ptr.vmem [resolvable:$true] %s406
          %412 = dma.hbm_to_vmem [thread:$0]  %s11, 1024, %s407, [#allocation17], 64, 64, 4
        $region48: #{tpu_custom_call.1} parent=11 // pred_fallthru
          _
        // Predicated region
        $region49: #{tpu_custom_call.1} parent=11 // pred_check
          %p413 = pneg %p289
        $region50: #{tpu_custom_call.1} parent=11 // pred_check_branch
          %415 = sbr.rel (%p413) target = $region52
        $region51: #{tpu_custom_call.1} parent=11 // pred_region
          _
        $region52: #{tpu_custom_call.1} parent=11 // pred_fallthru
          _
      $region12: #{tpu_custom_call.1} parent=5 // pred_fallthru
        _
      %p416 = scmp.lt.s32.totalorder %s27, 2
      // Predicated region
      $region53: #{tpu_custom_call.1} parent=5 // pred_check
        %p417 = pneg %p416
      $region54: #{tpu_custom_call.1} parent=5 // pred_check_branch
        %419 = sbr.rel (%p417) target = $region56
      $region55: #{tpu_custom_call.1} parent=5 // pred_region
        // Predicated region
        $region57: #{tpu_custom_call.1} parent=55 // pred_check
          %p420 = pneg %p89
        $region58: #{tpu_custom_call.1} parent=55 // pred_check_branch
          %422 = sbr.rel (%p420) target = $region60
        $region59: #{tpu_custom_call.1} parent=55 // pred_region
          %s423 = smul.u32 2, %s27
          %p424 = scmp.lt.s32.totalorder %s423, 3
          %s425 = scalar_select %p424, %s423, 3
          %s426 = smul.addr %s425, 8
          %s427 = scalar_lea.vmem %s2, %s426
          %s428 = smul.u32 2, %s27
        $region60: #{tpu_custom_call.1} parent=55 // pred_fallthru
          _
        // Predicated region
        $region61: #{tpu_custom_call.1} parent=55 // pred_check
          %p429 = pneg %p115
        $region62: #{tpu_custom_call.1} parent=55 // pred_check_branch
          %431 = sbr.rel (%p429) target = $region64
        $region63: #{tpu_custom_call.1} parent=55 // pred_region
          %s432 = smul.u32 2, %s27
          %p433 = scmp.lt.s32.totalorder %s432, 3
          %s434 = scalar_select %p433, %s432, 3
          %s435 = smul.addr %s434, 8
          %s436 = scalar_lea.vmem %s3, %s435
          %s437 = smul.u32 2, %s27
        $region64: #{tpu_custom_call.1} parent=55 // pred_fallthru
          _
      $region56: #{tpu_custom_call.1} parent=5 // pred_fallthru
        _
      %p438 = scmp.le.s32.totalorder 1, %s27
      %p439 = scmp.lt.s32.totalorder %s27, 3
      %p440 = pnand %p438, %p439
      %p441 = pneg %p440
      // Predicated region
      $region65: #{tpu_custom_call.1} parent=5 // pred_check
        _
      $region66: #{tpu_custom_call.1} parent=5 // pred_check_branch
        %443 = sbr.rel (%p440) target = $region68
      $region67: #{tpu_custom_call.1} parent=5 // pred_region
        %s444 = ssub.s32 %s27, 1
        // Predicated region
        $region69: #{tpu_custom_call.1} parent=67 // pred_check
          %p445 = pneg %p48
        $region70: #{tpu_custom_call.1} parent=67 // pred_check_branch
          %447 = sbr.rel (%p445) target = $region72
        $region71: #{tpu_custom_call.1} parent=67 // pred_region
          %448 = dma.done [#allocation9], 16
        $region72: #{tpu_custom_call.1} parent=67 // pred_fallthru
          _
        // Predicated region
        $region73: #{tpu_custom_call.1} parent=67 // pred_check
          %p449 = pneg %p69
        $region74: #{tpu_custom_call.1} parent=67 // pred_check_branch
          %451 = sbr.rel (%p449) target = $region76
        $region75: #{tpu_custom_call.1} parent=67 // pred_region
          %452 = dma.done [#allocation11], 16
        $region76: #{tpu_custom_call.1} parent=67 // pred_fallthru
          _
        // Predicated region
        $region77: #{tpu_custom_call.1} parent=67 // pred_check
          %p453 = pneg %p142
        $region78: #{tpu_custom_call.1} parent=67 // pred_check_branch
          %455 = sbr.rel (%p453) target = $region80
        $region79: #{tpu_custom_call.1} parent=67 // pred_region
          %456 = dma.done [#allocation7], 1024
        $region80: #{tpu_custom_call.1} parent=67 // pred_fallthru
          _
        // Predicated region
        $region81: #{tpu_custom_call.1} parent=67 // pred_check
          %p457 = pneg %p184
        $region82: #{tpu_custom_call.1} parent=67 // pred_check_branch
          %459 = sbr.rel (%p457) target = $region84
        $region83: #{tpu_custom_call.1} parent=67 // pred_region
          %460 = dma.done [#allocation14], 2048
        $region84: #{tpu_custom_call.1} parent=67 // pred_fallthru
          _
        // Predicated region
        $region85: #{tpu_custom_call.1} parent=67 // pred_check
          %p461 = pneg %p226
        $region86: #{tpu_custom_call.1} parent=67 // pred_check_branch
          %463 = sbr.rel (%p461) target = $region88
        $region87: #{tpu_custom_call.1} parent=67 // pred_region
          %464 = dma.done [#allocation14], 1024
        $region88: #{tpu_custom_call.1} parent=67 // pred_fallthru
          _
        // Predicated region
        $region89: #{tpu_custom_call.1} parent=67 // pred_check
          %p465 = pneg %p268
        $region90: #{tpu_custom_call.1} parent=67 // pred_check_branch
          %467 = sbr.rel (%p465) target = $region92
        $region91: #{tpu_custom_call.1} parent=67 // pred_region
          %468 = dma.done [#allocation17], 1024
        $region92: #{tpu_custom_call.1} parent=67 // pred_fallthru
          _
        %469 = sfence
        %p470 = pneg %p48
        %p471 = pneg %p45
        %p472 = pneg %p69
        %p473 = pneg %p66
        %s474 = smul.u32 2, %s32
        %p475 = scmp.lt.s32.totalorder %s474, 3
        %s476 = scalar_select %p475, %s474, 3
        %s477 = smul.addr %s476, 8
        %s478 = scalar_lea.vmem %s2, %s477
        %p479 = pneg %p95
        %p480 = pneg %p92
        %s481 = smul.u32 2, %s32
        %p482 = scmp.lt.s32.totalorder %s481, 3
        %s483 = scalar_select %p482, %s481, 3
        %s484 = smul.addr %s483, 8
        %s485 = scalar_lea.vmem %s3, %s484
        %p486 = pneg %p121
        %p487 = pneg %p118
        %p488 = pneg %p142
        %p489 = pneg %p139
        %p490 = pneg %p163
        %p491 = pneg %p160
        %p492 = pneg %p184
        %p493 = pneg %p181
        %p494 = pneg %p205
        %p495 = pneg %p202
        %p496 = pneg %p226
        %p497 = pneg %p223
        %p498 = pneg %p247
        %p499 = pneg %p244
        %p500 = pneg %p268
        %p501 = pneg %p265
        %p502 = pneg %p289
        %p503 = pneg %p286
        %p504 = pneg %p315
        %p505 = pneg %p312
        %s506 = sand.u32 %s302, 1
        %s507 = scalar_lea.sflag [#allocation8], %s506
        %s508 = sand.u32 %s302, 1
        %s509 = smul.addr %s508, 16
        %s510 = scalar_lea.vmem [#allocation18], %s509
        %s511 = smul.u32 2, %s32
        %p512 = scmp.lt.s32.totalorder %s511, 3
        %s513 = scalar_select %p512, %s511, 3
        %s514 = smul.addr %s513, 8
        %s515 = scalar_lea.vmem %s2, %s514
        %s516 = smul.u32 2, %s32
        %s517 = smul.u32 2, %s32
        %p518 = scmp.lt.s32.totalorder %s517, 3
        %s519 = scalar_select %p518, %s517, 3
        %s520 = smul.addr %s519, 8
        %s521 = scalar_lea.vmem %s3, %s520
        %s522 = smul.u32 2, %s32
        %s523 = smul.u32 2, %s32
        %s525 = smul.u32 %s32, 32
        %s526 = smul.addr %s525, 64
        %s527 = scalar_lea.hbm %s4, %s526
        // Predicated region
        $region93: #{tpu_custom_call.1} parent=67 // pred_check
          _
        $region94: #{tpu_custom_call.1} parent=67 // pred_check_branch
          %529 = sbr.rel target = $region96
        $region95: #{tpu_custom_call.1} parent=67 // pred_region
          %530 = sst [smem:[#allocation21]] [#allocation20]
          %531 = sst [smem:[#allocation22]] [#allocation19]
        $region96: #{tpu_custom_call.1} parent=67 // pred_fallthru
          _
        %533 = shalt.err (0)
        %s535 = sshll.u32 [#allocation2], 4
        %s536 = int_to_ptr.vmem [resolvable:$true] %s535
        %538 = dma.hbm_to_vmem [thread:$0]  %s527, 1024, %s536, [#allocation3]
        %v539 = vld [vmem:[%s521] sm:$0xff]
        %v540 = vld [vmem:[%s521 + $0x8] sm:$0xff]
        %v541 = vpack.c.bf16 %v540, %v539
        %v542 = vld [vmem:[#allocation12] sm:$0xf]
        %v543 = vld [vmem:[#allocation12 + $0x4] sm:$0xf]
        %v544 = vld [vmem:[#allocation12 + $0x8] sm:$0xf]
        %v545 = vld [vmem:[#allocation12 + $0xc] sm:$0xf]
        %v546 = vld [vmem:[#allocation12 + $0x10] sm:$0xf]
        %v547 = vld [vmem:[#allocation12 + $0x14] sm:$0xf]
        %v548 = vld [vmem:[#allocation12 + $0x18] sm:$0xf]
        %v549 = vld [vmem:[#allocation12 + $0x1c] sm:$0xf]
        %v550 = vld [vmem:[#allocation12 + $0x20] sm:$0xf]
        %v551 = vld [vmem:[#allocation12 + $0x24] sm:$0xf]
        %v552 = vld [vmem:[#allocation12 + $0x28] sm:$0xf]
        %v553 = vld [vmem:[#allocation12 + $0x2c] sm:$0xf]
        %v554 = vld [vmem:[#allocation12 + $0x30] sm:$0xf]
        %v555 = vld [vmem:[#allocation12 + $0x34] sm:$0xf]
        %v556 = vld [vmem:[#allocation12 + $0x38] sm:$0xf]
        %v557 = vld [vmem:[#allocation12 + $0x3c] sm:$0xf]
        %v558 = vld [vmem:[%s6] sm:$0x1]
        %v560 = vlaneseq
        %v561 = vshrl.u32 %v560, 7
        %v562 = vsub.s32 0, %v561
        %v563 = vrot.slane %v558, %v562
        %v581 = vunpack.c.l.b16 %v542
        %v582 = vunpack.c.l.b16 %v543
        %v583 = vunpack.c.l.b16 %v544
        %v584 = vunpack.c.l.b16 %v545
        %v585 = vunpack.c.l.b16 %v546
        %v586 = vunpack.c.l.b16 %v547
        %v587 = vunpack.c.l.b16 %v548
        %v588 = vunpack.c.l.b16 %v549
        %v589 = vunpack.c.l.b16 %v550
        %v590 = vunpack.c.l.b16 %v551
        %v591 = vunpack.c.l.b16 %v552
        %v592 = vunpack.c.l.b16 %v553
        %v593 = vunpack.c.l.b16 %v554
        %v594 = vunpack.c.l.b16 %v555
        %v595 = vunpack.c.l.b16 %v556
        %v596 = vunpack.c.l.b16 %v557
        %v597 = vpack.c.b16 %v582, %v581
        %v598 = vpack.c.b16 %v584, %v583
        %v599 = vpack.c.b16 %v586, %v585
        %v600 = vpack.c.b16 %v588, %v587
        %v601 = vpack.c.b16 %v590, %v589
        %v602 = vpack.c.b16 %v592, %v591
        %v603 = vpack.c.b16 %v594, %v593
        %v604 = vpack.c.b16 %v596, %v595
        %613 = vmatprep.subr.bf16.mxu0 0
        %614 = vmatpush1.bf16.msra.mxu0 %v604
        %615 = vmatprep.subr.bf16.mxu0 0
        %616 = vmatpush1.bf16.msra.mxu0 %v603
        %617 = vmatprep.subr.bf16.mxu0 0
        %618 = vmatpush1.bf16.msra.mxu0 %v602
        %619 = vmatprep.subr.bf16.mxu0 0
        %620 = vmatpush1.bf16.msra.mxu0 %v601
        %621 = vmatprep.subr.bf16.mxu0 0
        %622 = vmatpush1.bf16.msra.mxu0 %v600
        %623 = vmatprep.subr.bf16.mxu0 0
        %624 = vmatpush1.bf16.msra.mxu0 %v599
        %625 = vmatprep.subr.bf16.mxu0 0
        %626 = vmatpush1.bf16.msra.mxu0 %v598
        %627 = vmatprep.subr.bf16.mxu0 0
        %628 = vmatpush1.bf16.msra.mxu0 %v597
        %629 = vmatprep.subr.bf16.mxu0 0
        %630 = vmatpush2.bf16.msra.mxu0 0
        %631 = vmatprep.subr.bf16.mxu0 0
        %632 = vmatpush2.bf16.msra.mxu0 0
        %633 = vmatprep.subr.bf16.mxu0 0
        %634 = vmatpush2.bf16.msra.mxu0 0
        %635 = vmatprep.subr.bf16.mxu0 0
        %636 = vmatpush2.bf16.msra.mxu0 0
        %637 = vmatprep.subr.bf16.mxu0 0
        %638 = vmatpush2.bf16.msra.mxu0 0
        %639 = vmatprep.subr.bf16.mxu0 0
        %640 = vmatpush2.bf16.msra.mxu0 0
        %641 = vmatprep.subr.bf16.mxu0 0
        %642 = vmatpush2.bf16.msra.mxu0 0
        %643 = vmatprep.subr.bf16.mxu0 0
        %644 = vmatpush2.bf16.msra.mxu0 0
        %645 = vmatprep.mubr.bf16.mxu0 0
        %646 = vmatmul.mubr.bf16.gmra.mxu0 %v541
        %v647 = vpop.f32.mrf.mxu0
        %v648 = vadd.f32 %v563, %v647
        %v649 = vpop.f32.mrf.mxu0
        %v650 = vpop.f32.mrf.mxu0
        %v651 = vadd.f32 %v563, %v650
        %v652 = vpop.f32.mrf.mxu0
        %653 = vdwg.mxu0
        %654 = vst [vmem:[#allocation4] sm:$0xff] %v648
        %655 = vst [vmem:[#allocation4 + $0x8] sm:$0xff] %v651
        %656 = vst [vmem:[#allocation5] sm:$0xff] %v648
        %657 = vst [vmem:[#allocation5 + $0x8] sm:$0xff] %v651
        loop: start=0, step=1, limit=2
        $region97: #{tpu_custom_call.1} parent=67 // loop_pre_header
          _
        $region98: #{tpu_custom_call.1} parent=67 // loop_header
          %s659 = sphi 0, %s663
          %p660 = scmp.ge.s32.totalorder %s659, 2
        $region99: #{tpu_custom_call.1} parent=67 // loop_header_branch
          %662 = sbr.rel (%p660) target = $region103
        $region100: #{tpu_custom_call.1} parent=67 // loop_body
          %s664 = sand.u32 %s659, 1
          %s665 = smul.u32 %s664, 8
          %s666 = scalar_lea.sflag [#allocation3], %s664
          %s667 = smul.u32 4, 8
          %s668 = smul.u32 %s667, 2
          %s669 = smul.u32 %s668, 1
          %s670 = sshll.u32 %s669, 4
          %671 = dma.done %s666, %s670
          %s672 = sadd.s32 %s659, 1
          %p673 = scmp.lt.s32.totalorder %s672, 2
          // Predicated region
          $region104: #{tpu_custom_call.1} parent=100 // pred_check
            %p674 = pneg %p673
          $region105: #{tpu_custom_call.1} parent=100 // pred_check_branch
            %676 = sbr.rel (%p674) target = $region107
          $region106: #{tpu_custom_call.1} parent=100 // pred_region
            %s677 = ssub.s32 1, %s664
            %s678 = smul.u32 %s677, 8
            %s679 = smul.u32 %s672, 16
            %s680 = sadd.s32 %s679, %s525
            %s681 = smul.addr %s680, 64
            %s682 = scalar_lea.hbm %s4, %s681
            %s683 = smul.u32 %s678, 2
            %s684 = smul.addr %s683, 4
            %s685 = scalar_lea.vmem [#allocation2], %s684
            %s686 = scalar_lea.sflag [#allocation3], %s677
            // Predicated region
            $region108: #{tpu_custom_call.1} parent=106 // pred_check
              _
            $region109: #{tpu_custom_call.1} parent=106 // pred_check_branch
              %688 = sbr.rel target = $region111
            $region110: #{tpu_custom_call.1} parent=106 // pred_region
              %689 = sst [smem:[#allocation21]] [#allocation24]
              %690 = sst [smem:[#allocation22]] [#allocation23]
            $region111: #{tpu_custom_call.1} parent=106 // pred_fallthru
              _
            %692 = shalt.err (0)
            %s694 = sshll.u32 %s685, 4
            %s695 = int_to_ptr.vmem [resolvable:$true] %s694
            %697 = dma.hbm_to_vmem [thread:$0]  %s682, 1024, %s695, %s686
          $region107: #{tpu_custom_call.1} parent=100 // pred_fallthru
            _
          %s698 = smul.u32 %s659, 8
          %s699 = sld [smem:[#allocation6 + %s698]]
          %s700 = sld [smem:[#allocation10 + %s698]]
          %v701 = vld [vmem:[#allocation4] sm:$0xff]
          %v702 = vld [vmem:[#allocation4 + $0x8] sm:$0xff]
          %v703 = vpack.c.bf16 %v702, %v701
          %v704 = vld [vmem:[#allocation13] sm:$0xff]
          %v705 = vld [vmem:[#allocation13 + $0x8] sm:$0xff]
          %v706 = vld [vmem:[#allocation13 + $0x10] sm:$0xff]
          %v707 = vld [vmem:[#allocation13 + $0x18] sm:$0xff]
          %v708 = vld [vmem:[#allocation13 + $0x20] sm:$0xff]
          %v709 = vld [vmem:[#allocation13 + $0x28] sm:$0xff]
          %v710 = vld [vmem:[#allocation13 + $0x30] sm:$0xff]
          %v711 = vld [vmem:[#allocation13 + $0x38] sm:$0xff]
          %v712 = vld [vmem:[#allocation13 + $0x40] sm:$0xff]
          %v713 = vld [vmem:[#allocation13 + $0x48] sm:$0xff]
          %v714 = vld [vmem:[#allocation13 + $0x50] sm:$0xff]
          %v715 = vld [vmem:[#allocation13 + $0x58] sm:$0xff]
          %v716 = vld [vmem:[#allocation13 + $0x60] sm:$0xff]
          %v717 = vld [vmem:[#allocation13 + $0x68] sm:$0xff]
          %v718 = vld [vmem:[#allocation13 + $0x70] sm:$0xff]
          %v719 = vld [vmem:[#allocation13 + $0x78] sm:$0xff]
          %v720 = vld [vmem:[%s8] sm:$0x3]
          %v722 = vlaneseq
          %v723 = vshrl.u32 %v722, 7
          %v724 = vsub.s32 0, %v723
          %v725 = vrot.slane %v720, %v724
          %v726 = vlaneseq
          %v727 = vshrl.u32 %v726, 7
          %v728 = vsub.s32 1, %v727
          %v729 = vrot.slane %v720, %v728
          %v748 = vunpack.c.l.b16 %v704
          %v749 = vunpack.c.h.b16 %v704
          %v750 = vunpack.c.l.b16 %v705
          %v751 = vunpack.c.h.b16 %v705
          %v752 = vunpack.c.l.b16 %v706
          %v753 = vunpack.c.h.b16 %v706
          %v754 = vunpack.c.l.b16 %v707
          %v755 = vunpack.c.h.b16 %v707
          %v756 = vunpack.c.l.b16 %v708
          %v757 = vunpack.c.h.b16 %v708
          %v758 = vunpack.c.l.b16 %v709
          %v759 = vunpack.c.h.b16 %v709
          %v760 = vunpack.c.l.b16 %v710
          %v761 = vunpack.c.h.b16 %v710
          %v762 = vunpack.c.l.b16 %v711
          %v763 = vunpack.c.h.b16 %v711
          %v764 = vunpack.c.l.b16 %v712
          %v765 = vunpack.c.h.b16 %v712
          %v766 = vunpack.c.l.b16 %v713
          %v767 = vunpack.c.h.b16 %v713
          %v768 = vunpack.c.l.b16 %v714
          %v769 = vunpack.c.h.b16 %v714
          %v770 = vunpack.c.l.b16 %v715
          %v771 = vunpack.c.h.b16 %v715
          %v772 = vunpack.c.l.b16 %v716
          %v773 = vunpack.c.h.b16 %v716
          %v774 = vunpack.c.l.b16 %v717
          %v775 = vunpack.c.h.b16 %v717
          %v776 = vunpack.c.l.b16 %v718
          %v777 = vunpack.c.h.b16 %v718
          %v778 = vunpack.c.l.b16 %v719
          %v779 = vunpack.c.h.b16 %v719
          %v780 = vpack.c.b16 %v750, %v748
          %v781 = vpack.c.b16 %v751, %v749
          %v782 = vpack.c.b16 %v754, %v752
          %v783 = vpack.c.b16 %v755, %v753
          %v784 = vpack.c.b16 %v758, %v756
          %v785 = vpack.c.b16 %v759, %v757
          %v786 = vpack.c.b16 %v762, %v760
          %v787 = vpack.c.b16 %v763, %v761
          %v788 = vpack.c.b16 %v766, %v764
          %v789 = vpack.c.b16 %v767, %v765
          %v790 = vpack.c.b16 %v770, %v768
          %v791 = vpack.c.b16 %v771, %v769
          %v792 = vpack.c.b16 %v774, %v772
          %v793 = vpack.c.b16 %v775, %v773
          %v794 = vpack.c.b16 %v778, %v776
          %v795 = vpack.c.b16 %v779, %v777
          %812 = vmatprep.subr.bf16.mxu0 %v795
          %813 = vmatpush1.bf16.msra.mxu0 %v794
          %814 = vmatprep.subr.bf16.mxu0 %v793
          %815 = vmatpush1.bf16.msra.mxu0 %v792
          %816 = vmatprep.subr.bf16.mxu0 %v791
          %817 = vmatpush1.bf16.msra.mxu0 %v790
          %818 = vmatprep.subr.bf16.mxu0 %v789
          %819 = vmatpush1.bf16.msra.mxu0 %v788
          %820 = vmatprep.subr.bf16.mxu0 %v787
          %821 = vmatpush1.bf16.msra.mxu0 %v786
          %822 = vmatprep.subr.bf16.mxu0 %v785
          %823 = vmatpush1.bf16.msra.mxu0 %v784
          %824 = vmatprep.subr.bf16.mxu0 %v783
          %825 = vmatpush1.bf16.msra.mxu0 %v782
          %826 = vmatprep.subr.bf16.mxu0 %v781
          %827 = vmatpush1.bf16.msra.mxu0 %v780
          %828 = vmatprep.subr.bf16.mxu0 0
          %829 = vmatpush2.bf16.msra.mxu0 0
          %830 = vmatprep.subr.bf16.mxu0 0
          %831 = vmatpush2.bf16.msra.mxu0 0
          %832 = vmatprep.subr.bf16.mxu0 0
          %833 = vmatpush2.bf16.msra.mxu0 0
          %834 = vmatprep.subr.bf16.mxu0 0
          %835 = vmatpush2.bf16.msra.mxu0 0
          %836 = vmatprep.subr.bf16.mxu0 0
          %837 = vmatpush2.bf16.msra.mxu0 0
          %838 = vmatprep.subr.bf16.mxu0 0
          %839 = vmatpush2.bf16.msra.mxu0 0
          %840 = vmatprep.subr.bf16.mxu0 0
          %841 = vmatpush2.bf16.msra.mxu0 0
          %842 = vmatprep.subr.bf16.mxu0 0
          %843 = vmatpush2.bf16.msra.mxu0 0
          %844 = vmatprep.mubr.bf16.mxu0 0
          %845 = vmatmul.mubr.bf16.gmra.mxu0 %v703
          %v846 = vpop.f32.mrf.mxu0
          %v847 = vadd.f32 %v725, %v846
          %v848 = vpop.f32.mrf.mxu0
          %v849 = vadd.f32 %v729, %v848
          %v850 = vpop.f32.mrf.mxu0
          %v851 = vadd.f32 %v725, %v850
          %v852 = vpop.f32.mrf.mxu0
          %v853 = vadd.f32 %v729, %v852
          %854 = vdwg.mxu0
          %v855 = vtanh.pop %v847
          %v856 = vtanh.pop %v851
          %v857 = vmul.f32 %v849, 0.5
          %v858 = vmul.f32 %v853, 0.5
          %v859 = vtanh.pop %v857
          %v860 = vtanh.pop %v858
          %v861 = vmul.f32 %v859, 0.5
          %v862 = vmul.f32 %v860, 0.5
          %v863 = vadd.f32 %v861, 0.5
          %v864 = vadd.f32 %v862, 0.5
          %s865 = smul.u32 %s665, 2
          %s866 = smul.addr %s865, 4
          %s867 = scalar_lea.vmem [#allocation2], %s866
          %v868 = vld [vmem:[%s867] sm:$0xf]
          %v869 = vld [vmem:[%s867 + $0x4] sm:$0xf]
          %v870 = vunpack.c.l.bf16 %v868
          %v871 = vunpack.c.l.bf16 %v869
          %v872 = vstv %s699
          %v873 = vmul.f32 %v855, %v872
          %v874 = vmul.f32 %v856, %v872
          %v875 = vadd.f32 %v701, %v873
          %v876 = vadd.f32 %v702, %v874
          %v877 = vmul.f32 %v863, %v870
          %v878 = vmul.f32 %v864, %v871
          %v879 = vadd.f32 %v875, %v877
          %v880 = vadd.f32 %v876, %v878
          %881 = vst [vmem:[#allocation4] sm:$0xff] %v879
          %882 = vst [vmem:[#allocation4 + $0x8] sm:$0xff] %v880
          %p883 = scmp.ge.s32.totalorder %s700, 0
          // Predicated region
          $region112: #{tpu_custom_call.1} parent=100 // pred_check
            %p884 = pneg %p883
          $region113: #{tpu_custom_call.1} parent=100 // pred_check_branch
            %886 = sbr.rel (%p884) target = $region115
          $region114: #{tpu_custom_call.1} parent=100 // pred_region
            %v887 = vld [vmem:[%s515] sm:$0xff]
            %v888 = vld [vmem:[%s515 + $0x8] sm:$0xff]
            %v889 = vstv %s700
            %vm890 = vcmp.eq.s32.totalorder %v887, %v889
            %vm891 = vcmp.eq.s32.totalorder %v888, %v889
            %v892 = vld [vmem:[#allocation5] sm:$0xff]
            %v893 = vld [vmem:[#allocation5 + $0x8] sm:$0xff]
            %v894 = vsel %vm890, 1, 0
            %v895 = vsel %vm891, 1, 0
            %896 = vset.pattern.permute.xlu0 0
            %897 = vperm.xlu0 %896, %v894
            %v898 = vpop.permute.xlu0 %897
            %899 = vset.pattern.permute.xlu0 0
            %900 = vperm.xlu0 %899, %v895
            %v901 = vpop.permute.xlu0 %900
            %vm902 = vcmp.eq.s32.totalorder %v898, 1
            %vm903 = vcmp.eq.s32.totalorder %v901, 1
            %v904 = vsel %vm902, %v879, %v892
            %v905 = vsel %vm903, %v880, %v893
            %906 = vst [vmem:[#allocation5] sm:$0xff] %v904
            %907 = vst [vmem:[#allocation5 + $0x8] sm:$0xff] %v905
          $region115: #{tpu_custom_call.1} parent=100 // pred_fallthru
            _
          %s908 = sadd.s32 %s698, 1
          %s909 = sld [smem:[#allocation6 + %s908]]
          %s910 = sld [smem:[#allocation10 + %s908]]
          %v911 = vld [vmem:[#allocation4] sm:$0xff]
          %v912 = vld [vmem:[#allocation4 + $0x8] sm:$0xff]
          %v913 = vpack.c.bf16 %v912, %v911
          %v914 = vld [vmem:[#allocation13] sm:$0xff]
          %v915 = vld [vmem:[#allocation13 + $0x8] sm:$0xff]
          %v916 = vld [vmem:[#allocation13 + $0x10] sm:$0xff]
          %v917 = vld [vmem:[#allocation13 + $0x18] sm:$0xff]
          %v918 = vld [vmem:[#allocation13 + $0x20] sm:$0xff]
          %v919 = vld [vmem:[#allocation13 + $0x28] sm:$0xff]
          %v920 = vld [vmem:[#allocation13 + $0x30] sm:$0xff]
          %v921 = vld [vmem:[#allocation13 + $0x38] sm:$0xff]
          %v922 = vld [vmem:[#allocation13 + $0x40] sm:$0xff]
          %v923 = vld [vmem:[#allocation13 + $0x48] sm:$0xff]
          %v924 = vld [vmem:[#allocation13 + $0x50] sm:$0xff]
          %v925 = vld [vmem:[#allocation13 + $0x58] sm:$0xff]
          %v926 = vld [vmem:[#allocation13 + $0x60] sm:$0xff]
          %v927 = vld [vmem:[#allocation13 + $0x68] sm:$0xff]
          %v928 = vld [vmem:[#allocation13 + $0x70] sm:$0xff]
          %v929 = vld [vmem:[#allocation13 + $0x78] sm:$0xff]
          %v930 = vld [vmem:[%s8] sm:$0x3]
          %v932 = vlaneseq
          %v933 = vshrl.u32 %v932, 7
          %v934 = vsub.s32 0, %v933
          %v935 = vrot.slane %v930, %v934
          %v936 = vlaneseq
          %v937 = vshrl.u32 %v936, 7
          %v938 = vsub.s32 1, %v937
          %v939 = vrot.slane %v930, %v938
          %v958 = vunpack.c.l.b16 %v914
          %v959 = vunpack.c.h.b16 %v914
          %v960 = vunpack.c.l.b16 %v915
          %v961 = vunpack.c.h.b16 %v915
          %v962 = vunpack.c.l.b16 %v916
          %v963 = vunpack.c.h.b16 %v916
          %v964 = vunpack.c.l.b16 %v917
          %v965 = vunpack.c.h.b16 %v917
          %v966 = vunpack.c.l.b16 %v918
          %v967 = vunpack.c.h.b16 %v918
          %v968 = vunpack.c.l.b16 %v919
          %v969 = vunpack.c.h.b16 %v919
          %v970 = vunpack.c.l.b16 %v920
          %v971 = vunpack.c.h.b16 %v920
          %v972 = vunpack.c.l.b16 %v921
          %v973 = vunpack.c.h.b16 %v921
          %v974 = vunpack.c.l.b16 %v922
          %v975 = vunpack.c.h.b16 %v922
          %v976 = vunpack.c.l.b16 %v923
          %v977 = vunpack.c.h.b16 %v923
          %v978 = vunpack.c.l.b16 %v924
          %v979 = vunpack.c.h.b16 %v924
          %v980 = vunpack.c.l.b16 %v925
          %v981 = vunpack.c.h.b16 %v925
          %v982 = vunpack.c.l.b16 %v926
          %v983 = vunpack.c.h.b16 %v926
          %v984 = vunpack.c.l.b16 %v927
          %v985 = vunpack.c.h.b16 %v927
          %v986 = vunpack.c.l.b16 %v928
          %v987 = vunpack.c.h.b16 %v928
          %v988 = vunpack.c.l.b16 %v929
          %v989 = vunpack.c.h.b16 %v929
          %v990 = vpack.c.b16 %v960, %v958
          %v991 = vpack.c.b16 %v961, %v959
          %v992 = vpack.c.b16 %v964, %v962
          %v993 = vpack.c.b16 %v965, %v963
          %v994 = vpack.c.b16 %v968, %v966
          %v995 = vpack.c.b16 %v969, %v967
          %v996 = vpack.c.b16 %v972, %v970
          %v997 = vpack.c.b16 %v973, %v971
          %v998 = vpack.c.b16 %v976, %v974
          %v999 = vpack.c.b16 %v977, %v975
          %v1000 = vpack.c.b16 %v980, %v978
          %v1001 = vpack.c.b16 %v981, %v979
          %v1002 = vpack.c.b16 %v984, %v982
          %v1003 = vpack.c.b16 %v985, %v983
          %v1004 = vpack.c.b16 %v988, %v986
          %v1005 = vpack.c.b16 %v989, %v987
          %1022 = vmatprep.subr.bf16.mxu0 %v1005
          %1023 = vmatpush1.bf16.msra.mxu0 %v1004
          %1024 = vmatprep.subr.bf16.mxu0 %v1003
          %1025 = vmatpush1.bf16.msra.mxu0 %v1002
          %1026 = vmatprep.subr.bf16.mxu0 %v1001
          %1027 = vmatpush1.bf16.msra.mxu0 %v1000
          %1028 = vmatprep.subr.bf16.mxu0 %v999
          %1029 = vmatpush1.bf16.msra.mxu0 %v998
          %1030 = vmatprep.subr.bf16.mxu0 %v997
          %1031 = vmatpush1.bf16.msra.mxu0 %v996
          %1032 = vmatprep.subr.bf16.mxu0 %v995
          %1033 = vmatpush1.bf16.msra.mxu0 %v994
          %1034 = vmatprep.subr.bf16.mxu0 %v993
          %1035 = vmatpush1.bf16.msra.mxu0 %v992
          %1036 = vmatprep.subr.bf16.mxu0 %v991
          %1037 = vmatpush1.bf16.msra.mxu0 %v990
          %1038 = vmatprep.subr.bf16.mxu0 0
          %1039 = vmatpush2.bf16.msra.mxu0 0
          %1040 = vmatprep.subr.bf16.mxu0 0
          %1041 = vmatpush2.bf16.msra.mxu0 0
          %1042 = vmatprep.subr.bf16.mxu0 0
          %1043 = vmatpush2.bf16.msra.mxu0 0
          %1044 = vmatprep.subr.bf16.mxu0 0
          %1045 = vmatpush2.bf16.msra.mxu0 0
          %1046 = vmatprep.subr.bf16.mxu0 0
          %1047 = vmatpush2.bf16.msra.mxu0 0
          %1048 = vmatprep.subr.bf16.mxu0 0
          %1049 = vmatpush2.bf16.msra.mxu0 0
          %1050 = vmatprep.subr.bf16.mxu0 0
          %1051 = vmatpush2.bf16.msra.mxu0 0
          %1052 = vmatprep.subr.bf16.mxu0 0
          %1053 = vmatpush2.bf16.msra.mxu0 0
          %1054 = vmatprep.mubr.bf16.mxu0 0
          %1055 = vmatmul.mubr.bf16.gmra.mxu0 %v913
          %v1056 = vpop.f32.mrf.mxu0
          %v1057 = vadd.f32 %v935, %v1056
          %v1058 = vpop.f32.mrf.mxu0
          %v1059 = vadd.f32 %v939, %v1058
          %v1060 = vpop.f32.mrf.mxu0
          %v1061 = vadd.f32 %v935, %v1060
          %v1062 = vpop.f32.mrf.mxu0
          %v1063 = vadd.f32 %v939, %v1062
          %1064 = vdwg.mxu0
          %v1065 = vtanh.pop %v1057
          %v1066 = vtanh.pop %v1061
          %v1067 = vmul.f32 %v1059, 0.5
          %v1068 = vmul.f32 %v1063, 0.5
          %v1069 = vtanh.pop %v1067
          %v1070 = vtanh.pop %v1068
          %v1071 = vmul.f32 %v1069, 0.5
          %v1072 = vmul.f32 %v1070, 0.5
          %v1073 = vadd.f32 %v1071, 0.5
          %v1074 = vadd.f32 %v1072, 0.5
          %s1075 = sadd.s32 %s665, 1
          %s1076 = smul.u32 %s1075, 2
          %s1077 = smul.addr %s1076, 4
          %s1078 = scalar_lea.vmem [#allocation2], %s1077
          %v1079 = vld [vmem:[%s1078] sm:$0xf]
          %v1080 = vld [vmem:[%s1078 + $0x4] sm:$0xf]
          %v1081 = vunpack.c.l.bf16 %v1079
          %v1082 = vunpack.c.l.bf16 %v1080
          %v1083 = vstv %s909
          %v1084 = vmul.f32 %v1065, %v1083
          %v1085 = vmul.f32 %v1066, %v1083
          %v1086 = vadd.f32 %v911, %v1084
          %v1087 = vadd.f32 %v912, %v1085
          %v1088 = vmul.f32 %v1073, %v1081
          %v1089 = vmul.f32 %v1074, %v1082
          %v1090 = vadd.f32 %v1086, %v1088
          %v1091 = vadd.f32 %v1087, %v1089
          %1092 = vst [vmem:[#allocation4] sm:$0xff] %v1090
          %1093 = vst [vmem:[#allocation4 + $0x8] sm:$0xff] %v1091
          %p1094 = scmp.ge.s32.totalorder %s910, 0
          // Predicated region
          $region116: #{tpu_custom_call.1} parent=100 // pred_check
            %p1095 = pneg %p1094
          $region117: #{tpu_custom_call.1} parent=100 // pred_check_branch
            %1097 = sbr.rel (%p1095) target = $region119
          $region118: #{tpu_custom_call.1} parent=100 // pred_region
            %v1098 = vld [vmem:[%s515] sm:$0xff]
            %v1099 = vld [vmem:[%s515 + $0x8] sm:$0xff]
            %v1100 = vstv %s910
            %vm1101 = vcmp.eq.s32.totalorder %v1098, %v1100
            %vm1102 = vcmp.eq.s32.totalorder %v1099, %v1100
            %v1103 = vld [vmem:[#allocation5] sm:$0xff]
            %v1104 = vld [vmem:[#allocation5 + $0x8] sm:$0xff]
            %v1105 = vsel %vm1101, 1, 0
            %v1106 = vsel %vm1102, 1, 0
            %1107 = vset.pattern.permute.xlu0 0
            %1108 = vperm.xlu0 %1107, %v1105
            %v1109 = vpop.permute.xlu0 %1108
            %1110 = vset.pattern.permute.xlu0 0
            %1111 = vperm.xlu0 %1110, %v1106
            %v1112 = vpop.permute.xlu0 %1111
            %vm1113 = vcmp.eq.s32.totalorder %v1109, 1
            %vm1114 = vcmp.eq.s32.totalorder %v1112, 1
            %v1115 = vsel %vm1113, %v1090, %v1103
            %v1116 = vsel %vm1114, %v1091, %v1104
            %1117 = vst [vmem:[#allocation5] sm:$0xff] %v1115
            %1118 = vst [vmem:[#allocation5 + $0x8] sm:$0xff] %v1116
          $region119: #{tpu_custom_call.1} parent=100 // pred_fallthru
            _
          %s1119 = sadd.s32 %s698, 2
          %s1120 = sld [smem:[#allocation6 + %s1119]]
          %s1121 = sld [smem:[#allocation10 + %s1119]]
          %v1122 = vld [vmem:[#allocation4] sm:$0xff]
          %v1123 = vld [vmem:[#allocation4 + $0x8] sm:$0xff]
          %v1124 = vpack.c.bf16 %v1123, %v1122
          %v1125 = vld [vmem:[#allocation13] sm:$0xff]
          %v1126 = vld [vmem:[#allocation13 + $0x8] sm:$0xff]
          %v1127 = vld [vmem:[#allocation13 + $0x10] sm:$0xff]
          %v1128 = vld [vmem:[#allocation13 + $0x18] sm:$0xff]
          %v1129 = vld [vmem:[#allocation13 + $0x20] sm:$0xff]
          %v1130 = vld [vmem:[#allocation13 + $0x28] sm:$0xff]
          %v1131 = vld [vmem:[#allocation13 + $0x30] sm:$0xff]
          %v1132 = vld [vmem:[#allocation13 + $0x38] sm:$0xff]
          %v1133 = vld [vmem:[#allocation13 + $0x40] sm:$0xff]
          %v1134 = vld [vmem:[#allocation13 + $0x48] sm:$0xff]
          %v1135 = vld [vmem:[#allocation13 + $0x50] sm:$0xff]
          %v1136 = vld [vmem:[#allocation13 + $0x58] sm:$0xff]
          %v1137 = vld [vmem:[#allocation13 + $0x60] sm:$0xff]
          %v1138 = vld [vmem:[#allocation13 + $0x68] sm:$0xff]
          %v1139 = vld [vmem:[#allocation13 + $0x70] sm:$0xff]
          %v1140 = vld [vmem:[#allocation13 + $0x78] sm:$0xff]
          %v1141 = vld [vmem:[%s8] sm:$0x3]
          %v1143 = vlaneseq
          %v1144 = vshrl.u32 %v1143, 7
          %v1145 = vsub.s32 0, %v1144
          %v1146 = vrot.slane %v1141, %v1145
          %v1147 = vlaneseq
          %v1148 = vshrl.u32 %v1147, 7
          %v1149 = vsub.s32 1, %v1148
          %v1150 = vrot.slane %v1141, %v1149
          %v1169 = vunpack.c.l.b16 %v1125
          %v1170 = vunpack.c.h.b16 %v1125
          %v1171 = vunpack.c.l.b16 %v1126
          %v1172 = vunpack.c.h.b16 %v1126
          %v1173 = vunpack.c.l.b16 %v1127
          %v1174 = vunpack.c.h.b16 %v1127
          %v1175 = vunpack.c.l.b16 %v1128
          %v1176 = vunpack.c.h.b16 %v1128
          %v1177 = vunpack.c.l.b16 %v1129
          %v1178 = vunpack.c.h.b16 %v1129
          %v1179 = vunpack.c.l.b16 %v1130
          %v1180 = vunpack.c.h.b16 %v1130
          %v1181 = vunpack.c.l.b16 %v1131
          %v1182 = vunpack.c.h.b16 %v1131
          %v1183 = vunpack.c.l.b16 %v1132
          %v1184 = vunpack.c.h.b16 %v1132
          %v1185 = vunpack.c.l.b16 %v1133
          %v1186 = vunpack.c.h.b16 %v1133
          %v1187 = vunpack.c.l.b16 %v1134
          %v1188 = vunpack.c.h.b16 %v1134
          %v1189 = vunpack.c.l.b16 %v1135
          %v1190 = vunpack.c.h.b16 %v1135
          %v1191 = vunpack.c.l.b16 %v1136
          %v1192 = vunpack.c.h.b16 %v1136
          %v1193 = vunpack.c.l.b16 %v1137
          %v1194 = vunpack.c.h.b16 %v1137
          %v1195 = vunpack.c.l.b16 %v1138
          %v1196 = vunpack.c.h.b16 %v1138
          %v1197 = vunpack.c.l.b16 %v1139
          %v1198 = vunpack.c.h.b16 %v1139
          %v1199 = vunpack.c.l.b16 %v1140
          %v1200 = vunpack.c.h.b16 %v1140
          %v1201 = vpack.c.b16 %v1171, %v1169
          %v1202 = vpack.c.b16 %v1172, %v1170
          %v1203 = vpack.c.b16 %v1175, %v1173
          %v1204 = vpack.c.b16 %v1176, %v1174
          %v1205 = vpack.c.b16 %v1179, %v1177
          %v1206 = vpack.c.b16 %v1180, %v1178
          %v1207 = vpack.c.b16 %v1183, %v1181
          %v1208 = vpack.c.b16 %v1184, %v1182
          %v1209 = vpack.c.b16 %v1187, %v1185
          %v1210 = vpack.c.b16 %v1188, %v1186
          %v1211 = vpack.c.b16 %v1191, %v1189
          %v1212 = vpack.c.b16 %v1192, %v1190
          %v1213 = vpack.c.b16 %v1195, %v1193
          %v1214 = vpack.c.b16 %v1196, %v1194
          %v1215 = vpack.c.b16 %v1199, %v1197
          %v1216 = vpack.c.b16 %v1200, %v1198
          %1233 = vmatprep.subr.bf16.mxu0 %v1216
          %1234 = vmatpush1.bf16.msra.mxu0 %v1215
          %1235 = vmatprep.subr.bf16.mxu0 %v1214
          %1236 = vmatpush1.bf16.msra.mxu0 %v1213
          %1237 = vmatprep.subr.bf16.mxu0 %v1212
          %1238 = vmatpush1.bf16.msra.mxu0 %v1211
          %1239 = vmatprep.subr.bf16.mxu0 %v1210
          %1240 = vmatpush1.bf16.msra.mxu0 %v1209
          %1241 = vmatprep.subr.bf16.mxu0 %v1208
          %1242 = vmatpush1.bf16.msra.mxu0 %v1207
          %1243 = vmatprep.subr.bf16.mxu0 %v1206
          %1244 = vmatpush1.bf16.msra.mxu0 %v1205
          %1245 = vmatprep.subr.bf16.mxu0 %v1204
          %1246 = vmatpush1.bf16.msra.mxu0 %v1203
          %1247 = vmatprep.subr.bf16.mxu0 %v1202
          %1248 = vmatpush1.bf16.msra.mxu0 %v1201
          %1249 = vmatprep.subr.bf16.mxu0 0
          %1250 = vmatpush2.bf16.msra.mxu0 0
          %1251 = vmatprep.subr.bf16.mxu0 0
          %1252 = vmatpush2.bf16.msra.mxu0 0
          %1253 = vmatprep.subr.bf16.mxu0 0
          %1254 = vmatpush2.bf16.msra.mxu0 0
          %1255 = vmatprep.subr.bf16.mxu0 0
          %1256 = vmatpush2.bf16.msra.mxu0 0
          %1257 = vmatprep.subr.bf16.mxu0 0
          %1258 = vmatpush2.bf16.msra.mxu0 0
          %1259 = vmatprep.subr.bf16.mxu0 0
          %1260 = vmatpush2.bf16.msra.mxu0 0
          %1261 = vmatprep.subr.bf16.mxu0 0
          %1262 = vmatpush2.bf16.msra.mxu0 0
          %1263 = vmatprep.subr.bf16.mxu0 0
          %1264 = vmatpush2.bf16.msra.mxu0 0
          %1265 = vmatprep.mubr.bf16.mxu0 0
          %1266 = vmatmul.mubr.bf16.gmra.mxu0 %v1124
          %v1267 = vpop.f32.mrf.mxu0
          %v1268 = vadd.f32 %v1146, %v1267
          %v1269 = vpop.f32.mrf.mxu0
          %v1270 = vadd.f32 %v1150, %v1269
          %v1271 = vpop.f32.mrf.mxu0
          %v1272 = vadd.f32 %v1146, %v1271
          %v1273 = vpop.f32.mrf.mxu0
          %v1274 = vadd.f32 %v1150, %v1273
          %1275 = vdwg.mxu0
          %v1276 = vtanh.pop %v1268
          %v1277 = vtanh.pop %v1272
          %v1278 = vmul.f32 %v1270, 0.5
          %v1279 = vmul.f32 %v1274, 0.5
          %v1280 = vtanh.pop %v1278
          %v1281 = vtanh.pop %v1279
          %v1282 = vmul.f32 %v1280, 0.5
          %v1283 = vmul.f32 %v1281, 0.5
          %v1284 = vadd.f32 %v1282, 0.5
          %v1285 = vadd.f32 %v1283, 0.5
          %s1286 = sadd.s32 %s665, 2
          %s1287 = smul.u32 %s1286, 2
          %s1288 = smul.addr %s1287, 4
          %s1289 = scalar_lea.vmem [#allocation2], %s1288
          %v1290 = vld [vmem:[%s1289] sm:$0xf]
          %v1291 = vld [vmem:[%s1289 + $0x4] sm:$0xf]
          %v1292 = vunpack.c.l.bf16 %v1290
          %v1293 = vunpack.c.l.bf16 %v1291
          %v1294 = vstv %s1120
          %v1295 = vmul.f32 %v1276, %v1294
          %v1296 = vmul.f32 %v1277, %v1294
          %v1297 = vadd.f32 %v1122, %v1295
          %v1298 = vadd.f32 %v1123, %v1296
          %v1299 = vmul.f32 %v1284, %v1292
          %v1300 = vmul.f32 %v1285, %v1293
          %v1301 = vadd.f32 %v1297, %v1299
          %v1302 = vadd.f32 %v1298, %v1300
          %1303 = vst [vmem:[#allocation4] sm:$0xff] %v1301
          %1304 = vst [vmem:[#allocation4 + $0x8] sm:$0xff] %v1302
          %p1305 = scmp.ge.s32.totalorder %s1121, 0
          // Predicated region
          $region120: #{tpu_custom_call.1} parent=100 // pred_check
            %p1306 = pneg %p1305
          $region121: #{tpu_custom_call.1} parent=100 // pred_check_branch
            %1308 = sbr.rel (%p1306) target = $region123
          $region122: #{tpu_custom_call.1} parent=100 // pred_region
            %v1309 = vld [vmem:[%s515] sm:$0xff]
            %v1310 = vld [vmem:[%s515 + $0x8] sm:$0xff]
            %v1311 = vstv %s1121
            %vm1312 = vcmp.eq.s32.totalorder %v1309, %v1311
            %vm1313 = vcmp.eq.s32.totalorder %v1310, %v1311
            %v1314 = vld [vmem:[#allocation5] sm:$0xff]
            %v1315 = vld [vmem:[#allocation5 + $0x8] sm:$0xff]
            %v1316 = vsel %vm1312, 1, 0
            %v1317 = vsel %vm1313, 1, 0
            %1318 = vset.pattern.permute.xlu0 0
            %1319 = vperm.xlu0 %1318, %v1316
            %v1320 = vpop.permute.xlu0 %1319
            %1321 = vset.pattern.permute.xlu0 0
            %1322 = vperm.xlu0 %1321, %v1317
            %v1323 = vpop.permute.xlu0 %1322
            %vm1324 = vcmp.eq.s32.totalorder %v1320, 1
            %vm1325 = vcmp.eq.s32.totalorder %v1323, 1
            %v1326 = vsel %vm1324, %v1301, %v1314
            %v1327 = vsel %vm1325, %v1302, %v1315
            %1328 = vst [vmem:[#allocation5] sm:$0xff] %v1326
            %1329 = vst [vmem:[#allocation5 + $0x8] sm:$0xff] %v1327
          $region123: #{tpu_custom_call.1} parent=100 // pred_fallthru
            _
          %s1330 = sadd.s32 %s698, 3
          %s1331 = sld [smem:[#allocation6 + %s1330]]
          %s1332 = sld [smem:[#allocation10 + %s1330]]
          %v1333 = vld [vmem:[#allocation4] sm:$0xff]
          %v1334 = vld [vmem:[#allocation4 + $0x8] sm:$0xff]
          %v1335 = vpack.c.bf16 %v1334, %v1333
          %v1336 = vld [vmem:[#allocation13] sm:$0xff]
          %v1337 = vld [vmem:[#allocation13 + $0x8] sm:$0xff]
          %v1338 = vld [vmem:[#allocation13 + $0x10] sm:$0xff]
          %v1339 = vld [vmem:[#allocation13 + $0x18] sm:$0xff]
          %v1340 = vld [vmem:[#allocation13 + $0x20] sm:$0xff]
          %v1341 = vld [vmem:[#allocation13 + $0x28] sm:$0xff]
          %v1342 = vld [vmem:[#allocation13 + $0x30] sm:$0xff]
          %v1343 = vld [vmem:[#allocation13 + $0x38] sm:$0xff]
          %v1344 = vld [vmem:[#allocation13 + $0x40] sm:$0xff]
          %v1345 = vld [vmem:[#allocation13 + $0x48] sm:$0xff]
          %v1346 = vld [vmem:[#allocation13 + $0x50] sm:$0xff]
          %v1347 = vld [vmem:[#allocation13 + $0x58] sm:$0xff]
          %v1348 = vld [vmem:[#allocation13 + $0x60] sm:$0xff]
          %v1349 = vld [vmem:[#allocation13 + $0x68] sm:$0xff]
          %v1350 = vld [vmem:[#allocation13 + $0x70] sm:$0xff]
          %v1351 = vld [vmem:[#allocation13 + $0x78] sm:$0xff]
          %v1352 = vld [vmem:[%s8] sm:$0x3]
          %v1354 = vlaneseq
          %v1355 = vshrl.u32 %v1354, 7
          %v1356 = vsub.s32 0, %v1355
          %v1357 = vrot.slane %v1352, %v1356
          %v1358 = vlaneseq
          %v1359 = vshrl.u32 %v1358, 7
          %v1360 = vsub.s32 1, %v1359
          %v1361 = vrot.slane %v1352, %v1360
          %v1380 = vunpack.c.l.b16 %v1336
          %v1381 = vunpack.c.h.b16 %v1336
          %v1382 = vunpack.c.l.b16 %v1337
          %v1383 = vunpack.c.h.b16 %v1337
          %v1384 = vunpack.c.l.b16 %v1338
          %v1385 = vunpack.c.h.b16 %v1338
          %v1386 = vunpack.c.l.b16 %v1339
          %v1387 = vunpack.c.h.b16 %v1339
          %v1388 = vunpack.c.l.b16 %v1340
          %v1389 = vunpack.c.h.b16 %v1340
          %v1390 = vunpack.c.l.b16 %v1341
          %v1391 = vunpack.c.h.b16 %v1341
          %v1392 = vunpack.c.l.b16 %v1342
          %v1393 = vunpack.c.h.b16 %v1342
          %v1394 = vunpack.c.l.b16 %v1343
          %v1395 = vunpack.c.h.b16 %v1343
          %v1396 = vunpack.c.l.b16 %v1344
          %v1397 = vunpack.c.h.b16 %v1344
          %v1398 = vunpack.c.l.b16 %v1345
          %v1399 = vunpack.c.h.b16 %v1345
          %v1400 = vunpack.c.l.b16 %v1346
          %v1401 = vunpack.c.h.b16 %v1346
          %v1402 = vunpack.c.l.b16 %v1347
          %v1403 = vunpack.c.h.b16 %v1347
          %v1404 = vunpack.c.l.b16 %v1348
          %v1405 = vunpack.c.h.b16 %v1348
          %v1406 = vunpack.c.l.b16 %v1349
          %v1407 = vunpack.c.h.b16 %v1349
          %v1408 = vunpack.c.l.b16 %v1350
          %v1409 = vunpack.c.h.b16 %v1350
          %v1410 = vunpack.c.l.b16 %v1351
          %v1411 = vunpack.c.h.b16 %v1351
          %v1412 = vpack.c.b16 %v1382, %v1380
          %v1413 = vpack.c.b16 %v1383, %v1381
          %v1414 = vpack.c.b16 %v1386, %v1384
          %v1415 = vpack.c.b16 %v1387, %v1385
          %v1416 = vpack.c.b16 %v1390, %v1388
          %v1417 = vpack.c.b16 %v1391, %v1389
          %v1418 = vpack.c.b16 %v1394, %v1392
          %v1419 = vpack.c.b16 %v1395, %v1393
          %v1420 = vpack.c.b16 %v1398, %v1396
          %v1421 = vpack.c.b16 %v1399, %v1397
          %v1422 = vpack.c.b16 %v1402, %v1400
          %v1423 = vpack.c.b16 %v1403, %v1401
          %v1424 = vpack.c.b16 %v1406, %v1404
          %v1425 = vpack.c.b16 %v1407, %v1405
          %v1426 = vpack.c.b16 %v1410, %v1408
          %v1427 = vpack.c.b16 %v1411, %v1409
          %1444 = vmatprep.subr.bf16.mxu0 %v1427
          %1445 = vmatpush1.bf16.msra.mxu0 %v1426
          %1446 = vmatprep.subr.bf16.mxu0 %v1425
          %1447 = vmatpush1.bf16.msra.mxu0 %v1424
          %1448 = vmatprep.subr.bf16.mxu0 %v1423
          %1449 = vmatpush1.bf16.msra.mxu0 %v1422
          %1450 = vmatprep.subr.bf16.mxu0 %v1421
          %1451 = vmatpush1.bf16.msra.mxu0 %v1420
          %1452 = vmatprep.subr.bf16.mxu0 %v1419
          %1453 = vmatpush1.bf16.msra.mxu0 %v1418
          %1454 = vmatprep.subr.bf16.mxu0 %v1417
          %1455 = vmatpush1.bf16.msra.mxu0 %v1416
          %1456 = vmatprep.subr.bf16.mxu0 %v1415
          %1457 = vmatpush1.bf16.msra.mxu0 %v1414
          %1458 = vmatprep.subr.bf16.mxu0 %v1413
          %1459 = vmatpush1.bf16.msra.mxu0 %v1412
          %1460 = vmatprep.subr.bf16.mxu0 0
          %1461 = vmatpush2.bf16.msra.mxu0 0
          %1462 = vmatprep.subr.bf16.mxu0 0
          %1463 = vmatpush2.bf16.msra.mxu0 0
          %1464 = vmatprep.subr.bf16.mxu0 0
          %1465 = vmatpush2.bf16.msra.mxu0 0
          %1466 = vmatprep.subr.bf16.mxu0 0
          %1467 = vmatpush2.bf16.msra.mxu0 0
          %1468 = vmatprep.subr.bf16.mxu0 0
          %1469 = vmatpush2.bf16.msra.mxu0 0
          %1470 = vmatprep.subr.bf16.mxu0 0
          %1471 = vmatpush2.bf16.msra.mxu0 0
          %1472 = vmatprep.subr.bf16.mxu0 0
          %1473 = vmatpush2.bf16.msra.mxu0 0
          %1474 = vmatprep.subr.bf16.mxu0 0
          %1475 = vmatpush2.bf16.msra.mxu0 0
          %1476 = vmatprep.mubr.bf16.mxu0 0
          %1477 = vmatmul.mubr.bf16.gmra.mxu0 %v1335
          %v1478 = vpop.f32.mrf.mxu0
          %v1479 = vadd.f32 %v1357, %v1478
          %v1480 = vpop.f32.mrf.mxu0
          %v1481 = vadd.f32 %v1361, %v1480
          %v1482 = vpop.f32.mrf.mxu0
          %v1483 = vadd.f32 %v1357, %v1482
          %v1484 = vpop.f32.mrf.mxu0
          %v1485 = vadd.f32 %v1361, %v1484
          %1486 = vdwg.mxu0
          %v1487 = vtanh.pop %v1479
          %v1488 = vtanh.pop %v1483
          %v1489 = vmul.f32 %v1481, 0.5
          %v1490 = vmul.f32 %v1485, 0.5
          %v1491 = vtanh.pop %v1489
          %v1492 = vtanh.pop %v1490
          %v1493 = vmul.f32 %v1491, 0.5
          %v1494 = vmul.f32 %v1492, 0.5
          %v1495 = vadd.f32 %v1493, 0.5
          %v1496 = vadd.f32 %v1494, 0.5
          %s1497 = sadd.s32 %s665, 3
          %s1498 = smul.u32 %s1497, 2
          %s1499 = smul.addr %s1498, 4
          %s1500 = scalar_lea.vmem [#allocation2], %s1499
          %v1501 = vld [vmem:[%s1500] sm:$0xf]
          %v1502 = vld [vmem:[%s1500 + $0x4] sm:$0xf]
          %v1503 = vunpack.c.l.bf16 %v1501
          %v1504 = vunpack.c.l.bf16 %v1502
          %v1505 = vstv %s1331
          %v1506 = vmul.f32 %v1487, %v1505
          %v1507 = vmul.f32 %v1488, %v1505
          %v1508 = vadd.f32 %v1333, %v1506
          %v1509 = vadd.f32 %v1334, %v1507
          %v1510 = vmul.f32 %v1495, %v1503
          %v1511 = vmul.f32 %v1496, %v1504
          %v1512 = vadd.f32 %v1508, %v1510
          %v1513 = vadd.f32 %v1509, %v1511
          %1514 = vst [vmem:[#allocation4] sm:$0xff] %v1512
          %1515 = vst [vmem:[#allocation4 + $0x8] sm:$0xff] %v1513
          %p1516 = scmp.ge.s32.totalorder %s1332, 0
          // Predicated region
          $region124: #{tpu_custom_call.1} parent=100 // pred_check
            %p1517 = pneg %p1516
          $region125: #{tpu_custom_call.1} parent=100 // pred_check_branch
            %1519 = sbr.rel (%p1517) target = $region127
          $region126: #{tpu_custom_call.1} parent=100 // pred_region
            %v1520 = vld [vmem:[%s515] sm:$0xff]
            %v1521 = vld [vmem:[%s515 + $0x8] sm:$0xff]
            %v1522 = vstv %s1332
            %vm1523 = vcmp.eq.s32.totalorder %v1520, %v1522
            %vm1524 = vcmp.eq.s32.totalorder %v1521, %v1522
            %v1525 = vld [vmem:[#allocation5] sm:$0xff]
            %v1526 = vld [vmem:[#allocation5 + $0x8] sm:$0xff]
            %v1527 = vsel %vm1523, 1, 0
            %v1528 = vsel %vm1524, 1, 0
            %1529 = vset.pattern.permute.xlu0 0
            %1530 = vperm.xlu0 %1529, %v1527
            %v1531 = vpop.permute.xlu0 %1530
            %1532 = vset.pattern.permute.xlu0 0
            %1533 = vperm.xlu0 %1532, %v1528
            %v1534 = vpop.permute.xlu0 %1533
            %vm1535 = vcmp.eq.s32.totalorder %v1531, 1
            %vm1536 = vcmp.eq.s32.totalorder %v1534, 1
            %v1537 = vsel %vm1535, %v1512, %v1525
            %v1538 = vsel %vm1536, %v1513, %v1526
            %1539 = vst [vmem:[#allocation5] sm:$0xff] %v1537
            %1540 = vst [vmem:[#allocation5 + $0x8] sm:$0xff] %v1538
          $region127: #{tpu_custom_call.1} parent=100 // pred_fallthru
            _
          %s1541 = sadd.s32 %s698, 4
          %s1542 = sld [smem:[#allocation6 + %s1541]]
          %s1543 = sld [smem:[#allocation10 + %s1541]]
          %v1544 = vld [vmem:[#allocation4] sm:$0xff]
          %v1545 = vld [vmem:[#allocation4 + $0x8] sm:$0xff]
          %v1546 = vpack.c.bf16 %v1545, %v1544
          %v1547 = vld [vmem:[#allocation13] sm:$0xff]
          %v1548 = vld [vmem:[#allocation13 + $0x8] sm:$0xff]
          %v1549 = vld [vmem:[#allocation13 + $0x10] sm:$0xff]
          %v1550 = vld [vmem:[#allocation13 + $0x18] sm:$0xff]
          %v1551 = vld [vmem:[#allocation13 + $0x20] sm:$0xff]
          %v1552 = vld [vmem:[#allocation13 + $0x28] sm:$0xff]
          %v1553 = vld [vmem:[#allocation13 + $0x30] sm:$0xff]
          %v1554 = vld [vmem:[#allocation13 + $0x38] sm:$0xff]
          %v1555 = vld [vmem:[#allocation13 + $0x40] sm:$0xff]
          %v1556 = vld [vmem:[#allocation13 + $0x48] sm:$0xff]
          %v1557 = vld [vmem:[#allocation13 + $0x50] sm:$0xff]
          %v1558 = vld [vmem:[#allocation13 + $0x58] sm:$0xff]
          %v1559 = vld [vmem:[#allocation13 + $0x60] sm:$0xff]
          %v1560 = vld [vmem:[#allocation13 + $0x68] sm:$0xff]
          %v1561 = vld [vmem:[#allocation13 + $0x70] sm:$0xff]
          %v1562 = vld [vmem:[#allocation13 + $0x78] sm:$0xff]
          %v1563 = vld [vmem:[%s8] sm:$0x3]
          %v1565 = vlaneseq
          %v1566 = vshrl.u32 %v1565, 7
          %v1567 = vsub.s32 0, %v1566
          %v1568 = vrot.slane %v1563, %v1567
          %v1569 = vlaneseq
          %v1570 = vshrl.u32 %v1569, 7
          %v1571 = vsub.s32 1, %v1570
          %v1572 = vrot.slane %v1563, %v1571
          %v1591 = vunpack.c.l.b16 %v1547
          %v1592 = vunpack.c.h.b16 %v1547
          %v1593 = vunpack.c.l.b16 %v1548
          %v1594 = vunpack.c.h.b16 %v1548
          %v1595 = vunpack.c.l.b16 %v1549
          %v1596 = vunpack.c.h.b16 %v1549
          %v1597 = vunpack.c.l.b16 %v1550
          %v1598 = vunpack.c.h.b16 %v1550
          %v1599 = vunpack.c.l.b16 %v1551
          %v1600 = vunpack.c.h.b16 %v1551
          %v1601 = vunpack.c.l.b16 %v1552
          %v1602 = vunpack.c.h.b16 %v1552
          %v1603 = vunpack.c.l.b16 %v1553
          %v1604 = vunpack.c.h.b16 %v1553
          %v1605 = vunpack.c.l.b16 %v1554
          %v1606 = vunpack.c.h.b16 %v1554
          %v1607 = vunpack.c.l.b16 %v1555
          %v1608 = vunpack.c.h.b16 %v1555
          %v1609 = vunpack.c.l.b16 %v1556
          %v1610 = vunpack.c.h.b16 %v1556
          %v1611 = vunpack.c.l.b16 %v1557
          %v1612 = vunpack.c.h.b16 %v1557
          %v1613 = vunpack.c.l.b16 %v1558
          %v1614 = vunpack.c.h.b16 %v1558
          %v1615 = vunpack.c.l.b16 %v1559
          %v1616 = vunpack.c.h.b16 %v1559
          %v1617 = vunpack.c.l.b16 %v1560
          %v1618 = vunpack.c.h.b16 %v1560
          %v1619 = vunpack.c.l.b16 %v1561
          %v1620 = vunpack.c.h.b16 %v1561
          %v1621 = vunpack.c.l.b16 %v1562
          %v1622 = vunpack.c.h.b16 %v1562
          %v1623 = vpack.c.b16 %v1593, %v1591
          %v1624 = vpack.c.b16 %v1594, %v1592
          %v1625 = vpack.c.b16 %v1597, %v1595
          %v1626 = vpack.c.b16 %v1598, %v1596
          %v1627 = vpack.c.b16 %v1601, %v1599
          %v1628 = vpack.c.b16 %v1602, %v1600
          %v1629 = vpack.c.b16 %v1605, %v1603
          %v1630 = vpack.c.b16 %v1606, %v1604
          %v1631 = vpack.c.b16 %v1609, %v1607
          %v1632 = vpack.c.b16 %v1610, %v1608
          %v1633 = vpack.c.b16 %v1613, %v1611
          %v1634 = vpack.c.b16 %v1614, %v1612
          %v1635 = vpack.c.b16 %v1617, %v1615
          %v1636 = vpack.c.b16 %v1618, %v1616
          %v1637 = vpack.c.b16 %v1621, %v1619
          %v1638 = vpack.c.b16 %v1622, %v1620
          %1655 = vmatprep.subr.bf16.mxu0 %v1638
          %1656 = vmatpush1.bf16.msra.mxu0 %v1637
          %1657 = vmatprep.subr.bf16.mxu0 %v1636
          %1658 = vmatpush1.bf16.msra.mxu0 %v1635
          %1659 = vmatprep.subr.bf16.mxu0 %v1634
          %1660 = vmatpush1.bf16.msra.mxu0 %v1633
          %1661 = vmatprep.subr.bf16.mxu0 %v1632
          %1662 = vmatpush1.bf16.msra.mxu0 %v1631
          %1663 = vmatprep.subr.bf16.mxu0 %v1630
          %1664 = vmatpush1.bf16.msra.mxu0 %v1629
          %1665 = vmatprep.subr.bf16.mxu0 %v1628
          %1666 = vmatpush1.bf16.msra.mxu0 %v1627
          %1667 = vmatprep.subr.bf16.mxu0 %v1626
          %1668 = vmatpush1.bf16.msra.mxu0 %v1625
          %1669 = vmatprep.subr.bf16.mxu0 %v1624
          %1670 = vmatpush1.bf16.msra.mxu0 %v1623
          %1671 = vmatprep.subr.bf16.mxu0 0
          %1672 = vmatpush2.bf16.msra.mxu0 0
          %1673 = vmatprep.subr.bf16.mxu0 0
          %1674 = vmatpush2.bf16.msra.mxu0 0
          %1675 = vmatprep.subr.bf16.mxu0 0
          %1676 = vmatpush2.bf16.msra.mxu0 0
          %1677 = vmatprep.subr.bf16.mxu0 0
          %1678 = vmatpush2.bf16.msra.mxu0 0
          %1679 = vmatprep.subr.bf16.mxu0 0
          %1680 = vmatpush2.bf16.msra.mxu0 0
          %1681 = vmatprep.subr.bf16.mxu0 0
          %1682 = vmatpush2.bf16.msra.mxu0 0
          %1683 = vmatprep.subr.bf16.mxu0 0
          %1684 = vmatpush2.bf16.msra.mxu0 0
          %1685 = vmatprep.subr.bf16.mxu0 0
          %1686 = vmatpush2.bf16.msra.mxu0 0
          %1687 = vmatprep.mubr.bf16.mxu0 0
          %1688 = vmatmul.mubr.bf16.gmra.mxu0 %v1546
          %v1689 = vpop.f32.mrf.mxu0
          %v1690 = vadd.f32 %v1568, %v1689
          %v1691 = vpop.f32.mrf.mxu0
          %v1692 = vadd.f32 %v1572, %v1691
          %v1693 = vpop.f32.mrf.mxu0
          %v1694 = vadd.f32 %v1568, %v1693
          %v1695 = vpop.f32.mrf.mxu0
          %v1696 = vadd.f32 %v1572, %v1695
          %1697 = vdwg.mxu0
          %v1698 = vtanh.pop %v1690
          %v1699 = vtanh.pop %v1694
          %v1700 = vmul.f32 %v1692, 0.5
          %v1701 = vmul.f32 %v1696, 0.5
          %v1702 = vtanh.pop %v1700
          %v1703 = vtanh.pop %v1701
          %v1704 = vmul.f32 %v1702, 0.5
          %v1705 = vmul.f32 %v1703, 0.5
          %v1706 = vadd.f32 %v1704, 0.5
          %v1707 = vadd.f32 %v1705, 0.5
          %s1708 = sadd.s32 %s665, 4
          %s1709 = smul.u32 %s1708, 2
          %s1710 = smul.addr %s1709, 4
          %s1711 = scalar_lea.vmem [#allocation2], %s1710
          %v1712 = vld [vmem:[%s1711] sm:$0xf]
          %v1713 = vld [vmem:[%s1711 + $0x4] sm:$0xf]
          %v1714 = vunpack.c.l.bf16 %v1712
          %v1715 = vunpack.c.l.bf16 %v1713
          %v1716 = vstv %s1542
          %v1717 = vmul.f32 %v1698, %v1716
          %v1718 = vmul.f32 %v1699, %v1716
          %v1719 = vadd.f32 %v1544, %v1717
          %v1720 = vadd.f32 %v1545, %v1718
          %v1721 = vmul.f32 %v1706, %v1714
          %v1722 = vmul.f32 %v1707, %v1715
          %v1723 = vadd.f32 %v1719, %v1721
          %v1724 = vadd.f32 %v1720, %v1722
          %1725 = vst [vmem:[#allocation4] sm:$0xff] %v1723
          %1726 = vst [vmem:[#allocation4 + $0x8] sm:$0xff] %v1724
          %p1727 = scmp.ge.s32.totalorder %s1543, 0
          // Predicated region
          $region128: #{tpu_custom_call.1} parent=100 // pred_check
            %p1728 = pneg %p1727
          $region129: #{tpu_custom_call.1} parent=100 // pred_check_branch
            %1730 = sbr.rel (%p1728) target = $region131
          $region130: #{tpu_custom_call.1} parent=100 // pred_region
            %v1731 = vld [vmem:[%s515] sm:$0xff]
            %v1732 = vld [vmem:[%s515 + $0x8] sm:$0xff]
            %v1733 = vstv %s1543
            %vm1734 = vcmp.eq.s32.totalorder %v1731, %v1733
            %vm1735 = vcmp.eq.s32.totalorder %v1732, %v1733
            %v1736 = vld [vmem:[#allocation5] sm:$0xff]
            %v1737 = vld [vmem:[#allocation5 + $0x8] sm:$0xff]
            %v1738 = vsel %vm1734, 1, 0
            %v1739 = vsel %vm1735, 1, 0
            %1740 = vset.pattern.permute.xlu0 0
            %1741 = vperm.xlu0 %1740, %v1738
            %v1742 = vpop.permute.xlu0 %1741
            %1743 = vset.pattern.permute.xlu0 0
            %1744 = vperm.xlu0 %1743, %v1739
            %v1745 = vpop.permute.xlu0 %1744
            %vm1746 = vcmp.eq.s32.totalorder %v1742, 1
            %vm1747 = vcmp.eq.s32.totalorder %v1745, 1
            %v1748 = vsel %vm1746, %v1723, %v1736
            %v1749 = vsel %vm1747, %v1724, %v1737
            %1750 = vst [vmem:[#allocation5] sm:$0xff] %v1748
            %1751 = vst [vmem:[#allocation5 + $0x8] sm:$0xff] %v1749
          $region131: #{tpu_custom_call.1} parent=100 // pred_fallthru
            _
          %s1752 = sadd.s32 %s698, 5
          %s1753 = sld [smem:[#allocation6 + %s1752]]
          %s1754 = sld [smem:[#allocation10 + %s1752]]
          %v1755 = vld [vmem:[#allocation4] sm:$0xff]
          %v1756 = vld [vmem:[#allocation4 + $0x8] sm:$0xff]
          %v1757 = vpack.c.bf16 %v1756, %v1755
          %v1758 = vld [vmem:[#allocation13] sm:$0xff]
          %v1759 = vld [vmem:[#allocation13 + $0x8] sm:$0xff]
          %v1760 = vld [vmem:[#allocation13 + $0x10] sm:$0xff]
          %v1761 = vld [vmem:[#allocation13 + $0x18] sm:$0xff]
          %v1762 = vld [vmem:[#allocation13 + $0x20] sm:$0xff]
          %v1763 = vld [vmem:[#allocation13 + $0x28] sm:$0xff]
          %v1764 = vld [vmem:[#allocation13 + $0x30] sm:$0xff]
          %v1765 = vld [vmem:[#allocation13 + $0x38] sm:$0xff]
          %v1766 = vld [vmem:[#allocation13 + $0x40] sm:$0xff]
          %v1767 = vld [vmem:[#allocation13 + $0x48] sm:$0xff]
          %v1768 = vld [vmem:[#allocation13 + $0x50] sm:$0xff]
          %v1769 = vld [vmem:[#allocation13 + $0x58] sm:$0xff]
          %v1770 = vld [vmem:[#allocation13 + $0x60] sm:$0xff]
          %v1771 = vld [vmem:[#allocation13 + $0x68] sm:$0xff]
          %v1772 = vld [vmem:[#allocation13 + $0x70] sm:$0xff]
          %v1773 = vld [vmem:[#allocation13 + $0x78] sm:$0xff]
          %v1774 = vld [vmem:[%s8] sm:$0x3]
          %v1776 = vlaneseq
          %v1777 = vshrl.u32 %v1776, 7
          %v1778 = vsub.s32 0, %v1777
          %v1779 = vrot.slane %v1774, %v1778
          %v1780 = vlaneseq
          %v1781 = vshrl.u32 %v1780, 7
          %v1782 = vsub.s32 1, %v1781
          %v1783 = vrot.slane %v1774, %v1782
          %v1802 = vunpack.c.l.b16 %v1758
          %v1803 = vunpack.c.h.b16 %v1758
          %v1804 = vunpack.c.l.b16 %v1759
          %v1805 = vunpack.c.h.b16 %v1759
          %v1806 = vunpack.c.l.b16 %v1760
          %v1807 = vunpack.c.h.b16 %v1760
          %v1808 = vunpack.c.l.b16 %v1761
          %v1809 = vunpack.c.h.b16 %v1761
          %v1810 = vunpack.c.l.b16 %v1762
          %v1811 = vunpack.c.h.b16 %v1762
          %v1812 = vunpack.c.l.b16 %v1763
          %v1813 = vunpack.c.h.b16 %v1763
          %v1814 = vunpack.c.l.b16 %v1764
          %v1815 = vunpack.c.h.b16 %v1764
          %v1816 = vunpack.c.l.b16 %v1765
          %v1817 = vunpack.c.h.b16 %v1765
          %v1818 = vunpack.c.l.b16 %v1766
          %v1819 = vunpack.c.h.b16 %v1766
          %v1820 = vunpack.c.l.b16 %v1767
          %v1821 = vunpack.c.h.b16 %v1767
          %v1822 = vunpack.c.l.b16 %v1768
          %v1823 = vunpack.c.h.b16 %v1768
          %v1824 = vunpack.c.l.b16 %v1769
          %v1825 = vunpack.c.h.b16 %v1769
          %v1826 = vunpack.c.l.b16 %v1770
          %v1827 = vunpack.c.h.b16 %v1770
          %v1828 = vunpack.c.l.b16 %v1771
          %v1829 = vunpack.c.h.b16 %v1771
          %v1830 = vunpack.c.l.b16 %v1772
          %v1831 = vunpack.c.h.b16 %v1772
          %v1832 = vunpack.c.l.b16 %v1773
          %v1833 = vunpack.c.h.b16 %v1773
          %v1834 = vpack.c.b16 %v1804, %v1802
          %v1835 = vpack.c.b16 %v1805, %v1803
          %v1836 = vpack.c.b16 %v1808, %v1806
          %v1837 = vpack.c.b16 %v1809, %v1807
          %v1838 = vpack.c.b16 %v1812, %v1810
          %v1839 = vpack.c.b16 %v1813, %v1811
          %v1840 = vpack.c.b16 %v1816, %v1814
          %v1841 = vpack.c.b16 %v1817, %v1815
          %v1842 = vpack.c.b16 %v1820, %v1818
          %v1843 = vpack.c.b16 %v1821, %v1819
          %v1844 = vpack.c.b16 %v1824, %v1822
          %v1845 = vpack.c.b16 %v1825, %v1823
          %v1846 = vpack.c.b16 %v1828, %v1826
          %v1847 = vpack.c.b16 %v1829, %v1827
          %v1848 = vpack.c.b16 %v1832, %v1830
          %v1849 = vpack.c.b16 %v1833, %v1831
          %1866 = vmatprep.subr.bf16.mxu0 %v1849
          %1867 = vmatpush1.bf16.msra.mxu0 %v1848
          %1868 = vmatprep.subr.bf16.mxu0 %v1847
          %1869 = vmatpush1.bf16.msra.mxu0 %v1846
          %1870 = vmatprep.subr.bf16.mxu0 %v1845
          %1871 = vmatpush1.bf16.msra.mxu0 %v1844
          %1872 = vmatprep.subr.bf16.mxu0 %v1843
          %1873 = vmatpush1.bf16.msra.mxu0 %v1842
          %1874 = vmatprep.subr.bf16.mxu0 %v1841
          %1875 = vmatpush1.bf16.msra.mxu0 %v1840
          %1876 = vmatprep.subr.bf16.mxu0 %v1839
          %1877 = vmatpush1.bf16.msra.mxu0 %v1838
          %1878 = vmatprep.subr.bf16.mxu0 %v1837
          %1879 = vmatpush1.bf16.msra.mxu0 %v1836
          %1880 = vmatprep.subr.bf16.mxu0 %v1835
          %1881 = vmatpush1.bf16.msra.mxu0 %v1834
          %1882 = vmatprep.subr.bf16.mxu0 0
          %1883 = vmatpush2.bf16.msra.mxu0 0
          %1884 = vmatprep.subr.bf16.mxu0 0
          %1885 = vmatpush2.bf16.msra.mxu0 0
          %1886 = vmatprep.subr.bf16.mxu0 0
          %1887 = vmatpush2.bf16.msra.mxu0 0
          %1888 = vmatprep.subr.bf16.mxu0 0
          %1889 = vmatpush2.bf16.msra.mxu0 0
          %1890 = vmatprep.subr.bf16.mxu0 0
          %1891 = vmatpush2.bf16.msra.mxu0 0
          %1892 = vmatprep.subr.bf16.mxu0 0
          %1893 = vmatpush2.bf16.msra.mxu0 0
          %1894 = vmatprep.subr.bf16.mxu0 0
          %1895 = vmatpush2.bf16.msra.mxu0 0
          %1896 = vmatprep.subr.bf16.mxu0 0
          %1897 = vmatpush2.bf16.msra.mxu0 0
          %1898 = vmatprep.mubr.bf16.mxu0 0
          %1899 = vmatmul.mubr.bf16.gmra.mxu0 %v1757
          %v1900 = vpop.f32.mrf.mxu0
          %v1901 = vadd.f32 %v1779, %v1900
          %v1902 = vpop.f32.mrf.mxu0
          %v1903 = vadd.f32 %v1783, %v1902
          %v1904 = vpop.f32.mrf.mxu0
          %v1905 = vadd.f32 %v1779, %v1904
          %v1906 = vpop.f32.mrf.mxu0
          %v1907 = vadd.f32 %v1783, %v1906
          %1908 = vdwg.mxu0
          %v1909 = vtanh.pop %v1901
          %v1910 = vtanh.pop %v1905
          %v1911 = vmul.f32 %v1903, 0.5
          %v1912 = vmul.f32 %v1907, 0.5
          %v1913 = vtanh.pop %v1911
          %v1914 = vtanh.pop %v1912
          %v1915 = vmul.f32 %v1913, 0.5
          %v1916 = vmul.f32 %v1914, 0.5
          %v1917 = vadd.f32 %v1915, 0.5
          %v1918 = vadd.f32 %v1916, 0.5
          %s1919 = sadd.s32 %s665, 5
          %s1920 = smul.u32 %s1919, 2
          %s1921 = smul.addr %s1920, 4
          %s1922 = scalar_lea.vmem [#allocation2], %s1921
          %v1923 = vld [vmem:[%s1922] sm:$0xf]
          %v1924 = vld [vmem:[%s1922 + $0x4] sm:$0xf]
          %v1925 = vunpack.c.l.bf16 %v1923
          %v1926 = vunpack.c.l.bf16 %v1924
          %v1927 = vstv %s1753
          %v1928 = vmul.f32 %v1909, %v1927
          %v1929 = vmul.f32 %v1910, %v1927
          %v1930 = vadd.f32 %v1755, %v1928
          %v1931 = vadd.f32 %v1756, %v1929
          %v1932 = vmul.f32 %v1917, %v1925
          %v1933 = vmul.f32 %v1918, %v1926
          %v1934 = vadd.f32 %v1930, %v1932
          %v1935 = vadd.f32 %v1931, %v1933
          %1936 = vst [vmem:[#allocation4] sm:$0xff] %v1934
          %1937 = vst [vmem:[#allocation4 + $0x8] sm:$0xff] %v1935
          %p1938 = scmp.ge.s32.totalorder %s1754, 0
          // Predicated region
          $region132: #{tpu_custom_call.1} parent=100 // pred_check
            %p1939 = pneg %p1938
          $region133: #{tpu_custom_call.1} parent=100 // pred_check_branch
            %1941 = sbr.rel (%p1939) target = $region135
          $region134: #{tpu_custom_call.1} parent=100 // pred_region
            %v1942 = vld [vmem:[%s515] sm:$0xff]
            %v1943 = vld [vmem:[%s515 + $0x8] sm:$0xff]
            %v1944 = vstv %s1754
            %vm1945 = vcmp.eq.s32.totalorder %v1942, %v1944
            %vm1946 = vcmp.eq.s32.totalorder %v1943, %v1944
            %v1947 = vld [vmem:[#allocation5] sm:$0xff]
            %v1948 = vld [vmem:[#allocation5 + $0x8] sm:$0xff]
            %v1949 = vsel %vm1945, 1, 0
            %v1950 = vsel %vm1946, 1, 0
            %1951 = vset.pattern.permute.xlu0 0
            %1952 = vperm.xlu0 %1951, %v1949
            %v1953 = vpop.permute.xlu0 %1952
            %1954 = vset.pattern.permute.xlu0 0
            %1955 = vperm.xlu0 %1954, %v1950
            %v1956 = vpop.permute.xlu0 %1955
            %vm1957 = vcmp.eq.s32.totalorder %v1953, 1
            %vm1958 = vcmp.eq.s32.totalorder %v1956, 1
            %v1959 = vsel %vm1957, %v1934, %v1947
            %v1960 = vsel %vm1958, %v1935, %v1948
            %1961 = vst [vmem:[#allocation5] sm:$0xff] %v1959
            %1962 = vst [vmem:[#allocation5 + $0x8] sm:$0xff] %v1960
          $region135: #{tpu_custom_call.1} parent=100 // pred_fallthru
            _
          %s1963 = sadd.s32 %s698, 6
          %s1964 = sld [smem:[#allocation6 + %s1963]]
          %s1965 = sld [smem:[#allocation10 + %s1963]]
          %v1966 = vld [vmem:[#allocation4] sm:$0xff]
          %v1967 = vld [vmem:[#allocation4 + $0x8] sm:$0xff]
          %v1968 = vpack.c.bf16 %v1967, %v1966
          %v1969 = vld [vmem:[#allocation13] sm:$0xff]
          %v1970 = vld [vmem:[#allocation13 + $0x8] sm:$0xff]
          %v1971 = vld [vmem:[#allocation13 + $0x10] sm:$0xff]
          %v1972 = vld [vmem:[#allocation13 + $0x18] sm:$0xff]
          %v1973 = vld [vmem:[#allocation13 + $0x20] sm:$0xff]
          %v1974 = vld [vmem:[#allocation13 + $0x28] sm:$0xff]
          %v1975 = vld [vmem:[#allocation13 + $0x30] sm:$0xff]
          %v1976 = vld [vmem:[#allocation13 + $0x38] sm:$0xff]
          %v1977 = vld [vmem:[#allocation13 + $0x40] sm:$0xff]
          %v1978 = vld [vmem:[#allocation13 + $0x48] sm:$0xff]
          %v1979 = vld [vmem:[#allocation13 + $0x50] sm:$0xff]
          %v1980 = vld [vmem:[#allocation13 + $0x58] sm:$0xff]
          %v1981 = vld [vmem:[#allocation13 + $0x60] sm:$0xff]
          %v1982 = vld [vmem:[#allocation13 + $0x68] sm:$0xff]
          %v1983 = vld [vmem:[#allocation13 + $0x70] sm:$0xff]
          %v1984 = vld [vmem:[#allocation13 + $0x78] sm:$0xff]
          %v1985 = vld [vmem:[%s8] sm:$0x3]
          %v1987 = vlaneseq
          %v1988 = vshrl.u32 %v1987, 7
          %v1989 = vsub.s32 0, %v1988
          %v1990 = vrot.slane %v1985, %v1989
          %v1991 = vlaneseq
          %v1992 = vshrl.u32 %v1991, 7
          %v1993 = vsub.s32 1, %v1992
          %v1994 = vrot.slane %v1985, %v1993
          %v2013 = vunpack.c.l.b16 %v1969
          %v2014 = vunpack.c.h.b16 %v1969
          %v2015 = vunpack.c.l.b16 %v1970
          %v2016 = vunpack.c.h.b16 %v1970
          %v2017 = vunpack.c.l.b16 %v1971
          %v2018 = vunpack.c.h.b16 %v1971
          %v2019 = vunpack.c.l.b16 %v1972
          %v2020 = vunpack.c.h.b16 %v1972
          %v2021 = vunpack.c.l.b16 %v1973
          %v2022 = vunpack.c.h.b16 %v1973
          %v2023 = vunpack.c.l.b16 %v1974
          %v2024 = vunpack.c.h.b16 %v1974
          %v2025 = vunpack.c.l.b16 %v1975
          %v2026 = vunpack.c.h.b16 %v1975
          %v2027 = vunpack.c.l.b16 %v1976
          %v2028 = vunpack.c.h.b16 %v1976
          %v2029 = vunpack.c.l.b16 %v1977
          %v2030 = vunpack.c.h.b16 %v1977
          %v2031 = vunpack.c.l.b16 %v1978
          %v2032 = vunpack.c.h.b16 %v1978
          %v2033 = vunpack.c.l.b16 %v1979
          %v2034 = vunpack.c.h.b16 %v1979
          %v2035 = vunpack.c.l.b16 %v1980
          %v2036 = vunpack.c.h.b16 %v1980
          %v2037 = vunpack.c.l.b16 %v1981
          %v2038 = vunpack.c.h.b16 %v1981
          %v2039 = vunpack.c.l.b16 %v1982
          %v2040 = vunpack.c.h.b16 %v1982
          %v2041 = vunpack.c.l.b16 %v1983
          %v2042 = vunpack.c.h.b16 %v1983
          %v2043 = vunpack.c.l.b16 %v1984
          %v2044 = vunpack.c.h.b16 %v1984
          %v2045 = vpack.c.b16 %v2015, %v2013
          %v2046 = vpack.c.b16 %v2016, %v2014
          %v2047 = vpack.c.b16 %v2019, %v2017
          %v2048 = vpack.c.b16 %v2020, %v2018
          %v2049 = vpack.c.b16 %v2023, %v2021
          %v2050 = vpack.c.b16 %v2024, %v2022
          %v2051 = vpack.c.b16 %v2027, %v2025
          %v2052 = vpack.c.b16 %v2028, %v2026
          %v2053 = vpack.c.b16 %v2031, %v2029
          %v2054 = vpack.c.b16 %v2032, %v2030
          %v2055 = vpack.c.b16 %v2035, %v2033
          %v2056 = vpack.c.b16 %v2036, %v2034
          %v2057 = vpack.c.b16 %v2039, %v2037
          %v2058 = vpack.c.b16 %v2040, %v2038
          %v2059 = vpack.c.b16 %v2043, %v2041
          %v2060 = vpack.c.b16 %v2044, %v2042
          %2077 = vmatprep.subr.bf16.mxu0 %v2060
          %2078 = vmatpush1.bf16.msra.mxu0 %v2059
          %2079 = vmatprep.subr.bf16.mxu0 %v2058
          %2080 = vmatpush1.bf16.msra.mxu0 %v2057
          %2081 = vmatprep.subr.bf16.mxu0 %v2056
          %2082 = vmatpush1.bf16.msra.mxu0 %v2055
          %2083 = vmatprep.subr.bf16.mxu0 %v2054
          %2084 = vmatpush1.bf16.msra.mxu0 %v2053
          %2085 = vmatprep.subr.bf16.mxu0 %v2052
          %2086 = vmatpush1.bf16.msra.mxu0 %v2051
          %2087 = vmatprep.subr.bf16.mxu0 %v2050
          %2088 = vmatpush1.bf16.msra.mxu0 %v2049
          %2089 = vmatprep.subr.bf16.mxu0 %v2048
          %2090 = vmatpush1.bf16.msra.mxu0 %v2047
          %2091 = vmatprep.subr.bf16.mxu0 %v2046
          %2092 = vmatpush1.bf16.msra.mxu0 %v2045
          %2093 = vmatprep.subr.bf16.mxu0 0
          %2094 = vmatpush2.bf16.msra.mxu0 0
          %2095 = vmatprep.subr.bf16.mxu0 0
          %2096 = vmatpush2.bf16.msra.mxu0 0
          %2097 = vmatprep.subr.bf16.mxu0 0
          %2098 = vmatpush2.bf16.msra.mxu0 0
          %2099 = vmatprep.subr.bf16.mxu0 0
          %2100 = vmatpush2.bf16.msra.mxu0 0
          %2101 = vmatprep.subr.bf16.mxu0 0
          %2102 = vmatpush2.bf16.msra.mxu0 0
          %2103 = vmatprep.subr.bf16.mxu0 0
          %2104 = vmatpush2.bf16.msra.mxu0 0
          %2105 = vmatprep.subr.bf16.mxu0 0
          %2106 = vmatpush2.bf16.msra.mxu0 0
          %2107 = vmatprep.subr.bf16.mxu0 0
          %2108 = vmatpush2.bf16.msra.mxu0 0
          %2109 = vmatprep.mubr.bf16.mxu0 0
          %2110 = vmatmul.mubr.bf16.gmra.mxu0 %v1968
          %v2111 = vpop.f32.mrf.mxu0
          %v2112 = vadd.f32 %v1990, %v2111
          %v2113 = vpop.f32.mrf.mxu0
          %v2114 = vadd.f32 %v1994, %v2113
          %v2115 = vpop.f32.mrf.mxu0
          %v2116 = vadd.f32 %v1990, %v2115
          %v2117 = vpop.f32.mrf.mxu0
          %v2118 = vadd.f32 %v1994, %v2117
          %2119 = vdwg.mxu0
          %v2120 = vtanh.pop %v2112
          %v2121 = vtanh.pop %v2116
          %v2122 = vmul.f32 %v2114, 0.5
          %v2123 = vmul.f32 %v2118, 0.5
          %v2124 = vtanh.pop %v2122
          %v2125 = vtanh.pop %v2123
          %v2126 = vmul.f32 %v2124, 0.5
          %v2127 = vmul.f32 %v2125, 0.5
          %v2128 = vadd.f32 %v2126, 0.5
          %v2129 = vadd.f32 %v2127, 0.5
          %s2130 = sadd.s32 %s665, 6
          %s2131 = smul.u32 %s2130, 2
          %s2132 = smul.addr %s2131, 4
          %s2133 = scalar_lea.vmem [#allocation2], %s2132
          %v2134 = vld [vmem:[%s2133] sm:$0xf]
          %v2135 = vld [vmem:[%s2133 + $0x4] sm:$0xf]
          %v2136 = vunpack.c.l.bf16 %v2134
          %v2137 = vunpack.c.l.bf16 %v2135
          %v2138 = vstv %s1964
          %v2139 = vmul.f32 %v2120, %v2138
          %v2140 = vmul.f32 %v2121, %v2138
          %v2141 = vadd.f32 %v1966, %v2139
          %v2142 = vadd.f32 %v1967, %v2140
          %v2143 = vmul.f32 %v2128, %v2136
          %v2144 = vmul.f32 %v2129, %v2137
          %v2145 = vadd.f32 %v2141, %v2143
          %v2146 = vadd.f32 %v2142, %v2144
          %2147 = vst [vmem:[#allocation4] sm:$0xff] %v2145
          %2148 = vst [vmem:[#allocation4 + $0x8] sm:$0xff] %v2146
          %p2149 = scmp.ge.s32.totalorder %s1965, 0
          // Predicated region
          $region136: #{tpu_custom_call.1} parent=100 // pred_check
            %p2150 = pneg %p2149
          $region137: #{tpu_custom_call.1} parent=100 // pred_check_branch
            %2152 = sbr.rel (%p2150) target = $region139
          $region138: #{tpu_custom_call.1} parent=100 // pred_region
            %v2153 = vld [vmem:[%s515] sm:$0xff]
            %v2154 = vld [vmem:[%s515 + $0x8] sm:$0xff]
            %v2155 = vstv %s1965
            %vm2156 = vcmp.eq.s32.totalorder %v2153, %v2155
            %vm2157 = vcmp.eq.s32.totalorder %v2154, %v2155
            %v2158 = vld [vmem:[#allocation5] sm:$0xff]
            %v2159 = vld [vmem:[#allocation5 + $0x8] sm:$0xff]
            %v2160 = vsel %vm2156, 1, 0
            %v2161 = vsel %vm2157, 1, 0
            %2162 = vset.pattern.permute.xlu0 0
            %2163 = vperm.xlu0 %2162, %v2160
            %v2164 = vpop.permute.xlu0 %2163
            %2165 = vset.pattern.permute.xlu0 0
            %2166 = vperm.xlu0 %2165, %v2161
            %v2167 = vpop.permute.xlu0 %2166
            %vm2168 = vcmp.eq.s32.totalorder %v2164, 1
            %vm2169 = vcmp.eq.s32.totalorder %v2167, 1
            %v2170 = vsel %vm2168, %v2145, %v2158
            %v2171 = vsel %vm2169, %v2146, %v2159
            %2172 = vst [vmem:[#allocation5] sm:$0xff] %v2170
            %2173 = vst [vmem:[#allocation5 + $0x8] sm:$0xff] %v2171
          $region139: #{tpu_custom_call.1} parent=100 // pred_fallthru
            _
          %s2174 = sadd.s32 %s698, 7
          %s2175 = sld [smem:[#allocation6 + %s2174]]
          %s2176 = sld [smem:[#allocation10 + %s2174]]
          %v2177 = vld [vmem:[#allocation4] sm:$0xff]
          %v2178 = vld [vmem:[#allocation4 + $0x8] sm:$0xff]
          %v2179 = vpack.c.bf16 %v2178, %v2177
          %v2180 = vld [vmem:[#allocation13] sm:$0xff]
          %v2181 = vld [vmem:[#allocation13 + $0x8] sm:$0xff]
          %v2182 = vld [vmem:[#allocation13 + $0x10] sm:$0xff]
          %v2183 = vld [vmem:[#allocation13 + $0x18] sm:$0xff]
          %v2184 = vld [vmem:[#allocation13 + $0x20] sm:$0xff]
          %v2185 = vld [vmem:[#allocation13 + $0x28] sm:$0xff]
          %v2186 = vld [vmem:[#allocation13 + $0x30] sm:$0xff]
          %v2187 = vld [vmem:[#allocation13 + $0x38] sm:$0xff]
          %v2188 = vld [vmem:[#allocation13 + $0x40] sm:$0xff]
          %v2189 = vld [vmem:[#allocation13 + $0x48] sm:$0xff]
          %v2190 = vld [vmem:[#allocation13 + $0x50] sm:$0xff]
          %v2191 = vld [vmem:[#allocation13 + $0x58] sm:$0xff]
          %v2192 = vld [vmem:[#allocation13 + $0x60] sm:$0xff]
          %v2193 = vld [vmem:[#allocation13 + $0x68] sm:$0xff]
          %v2194 = vld [vmem:[#allocation13 + $0x70] sm:$0xff]
          %v2195 = vld [vmem:[#allocation13 + $0x78] sm:$0xff]
          %v2196 = vld [vmem:[%s8] sm:$0x3]
          %v2198 = vlaneseq
          %v2199 = vshrl.u32 %v2198, 7
          %v2200 = vsub.s32 0, %v2199
          %v2201 = vrot.slane %v2196, %v2200
          %v2202 = vlaneseq
          %v2203 = vshrl.u32 %v2202, 7
          %v2204 = vsub.s32 1, %v2203
          %v2205 = vrot.slane %v2196, %v2204
          %v2224 = vunpack.c.l.b16 %v2180
          %v2225 = vunpack.c.h.b16 %v2180
          %v2226 = vunpack.c.l.b16 %v2181
          %v2227 = vunpack.c.h.b16 %v2181
          %v2228 = vunpack.c.l.b16 %v2182
          %v2229 = vunpack.c.h.b16 %v2182
          %v2230 = vunpack.c.l.b16 %v2183
          %v2231 = vunpack.c.h.b16 %v2183
          %v2232 = vunpack.c.l.b16 %v2184
          %v2233 = vunpack.c.h.b16 %v2184
          %v2234 = vunpack.c.l.b16 %v2185
          %v2235 = vunpack.c.h.b16 %v2185
          %v2236 = vunpack.c.l.b16 %v2186
          %v2237 = vunpack.c.h.b16 %v2186
          %v2238 = vunpack.c.l.b16 %v2187
          %v2239 = vunpack.c.h.b16 %v2187
          %v2240 = vunpack.c.l.b16 %v2188
          %v2241 = vunpack.c.h.b16 %v2188
          %v2242 = vunpack.c.l.b16 %v2189
          %v2243 = vunpack.c.h.b16 %v2189
          %v2244 = vunpack.c.l.b16 %v2190
          %v2245 = vunpack.c.h.b16 %v2190
          %v2246 = vunpack.c.l.b16 %v2191
          %v2247 = vunpack.c.h.b16 %v2191
          %v2248 = vunpack.c.l.b16 %v2192
          %v2249 = vunpack.c.h.b16 %v2192
          %v2250 = vunpack.c.l.b16 %v2193
          %v2251 = vunpack.c.h.b16 %v2193
          %v2252 = vunpack.c.l.b16 %v2194
          %v2253 = vunpack.c.h.b16 %v2194
          %v2254 = vunpack.c.l.b16 %v2195
          %v2255 = vunpack.c.h.b16 %v2195
          %v2256 = vpack.c.b16 %v2226, %v2224
          %v2257 = vpack.c.b16 %v2227, %v2225
          %v2258 = vpack.c.b16 %v2230, %v2228
          %v2259 = vpack.c.b16 %v2231, %v2229
          %v2260 = vpack.c.b16 %v2234, %v2232
          %v2261 = vpack.c.b16 %v2235, %v2233
          %v2262 = vpack.c.b16 %v2238, %v2236
          %v2263 = vpack.c.b16 %v2239, %v2237
          %v2264 = vpack.c.b16 %v2242, %v2240
          %v2265 = vpack.c.b16 %v2243, %v2241
          %v2266 = vpack.c.b16 %v2246, %v2244
          %v2267 = vpack.c.b16 %v2247, %v2245
          %v2268 = vpack.c.b16 %v2250, %v2248
          %v2269 = vpack.c.b16 %v2251, %v2249
          %v2270 = vpack.c.b16 %v2254, %v2252
          %v2271 = vpack.c.b16 %v2255, %v2253
          %2288 = vmatprep.subr.bf16.mxu0 %v2271
          %2289 = vmatpush1.bf16.msra.mxu0 %v2270
          %2290 = vmatprep.subr.bf16.mxu0 %v2269
          %2291 = vmatpush1.bf16.msra.mxu0 %v2268
          %2292 = vmatprep.subr.bf16.mxu0 %v2267
          %2293 = vmatpush1.bf16.msra.mxu0 %v2266
          %2294 = vmatprep.subr.bf16.mxu0 %v2265
          %2295 = vmatpush1.bf16.msra.mxu0 %v2264
          %2296 = vmatprep.subr.bf16.mxu0 %v2263
          %2297 = vmatpush1.bf16.msra.mxu0 %v2262
          %2298 = vmatprep.subr.bf16.mxu0 %v2261
          %2299 = vmatpush1.bf16.msra.mxu0 %v2260
          %2300 = vmatprep.subr.bf16.mxu0 %v2259
          %2301 = vmatpush1.bf16.msra.mxu0 %v2258
          %2302 = vmatprep.subr.bf16.mxu0 %v2257
          %2303 = vmatpush1.bf16.msra.mxu0 %v2256
          %2304 = vmatprep.subr.bf16.mxu0 0
          %2305 = vmatpush2.bf16.msra.mxu0 0
          %2306 = vmatprep.subr.bf16.mxu0 0
          %2307 = vmatpush2.bf16.msra.mxu0 0
          %2308 = vmatprep.subr.bf16.mxu0 0
          %2309 = vmatpush2.bf16.msra.mxu0 0
          %2310 = vmatprep.subr.bf16.mxu0 0
          %2311 = vmatpush2.bf16.msra.mxu0 0
          %2312 = vmatprep.subr.bf16.mxu0 0
          %2313 = vmatpush2.bf16.msra.mxu0 0
          %2314 = vmatprep.subr.bf16.mxu0 0
          %2315 = vmatpush2.bf16.msra.mxu0 0
          %2316 = vmatprep.subr.bf16.mxu0 0
          %2317 = vmatpush2.bf16.msra.mxu0 0
          %2318 = vmatprep.subr.bf16.mxu0 0
          %2319 = vmatpush2.bf16.msra.mxu0 0
          %2320 = vmatprep.mubr.bf16.mxu0 0
          %2321 = vmatmul.mubr.bf16.gmra.mxu0 %v2179
          %v2322 = vpop.f32.mrf.mxu0
          %v2323 = vadd.f32 %v2201, %v2322
          %v2324 = vpop.f32.mrf.mxu0
          %v2325 = vadd.f32 %v2205, %v2324
          %v2326 = vpop.f32.mrf.mxu0
          %v2327 = vadd.f32 %v2201, %v2326
          %v2328 = vpop.f32.mrf.mxu0
          %v2329 = vadd.f32 %v2205, %v2328
          %2330 = vdwg.mxu0
          %v2331 = vtanh.pop %v2323
          %v2332 = vtanh.pop %v2327
          %v2333 = vmul.f32 %v2325, 0.5
          %v2334 = vmul.f32 %v2329, 0.5
          %v2335 = vtanh.pop %v2333
          %v2336 = vtanh.pop %v2334
          %v2337 = vmul.f32 %v2335, 0.5
          %v2338 = vmul.f32 %v2336, 0.5
          %v2339 = vadd.f32 %v2337, 0.5
          %v2340 = vadd.f32 %v2338, 0.5
          %s2341 = sadd.s32 %s665, 7
          %s2342 = smul.u32 %s2341, 2
          %s2343 = smul.addr %s2342, 4
          %s2344 = scalar_lea.vmem [#allocation2], %s2343
          %v2345 = vld [vmem:[%s2344] sm:$0xf]
          %v2346 = vld [vmem:[%s2344 + $0x4] sm:$0xf]
          %v2347 = vunpack.c.l.bf16 %v2345
          %v2348 = vunpack.c.l.bf16 %v2346
          %v2349 = vstv %s2175
          %v2350 = vmul.f32 %v2331, %v2349
          %v2351 = vmul.f32 %v2332, %v2349
          %v2352 = vadd.f32 %v2177, %v2350
          %v2353 = vadd.f32 %v2178, %v2351
          %v2354 = vmul.f32 %v2339, %v2347
          %v2355 = vmul.f32 %v2340, %v2348
          %v2356 = vadd.f32 %v2352, %v2354
          %v2357 = vadd.f32 %v2353, %v2355
          %2358 = vst [vmem:[#allocation4] sm:$0xff] %v2356
          %2359 = vst [vmem:[#allocation4 + $0x8] sm:$0xff] %v2357
          %p2360 = scmp.ge.s32.totalorder %s2176, 0
          // Predicated region
          $region140: #{tpu_custom_call.1} parent=100 // pred_check
            %p2361 = pneg %p2360
          $region141: #{tpu_custom_call.1} parent=100 // pred_check_branch
            %2363 = sbr.rel (%p2361) target = $region143
          $region142: #{tpu_custom_call.1} parent=100 // pred_region
            %v2364 = vld [vmem:[%s515] sm:$0xff]
            %v2365 = vld [vmem:[%s515 + $0x8] sm:$0xff]
            %v2366 = vstv %s2176
            %vm2367 = vcmp.eq.s32.totalorder %v2364, %v2366
            %vm2368 = vcmp.eq.s32.totalorder %v2365, %v2366
            %v2369 = vld [vmem:[#allocation5] sm:$0xff]
            %v2370 = vld [vmem:[#allocation5 + $0x8] sm:$0xff]
            %v2371 = vsel %vm2367, 1, 0
            %v2372 = vsel %vm2368, 1, 0
            %2373 = vset.pattern.permute.xlu0 0
            %2374 = vperm.xlu0 %2373, %v2371
            %v2375 = vpop.permute.xlu0 %2374
            %2376 = vset.pattern.permute.xlu0 0
            %2377 = vperm.xlu0 %2376, %v2372
            %v2378 = vpop.permute.xlu0 %2377
            %vm2379 = vcmp.eq.s32.totalorder %v2375, 1
            %vm2380 = vcmp.eq.s32.totalorder %v2378, 1
            %v2381 = vsel %vm2379, %v2356, %v2369
            %v2382 = vsel %vm2380, %v2357, %v2370
            %2383 = vst [vmem:[#allocation5] sm:$0xff] %v2381
            %2384 = vst [vmem:[#allocation5 + $0x8] sm:$0xff] %v2382
          $region143: #{tpu_custom_call.1} parent=100 // pred_fallthru
            _
        $region101: #{tpu_custom_call.1} parent=67 // loop_footer
          %s663 = sadd.s32 1, %s659
        $region102: #{tpu_custom_call.1} parent=67 // loop_footer_branch
          %658 = sbr.rel target = $region98
        $region103: #{tpu_custom_call.1} parent=67 // loop_exit
          _
        %v2385 = vld [vmem:[#allocation5] sm:$0xff]
        %v2386 = vld [vmem:[#allocation5 + $0x8] sm:$0xff]
        %v2387 = vtanh.pop %v2385
        %v2388 = vtanh.pop %v2386
        %v2389 = vpack.c.bf16 %v2388, %v2387
        %v2390 = vld [vmem:[#allocation15] sm:$0xf]
        %v2391 = vld [vmem:[#allocation15 + $0x4] sm:$0xf]
        %v2392 = vld [vmem:[#allocation15 + $0x8] sm:$0xf]
        %v2393 = vld [vmem:[#allocation15 + $0xc] sm:$0xf]
        %v2394 = vld [vmem:[#allocation15 + $0x10] sm:$0xf]
        %v2395 = vld [vmem:[#allocation15 + $0x14] sm:$0xf]
        %v2396 = vld [vmem:[#allocation15 + $0x18] sm:$0xf]
        %v2397 = vld [vmem:[#allocation15 + $0x1c] sm:$0xf]
        %v2398 = vld [vmem:[#allocation15 + $0x20] sm:$0xf]
        %v2399 = vld [vmem:[#allocation15 + $0x24] sm:$0xf]
        %v2400 = vld [vmem:[#allocation15 + $0x28] sm:$0xf]
        %v2401 = vld [vmem:[#allocation15 + $0x2c] sm:$0xf]
        %v2402 = vld [vmem:[#allocation15 + $0x30] sm:$0xf]
        %v2403 = vld [vmem:[#allocation15 + $0x34] sm:$0xf]
        %v2404 = vld [vmem:[#allocation15 + $0x38] sm:$0xf]
        %v2405 = vld [vmem:[#allocation15 + $0x3c] sm:$0xf]
        %v2406 = vld [vmem:[%s10] sm:$0x1]
        %v2408 = vlaneseq
        %v2409 = vshrl.u32 %v2408, 7
        %v2410 = vsub.s32 0, %v2409
        %v2411 = vrot.slane %v2406, %v2410
        %v2429 = vunpack.c.l.b16 %v2390
        %v2430 = vunpack.c.l.b16 %v2391
        %v2431 = vunpack.c.l.b16 %v2392
        %v2432 = vunpack.c.l.b16 %v2393
        %v2433 = vunpack.c.l.b16 %v2394
        %v2434 = vunpack.c.l.b16 %v2395
        %v2435 = vunpack.c.l.b16 %v2396
        %v2436 = vunpack.c.l.b16 %v2397
        %v2437 = vunpack.c.l.b16 %v2398
        %v2438 = vunpack.c.l.b16 %v2399
        %v2439 = vunpack.c.l.b16 %v2400
        %v2440 = vunpack.c.l.b16 %v2401
        %v2441 = vunpack.c.l.b16 %v2402
        %v2442 = vunpack.c.l.b16 %v2403
        %v2443 = vunpack.c.l.b16 %v2404
        %v2444 = vunpack.c.l.b16 %v2405
        %v2445 = vpack.c.b16 %v2430, %v2429
        %v2446 = vpack.c.b16 %v2432, %v2431
        %v2447 = vpack.c.b16 %v2434, %v2433
        %v2448 = vpack.c.b16 %v2436, %v2435
        %v2449 = vpack.c.b16 %v2438, %v2437
        %v2450 = vpack.c.b16 %v2440, %v2439
        %v2451 = vpack.c.b16 %v2442, %v2441
        %v2452 = vpack.c.b16 %v2444, %v2443
        %2461 = vmatprep.subr.bf16.mxu0 0
        %2462 = vmatpush1.bf16.msra.mxu0 %v2452
        %2463 = vmatprep.subr.bf16.mxu0 0
        %2464 = vmatpush1.bf16.msra.mxu0 %v2451
        %2465 = vmatprep.subr.bf16.mxu0 0
        %2466 = vmatpush1.bf16.msra.mxu0 %v2450
        %2467 = vmatprep.subr.bf16.mxu0 0
        %2468 = vmatpush1.bf16.msra.mxu0 %v2449
        %2469 = vmatprep.subr.bf16.mxu0 0
        %2470 = vmatpush1.bf16.msra.mxu0 %v2448
        %2471 = vmatprep.subr.bf16.mxu0 0
        %2472 = vmatpush1.bf16.msra.mxu0 %v2447
        %2473 = vmatprep.subr.bf16.mxu0 0
        %2474 = vmatpush1.bf16.msra.mxu0 %v2446
        %2475 = vmatprep.subr.bf16.mxu0 0
        %2476 = vmatpush1.bf16.msra.mxu0 %v2445
        %2477 = vmatprep.subr.bf16.mxu0 0
        %2478 = vmatpush2.bf16.msra.mxu0 0
        %2479 = vmatprep.subr.bf16.mxu0 0
        %2480 = vmatpush2.bf16.msra.mxu0 0
        %2481 = vmatprep.subr.bf16.mxu0 0
        %2482 = vmatpush2.bf16.msra.mxu0 0
        %2483 = vmatprep.subr.bf16.mxu0 0
        %2484 = vmatpush2.bf16.msra.mxu0 0
        %2485 = vmatprep.subr.bf16.mxu0 0
        %2486 = vmatpush2.bf16.msra.mxu0 0
        %2487 = vmatprep.subr.bf16.mxu0 0
        %2488 = vmatpush2.bf16.msra.mxu0 0
        %2489 = vmatprep.subr.bf16.mxu0 0
        %2490 = vmatpush2.bf16.msra.mxu0 0
        %2491 = vmatprep.subr.bf16.mxu0 0
        %2492 = vmatpush2.bf16.msra.mxu0 0
        %2493 = vmatprep.mubr.bf16.mxu0 0
        %2494 = vmatmul.mubr.bf16.gmra.mxu0 %v2389
        %v2495 = vpop.f32.mrf.mxu0
        %v2496 = vadd.f32 %v2411, %v2495
        %v2497 = vpop.f32.mrf.mxu0
        %v2498 = vpop.f32.mrf.mxu0
        %v2499 = vadd.f32 %v2411, %v2498
        %v2500 = vpop.f32.mrf.mxu0
        %2501 = vdwg.mxu0
        %v2502 = vmax.f32 %v2496, 0.0
        %v2503 = vmax.f32 %v2499, 0.0
        %v2504 = vpack.c.bf16 %v2503, %v2502
        %v2505 = vld [vmem:[#allocation16] sm:$0xf]
        %v2506 = vld [vmem:[#allocation16 + $0x4] sm:$0xf]
        %v2507 = vld [vmem:[#allocation16 + $0x8] sm:$0xf]
        %v2508 = vld [vmem:[#allocation16 + $0xc] sm:$0xf]
        %v2509 = vld [vmem:[#allocation16 + $0x10] sm:$0xf]
        %v2510 = vld [vmem:[#allocation16 + $0x14] sm:$0xf]
        %v2511 = vld [vmem:[#allocation16 + $0x18] sm:$0xf]
        %v2512 = vld [vmem:[#allocation16 + $0x1c] sm:$0xf]
        %v2513 = vld [vmem:[#allocation16 + $0x20] sm:$0xf]
        %v2514 = vld [vmem:[#allocation16 + $0x24] sm:$0xf]
        %v2515 = vld [vmem:[#allocation16 + $0x28] sm:$0xf]
        %v2516 = vld [vmem:[#allocation16 + $0x2c] sm:$0xf]
        %v2517 = vld [vmem:[#allocation16 + $0x30] sm:$0xf]
        %v2518 = vld [vmem:[#allocation16 + $0x34] sm:$0xf]
        %v2519 = vld [vmem:[#allocation16 + $0x38] sm:$0xf]
        %v2520 = vld [vmem:[#allocation16 + $0x3c] sm:$0xf]
        %v2521 = vld [vmem:[%s12] sm:$0x1]
        %v2523 = vlaneseq
        %v2524 = vshrl.u32 %v2523, 7
        %v2525 = vsub.s32 0, %v2524
        %v2526 = vrot.slane %v2521, %v2525
        %v2544 = vunpack.c.l.b16 %v2505
        %v2545 = vunpack.c.l.b16 %v2506
        %v2546 = vunpack.c.l.b16 %v2507
        %v2547 = vunpack.c.l.b16 %v2508
        %v2548 = vunpack.c.l.b16 %v2509
        %v2549 = vunpack.c.l.b16 %v2510
        %v2550 = vunpack.c.l.b16 %v2511
        %v2551 = vunpack.c.l.b16 %v2512
        %v2552 = vunpack.c.l.b16 %v2513
        %v2553 = vunpack.c.l.b16 %v2514
        %v2554 = vunpack.c.l.b16 %v2515
        %v2555 = vunpack.c.l.b16 %v2516
        %v2556 = vunpack.c.l.b16 %v2517
        %v2557 = vunpack.c.l.b16 %v2518
        %v2558 = vunpack.c.l.b16 %v2519
        %v2559 = vunpack.c.l.b16 %v2520
        %v2560 = vpack.c.b16 %v2545, %v2544
        %v2561 = vpack.c.b16 %v2547, %v2546
        %v2562 = vpack.c.b16 %v2549, %v2548
        %v2563 = vpack.c.b16 %v2551, %v2550
        %v2564 = vpack.c.b16 %v2553, %v2552
        %v2565 = vpack.c.b16 %v2555, %v2554
        %v2566 = vpack.c.b16 %v2557, %v2556
        %v2567 = vpack.c.b16 %v2559, %v2558
        %2576 = vmatprep.subr.bf16.mxu0 0
        %2577 = vmatpush1.bf16.msra.mxu0 %v2567
        %2578 = vmatprep.subr.bf16.mxu0 0
        %2579 = vmatpush1.bf16.msra.mxu0 %v2566
        %2580 = vmatprep.subr.bf16.mxu0 0
        %2581 = vmatpush1.bf16.msra.mxu0 %v2565
        %2582 = vmatprep.subr.bf16.mxu0 0
        %2583 = vmatpush1.bf16.msra.mxu0 %v2564
        %2584 = vmatprep.subr.bf16.mxu0 0
        %2585 = vmatpush1.bf16.msra.mxu0 %v2563
        %2586 = vmatprep.subr.bf16.mxu0 0
        %2587 = vmatpush1.bf16.msra.mxu0 %v2562
        %2588 = vmatprep.subr.bf16.mxu0 0
        %2589 = vmatpush1.bf16.msra.mxu0 %v2561
        %2590 = vmatprep.subr.bf16.mxu0 0
        %2591 = vmatpush1.bf16.msra.mxu0 %v2560
        %2592 = vmatprep.subr.bf16.mxu0 0
        %2593 = vmatpush2.bf16.msra.mxu0 0
        %2594 = vmatprep.subr.bf16.mxu0 0
        %2595 = vmatpush2.bf16.msra.mxu0 0
        %2596 = vmatprep.subr.bf16.mxu0 0
        %2597 = vmatpush2.bf16.msra.mxu0 0
        %2598 = vmatprep.subr.bf16.mxu0 0
        %2599 = vmatpush2.bf16.msra.mxu0 0
        %2600 = vmatprep.subr.bf16.mxu0 0
        %2601 = vmatpush2.bf16.msra.mxu0 0
        %2602 = vmatprep.subr.bf16.mxu0 0
        %2603 = vmatpush2.bf16.msra.mxu0 0
        %2604 = vmatprep.subr.bf16.mxu0 0
        %2605 = vmatpush2.bf16.msra.mxu0 0
        %2606 = vmatprep.subr.bf16.mxu0 0
        %2607 = vmatpush2.bf16.msra.mxu0 0
        %2608 = vmatprep.mubr.bf16.mxu0 0
        %2609 = vmatmul.mubr.bf16.gmra.mxu0 %v2504
        %v2610 = vpop.f32.mrf.mxu0
        %v2611 = vadd.f32 %v2526, %v2610
        %v2612 = vpop.f32.mrf.mxu0
        %v2613 = vpop.f32.mrf.mxu0
        %v2614 = vadd.f32 %v2526, %v2613
        %v2615 = vpop.f32.mrf.mxu0
        %2616 = vdwg.mxu0
        %2617 = vst [vmem:[%s510] sm:$0xff] %v2611
        %2618 = vst [vmem:[%s510 + $0x8] sm:$0xff] %v2614
        %s2619 = sand.u32 %s302, 1
        %s2620 = scalar_lea.sflag [#allocation8], %s2619
        %s2621 = sand.u32 %s302, 1
        %s2622 = smul.addr %s2621, 16
        %s2623 = scalar_lea.vmem [#allocation18], %s2622
        // Predicated region
        $region144: #{tpu_custom_call.1} parent=67 // pred_check
          %p2624 = pneg %p312
        $region145: #{tpu_custom_call.1} parent=67 // pred_check_branch
          %2626 = sbr.rel (%p2624) target = $region147
        $region146: #{tpu_custom_call.1} parent=67 // pred_region
          %s2627 = smul.u32 2, %s32
          %s2629 = ssub.s32 256, 256
          %2630 = vsyncadd %s2620, %s2629
          %s2631 = smul.addr %s2627, 128
          %s2632 = scalar_lea.hbm %s13, %s2631
          %s2633 = sshll.u32 %s2623, 4
          %s2634 = int_to_ptr.vmem [resolvable:$true] %s2633
          %2639 = dma.vmem_to_hbm [thread:$0]  %s2634, 256, %s2632, %s2620, 128, 128, 8
        $region147: #{tpu_custom_call.1} parent=67 // pred_fallthru
          _
      $region68: #{tpu_custom_call.1} parent=5 // pred_fallthru
        _
      %p2640 = scmp.le.s32.totalorder 2, %s27
      // Predicated region
      $region148: #{tpu_custom_call.1} parent=5 // pred_check
        %p2641 = pneg %p2640
      $region149: #{tpu_custom_call.1} parent=5 // pred_check_branch
        %2643 = sbr.rel (%p2641) target = $region151
      $region150: #{tpu_custom_call.1} parent=5 // pred_region
        %s2644 = ssub.s32 %s27, 2
        // Predicated region
        $region152: #{tpu_custom_call.1} parent=150 // pred_check
          %p2645 = pneg %p318
        $region153: #{tpu_custom_call.1} parent=150 // pred_check_branch
          %2647 = sbr.rel (%p2645) target = $region155
        $region154: #{tpu_custom_call.1} parent=150 // pred_region
          %s2648 = sand.u32 %s303, 1
          %s2649 = scalar_lea.sflag [#allocation8], %s2648
          %s2650 = sand.u32 %s303, 1
          %s2651 = smul.addr %s2650, 16
          %s2652 = scalar_lea.vmem [#allocation18], %s2651
          %2653 = dma.done %s2649, 256
        $region155: #{tpu_custom_call.1} parent=150 // pred_fallthru
          _
      $region151: #{tpu_custom_call.1} parent=5 // pred_fallthru
        _
    $region6: #{tpu_custom_call.1} parent=1 // loop_footer
      %s31 = sadd.s32 1, %s27
    $region7: #{tpu_custom_call.1} parent=1 // loop_footer_branch
      %26 = sbr.rel target = $region3
    $region8: #{tpu_custom_call.1} parent=1 // loop_exit
      _
    %2654 = vsyncpa [#allocation7], 1
    %s2655 = scalar_lea.sflag [#allocation7], 1
    %2656 = vsyncpa %s2655, 1
    %2657 = vsyncpa [#allocation14], 1
    %2658 = vsyncpa [#allocation17], 1
    %2659 = vsyncpa [#allocation8], 1
    %s2660 = scalar_lea.sflag [#allocation8], 1
    %2661 = vsyncpa %s2660, 1
    %2662 = vsyncpa [#allocation9], 1
    %s2663 = scalar_lea.sflag [#allocation9], 1
    %2664 = vsyncpa %s2663, 1
    %2665 = vsyncpa [#allocation11], 1
  %2666 = vsyncmov [#allocation3]
  %s2667 = vpop.sfrf %2666
  %p2668 = scmp.eq.s32.totalorder %s2667, 0
  %p2669 = pneg %p2668
  %2671 = shalt.err (%p2669)
  %s2672 = scalar_lea.sflag [#allocation3], 1
  %2673 = vsyncmov %s2672
  %s2674 = vpop.sfrf %2673
  %p2675 = scmp.eq.s32.totalorder %s2674, 0
  %p2676 = pneg %p2675
  %2678 = shalt.err (%p2676)

</llo_original>
